<compile_context>
chip_gen: v6e
topology: v6e:2x2x1
jax: 0.10.0
libtpu: 0.0.40
codegen_flags: <defaults>
</compile_context>

<pallas_src>
import functools

import jax
import jax.numpy as jnp
from jax.experimental import pallas as pl
from jax.experimental.pallas import tpu as pltpu


# ------------------------- in-kernel math helpers -------------------------

def _layer_norm(x, g, b, eps=1e-5):
    mu = jnp.mean(x, axis=-1, keepdims=True)
    xc = x - mu
    var = jnp.mean(xc * xc, axis=-1, keepdims=True)
    return xc * jax.lax.rsqrt(var + eps) * g + b


def _mha(xq, xk, xv, wq, bq, wk, bk, wv, bv, wo, bo, bias, num_heads):
    """Multi-head attention over a batch-flattened (M, E) slab.

    wq/wk/wv : (H, E, Dh)  per-head input projections (score scale folded into wq/bq)
    bq/bk/bv : (H, 1, Dh)
    wo       : (H, Dh, E)  per-head row-blocks of the output reprojection
    bo       : (1, E)
    bias     : (M, M)      additive score bias: 0 where attention is allowed,
                           -1e30 at causal-masked / cross-batch positions.
    """
    H = num_heads
    f32 = jnp.float32

    # Per-head projections: heads live on the (free) leading dim of the weights,
    # so no lane-dim slicing of activations; results are stacked into a leading
    # "head" batch dim for the batched score / PV / reprojection matmuls.
    q = jnp.stack([jnp.dot(xq, wq[h], preferred_element_type=f32) + bq[h]
                   for h in range(H)], axis=0)                          # (H, M, Dh)
    k = jnp.stack([jnp.dot(xk, wk[h], preferred_element_type=f32) + bk[h]
                   for h in range(H)], axis=0)                          # (H, M, Dh)
    v = jnp.stack([jnp.dot(xv, wv[h], preferred_element_type=f32) + bv[h]
                   for h in range(H)], axis=0)                          # (H, M, Dh)

    s = jnp.einsum('hqd,hkd->hqk', q, k, preferred_element_type=f32)    # (H, M, M)
    s = s + bias[None, :, :]                                            # hoisted mask
    smax = jnp.max(s, axis=-1, keepdims=True)
    e = jnp.exp(s - smax)
    # Exact reciprocal keeps the 1e-4 check vs the f32 reference; approx=True is
    # the production choice (EUP slot, ~free).
    p = e * pl.reciprocal(jnp.sum(e, axis=-1, keepdims=True), approx=False)
    o = jnp.einsum('hqk,hkd->hqd', p, v, preferred_element_type=f32)    # (H, M, Dh)

    # att @ Wo  ==  sum_h o_h @ Wo[h*Dh:(h+1)*Dh, :]  -> no concat / no scratch.
    r = jnp.einsum('hqd,hde->hqe', o, wo, preferred_element_type=f32)   # (H, M, E)
    return jnp.sum(r, axis=0) + bo


# ------------------------------- the kernel -------------------------------

def decoder_kernel(
    x_ref, z_ref, sbias_ref, cbias_ref,
    ln1_g_ref, ln1_b_ref, ln2_g_ref, ln2_b_ref,
    s_wq_ref, s_bq_ref, s_wk_ref, s_bk_ref, s_wv_ref, s_bv_ref, s_wo_ref, s_bo_ref,
    c_wq_ref, c_bq_ref, c_wk_ref, c_bk_ref, c_wv_ref, c_bv_ref, c_wo_ref, c_bo_ref,
    f_g_ref, f_b_ref, f_w1_ref, f_b1_ref, f_w2_ref, f_b2_ref,
    out_ref, *, num_heads,
):
    x = x_ref[...]            # (M, E) batch-flattened activations
    z = z_ref[...]            # (M, E)
    sbias = sbias_ref[...]    # (M, M) causal + block-diagonal bias
    cbias = cbias_ref[...]    # (M, M) block-diagonal bias only

    # x = LN1(x); x = x + masked self-attention(x, x, x)
    x = _layer_norm(x, ln1_g_ref[...], ln1_b_ref[...])
    x = x + _mha(x, x, x,
                 s_wq_ref[...], s_bq_ref[...], s_wk_ref[...], s_bk_ref[...],
                 s_wv_ref[...], s_bv_ref[...], s_wo_ref[...], s_bo_ref[...],
                 sbias, num_heads)

    # x = LN2(x); x = x + cross-attention(Q=z, K=z, V=x)
    x = _layer_norm(x, ln2_g_ref[...], ln2_b_ref[...])
    x = x + _mha(z, z, x,
                 c_wq_ref[...], c_bq_ref[...], c_wk_ref[...], c_bk_ref[...],
                 c_wv_ref[...], c_bv_ref[...], c_wo_ref[...], c_bo_ref[...],
                 cbias, num_heads)

    # FeedForward: x = LN(x); x = x + W2(relu(W1 x + b1)) + b2
    x = _layer_norm(x, f_g_ref[...], f_b_ref[...])
    h = jnp.maximum(
        jnp.dot(x, f_w1_ref[...], preferred_element_type=jnp.float32) + f_b1_ref[...],
        0.0)
    x = x + jnp.dot(h, f_w2_ref[...], preferred_element_type=jnp.float32) + f_b2_ref[...]

    out_ref[...] = x


# -------------------------------- wrapper ----------------------------------

def decoder_forward(x, z, mask, params, num_heads):
    B, T, E = x.shape
    H = num_heads
    Dh = E // H
    M = B * T
    f32 = jnp.float32

    (ln1_g, ln1_b, ln2_g, ln2_b,
     s_wq, s_bq, s_wk, s_bk, s_wv, s_bv, s_wo, s_bo,
     c_wq, c_bq, c_wk, c_bk, c_wv, c_bv, c_wo, c_bo,
     f_g, f_b, f_w1, f_b1, f_w2, f_b2) = params

    # Reference quirk: scores are divided by sqrt(K.size()[2]) == sqrt(seq_len).
    inv_scale = 1.0 / (float(T) ** 0.5)

    # Wrapper-side weight layout plumbing (no in-kernel reshapes/transposes).
    def heads_in(w):   # (E, E) -> (H, E, Dh); head h uses output cols [h*Dh, (h+1)*Dh)
        return w.reshape(E, H, Dh).transpose(1, 0, 2)

    def heads_bias(b):  # (1, E) -> (H, 1, Dh)
        return b.reshape(1, H, Dh).transpose(1, 0, 2)

    def heads_out(w):  # (E, E) -> (H, Dh, E); head h hits rows [h*Dh, (h+1)*Dh)
        return w.reshape(H, Dh, E)

    kparams = [
        ln1_g, ln1_b, ln2_g, ln2_b,
        heads_in(s_wq) * inv_scale, heads_bias(s_bq) * inv_scale,
        heads_in(s_wk), heads_bias(s_bk),
        heads_in(s_wv), heads_bias(s_bv),
        heads_out(s_wo), s_bo,
        heads_in(c_wq) * inv_scale, heads_bias(c_bq) * inv_scale,
        heads_in(c_wk), heads_bias(c_bk),
        heads_in(c_wv), heads_bias(c_bv),
        heads_out(c_wo), c_bo,
        f_g, f_b, f_w1, f_b1, f_w2, f_b2,
    ]

    # Additive score biases (computed once, outside the kernel):
    #  - block-diagonal term keeps batch-flattened rows from attending across
    #    batch elements,
    #  - the causal mask (mask > 0.5) is folded into the self-attention bias.
    NEG = jnp.float32(-1e30)
    ar = jnp.arange(M)
    same_batch = (ar[:, None] // T) == (ar[None, :] // T)
    masked = jnp.tile(mask > 0.5, (B, B))
    self_bias = jnp.where(same_batch & jnp.logical_not(masked), 0.0, NEG).astype(f32)
    cross_bias = jnp.where(same_batch, 0.0, NEG).astype(f32)

    x2 = x.reshape(M, E).astype(f32)
    z2 = z.reshape(M, E).astype(f32)

    n_inputs = 4 + len(kparams)
    out = pl.pallas_call(
        functools.partial(decoder_kernel, num_heads=H),
        out_shape=jax.ShapeDtypeStruct((M, E), f32),
        # No grid: single invocation, every operand is a full-array VMEM block.
        in_specs=[pl.BlockSpec(memory_space=pltpu.MemorySpace.VMEM)] * n_inputs,
        out_specs=pl.BlockSpec(memory_space=pltpu.MemorySpace.VMEM),
    )(x2, z2, self_bias, cross_bias, *kparams)

    return out.reshape(B, T, E)


# ---------------------------- pure-JAX reference ----------------------------

def ref_decoder(x, z, mask, p, num_heads):
    (ln1_g, ln1_b, ln2_g, ln2_b,
     s_wq, s_bq, s_wk, s_bk, s_wv, s_bv, s_wo, s_bo,
     c_wq, c_bq, c_wk, c_bk, c_wv, c_bv, c_wo, c_bo,
     f_g, f_b, f_w1, f_b1, f_w2, f_b2) = p

    def ln(x, g, b):
        mu = x.mean(-1, keepdims=True)
        var = ((x - mu) ** 2).mean(-1, keepdims=True)
        return (x - mu) / jnp.sqrt(var + 1e-5) * g + b

    def mha(xq, xk, xv, wq, bq, wk, bk, wv, bv, wo, bo, mask=None):
        B, T, E = xq.shape
        Dh = E // num_heads
        q = (xq @ wq + bq).reshape(B, T, num_heads, Dh).transpose(0, 2, 1, 3)
        k = (xk @ wk + bk).reshape(B, T, num_heads, Dh).transpose(0, 2, 1, 3)
        v = (xv @ wv + bv).reshape(B, T, num_heads, Dh).transpose(0, 2, 1, 3)
        s = jnp.einsum('bhtd,bhsd->bhts', q, k) / jnp.sqrt(jnp.float32(T))
        if mask is not None:
            s = s - jnp.where(mask == 1.0, jnp.inf, mask)
        pr = jax.nn.softmax(s, axis=-1)
        o = jnp.einsum('bhts,bhsd->bhtd', pr, v).transpose(0, 2, 1, 3).reshape(B, T, E)
        return o @ wo + bo

    x = ln(x, ln1_g, ln1_b)
    x = x + mha(x, x, x, s_wq, s_bq, s_wk, s_bk, s_wv, s_bv, s_wo, s_bo, mask)
    x = ln(x, ln2_g, ln2_b)
    x = x + mha(z, z, x, c_wq, c_bq, c_wk, c_bk, c_wv, c_bv, c_wo, c_bo, None)
    x = ln(x, f_g, f_b)
    h = jax.nn.relu(x @ f_w1 + f_b1)
    return x + h @ f_w2 + f_b2


# ---------------------------------- main -----------------------------------

if __name__ == "__main__":
    B, T, E, H, FACTOR = 2, 8, 32, 4, 4

    key = jax.random.PRNGKey(0)
    keys = list(jax.random.split(key, 40))
    ki = iter(keys)

    def normal(shape, scale=0.05):
        return scale * jax.random.normal(next(ki), shape, jnp.float32)

    x = jax.random.normal(next(ki), (B, T, E), jnp.float32)
    z = jax.random.normal(next(ki), (B, T, E), jnp.float32)
    mask = jnp.triu(jnp.ones((T, T), jnp.float32), k=1)  # 1.0 = masked

    def ln_params():
        return (1.0 + normal((1, E), 0.1), normal((1, E), 0.1))

    def mha_params():
        ps = []
        for _ in range(3):                       # q, k, v projections
            ps += [normal((E, E)), normal((1, E))]
        ps += [normal((E, E)), normal((1, E))]   # reprojection
        return ps

    ln1_g, ln1_b = ln_params()
    ln2_g, ln2_b = ln_params()
    mmha_p = mha_params()                        # masked self-attention
    cmha_p = mha_params()                        # cross-attention
    ff_g, ff_b = ln_params()
    ff_w1, ff_b1 = normal((E, FACTOR * E)), normal((1, FACTOR * E))
    ff_w2, ff_b2 = normal((FACTOR * E, E)), normal((1, E))

    params = [ln1_g, ln1_b, ln2_g, ln2_b] + mmha_p + cmha_p + \
             [ff_g, ff_b, ff_w1, ff_b1, ff_w2, ff_b2]

    out = decoder_forward(x, z, mask, params, H)
    out = jax.block_until_ready(out)

    ref = ref_decoder(x, z, mask, params, H)
    assert out.shape == (B, T, E)
    assert jnp.allclose(out, ref, rtol=1e-4, atol=1e-4), float(jnp.max(jnp.abs(out - ref)))

    print("KERNEL_OK")
</pallas_src>

<mosaic_0001>
module attributes {stable_mosaic.version = 11 : i64} {
  func.func @decoder_kernel(%arg0: memref<16x32xf32, #tpu.memory_space<vmem>>, %arg1: memref<16x32xf32, #tpu.memory_space<vmem>>, %arg2: memref<16x16xf32, #tpu.memory_space<vmem>>, %arg3: memref<16x16xf32, #tpu.memory_space<vmem>>, %arg4: memref<1x32xf32, #tpu.memory_space<vmem>>, %arg5: memref<1x32xf32, #tpu.memory_space<vmem>>, %arg6: memref<1x32xf32, #tpu.memory_space<vmem>>, %arg7: memref<1x32xf32, #tpu.memory_space<vmem>>, %arg8: memref<4x32x8xf32, #tpu.memory_space<vmem>>, %arg9: memref<4x1x8xf32, #tpu.memory_space<vmem>>, %arg10: memref<4x32x8xf32, #tpu.memory_space<vmem>>, %arg11: memref<4x1x8xf32, #tpu.memory_space<vmem>>, %arg12: memref<4x32x8xf32, #tpu.memory_space<vmem>>, %arg13: memref<4x1x8xf32, #tpu.memory_space<vmem>>, %arg14: memref<4x8x32xf32, #tpu.memory_space<vmem>>, %arg15: memref<1x32xf32, #tpu.memory_space<vmem>>, %arg16: memref<4x32x8xf32, #tpu.memory_space<vmem>>, %arg17: memref<4x1x8xf32, #tpu.memory_space<vmem>>, %arg18: memref<4x32x8xf32, #tpu.memory_space<vmem>>, %arg19: memref<4x1x8xf32, #tpu.memory_space<vmem>>, %arg20: memref<4x32x8xf32, #tpu.memory_space<vmem>>, %arg21: memref<4x1x8xf32, #tpu.memory_space<vmem>>, %arg22: memref<4x8x32xf32, #tpu.memory_space<vmem>>, %arg23: memref<1x32xf32, #tpu.memory_space<vmem>>, %arg24: memref<1x32xf32, #tpu.memory_space<vmem>>, %arg25: memref<1x32xf32, #tpu.memory_space<vmem>>, %arg26: memref<32x128xf32, #tpu.memory_space<vmem>>, %arg27: memref<1x128xf32, #tpu.memory_space<vmem>>, %arg28: memref<128x32xf32, #tpu.memory_space<vmem>>, %arg29: memref<1x32xf32, #tpu.memory_space<vmem>>, %arg30: memref<16x32xf32, #tpu.memory_space<vmem>>) attributes {dimension_semantics = [], scalar_prefetch = 0 : i64, scratch_operands = 0 : i64, tpu.core_type = #tpu.core_type<tc>} {
    %c0 = arith.constant 0 : index
    %c0_0 = arith.constant 0 : index
    %0 = vector.load %arg0[%c0, %c0_0] : memref<16x32xf32, #tpu.memory_space<vmem>>, vector<16x32xf32>
    %c0_1 = arith.constant 0 : index
    %c0_2 = arith.constant 0 : index
    %1 = vector.load %arg1[%c0_1, %c0_2] : memref<16x32xf32, #tpu.memory_space<vmem>>, vector<16x32xf32>
    %c0_3 = arith.constant 0 : index
    %c0_4 = arith.constant 0 : index
    %2 = vector.load %arg2[%c0_3, %c0_4] : memref<16x16xf32, #tpu.memory_space<vmem>>, vector<16x16xf32>
    %c0_5 = arith.constant 0 : index
    %c0_6 = arith.constant 0 : index
    %3 = vector.load %arg3[%c0_5, %c0_6] : memref<16x16xf32, #tpu.memory_space<vmem>>, vector<16x16xf32>
    %c0_7 = arith.constant 0 : index
    %c0_8 = arith.constant 0 : index
    %4 = vector.load %arg4[%c0_7, %c0_8] : memref<1x32xf32, #tpu.memory_space<vmem>>, vector<1x32xf32>
    %c0_9 = arith.constant 0 : index
    %c0_10 = arith.constant 0 : index
    %5 = vector.load %arg5[%c0_9, %c0_10] : memref<1x32xf32, #tpu.memory_space<vmem>>, vector<1x32xf32>
    %cst = arith.constant dense<0.000000e+00> : vector<16xf32>
    %6 = vector.multi_reduction <add>, %0, %cst [1] : vector<16x32xf32> to vector<16xf32>
    %7 = vector.shape_cast %6 : vector<16xf32> to vector<16x1xf32>
    %cst_11 = arith.constant 3.200000e+01 : f32
    %8 = vector.broadcast %cst_11 : f32 to vector<16x1xf32>
    %9 = arith.divf %7, %8 : vector<16x1xf32>
    %10 = vector.broadcast %9 : vector<16x1xf32> to vector<16x32xf32>
    %11 = arith.subf %0, %10 : vector<16x32xf32>
    %12 = arith.mulf %11, %11 : vector<16x32xf32>
    %cst_12 = arith.constant dense<0.000000e+00> : vector<16xf32>
    %13 = vector.multi_reduction <add>, %12, %cst_12 [1] : vector<16x32xf32> to vector<16xf32>
    %14 = vector.shape_cast %13 : vector<16xf32> to vector<16x1xf32>
    %cst_13 = arith.constant 3.200000e+01 : f32
    %15 = vector.broadcast %cst_13 : f32 to vector<16x1xf32>
    %16 = arith.divf %14, %15 : vector<16x1xf32>
    %cst_14 = arith.constant 9.99999974E-6 : f32
    %17 = vector.broadcast %cst_14 : f32 to vector<16x1xf32>
    %18 = arith.addf %16, %17 : vector<16x1xf32>
    %19 = math.rsqrt %18 : vector<16x1xf32>
    %20 = vector.broadcast %19 : vector<16x1xf32> to vector<16x32xf32>
    %21 = arith.mulf %11, %20 : vector<16x32xf32>
    %22 = vector.broadcast %4 : vector<1x32xf32> to vector<16x32xf32>
    %23 = arith.mulf %21, %22 : vector<16x32xf32>
    %24 = vector.broadcast %5 : vector<1x32xf32> to vector<16x32xf32>
    %25 = arith.addf %23, %24 : vector<16x32xf32>
    %c0_15 = arith.constant 0 : index
    %c0_16 = arith.constant 0 : index
    %c0_17 = arith.constant 0 : index
    %26 = vector.load %arg8[%c0_15, %c0_16, %c0_17] : memref<4x32x8xf32, #tpu.memory_space<vmem>>, vector<4x32x8xf32>
    %c0_18 = arith.constant 0 : index
    %c0_19 = arith.constant 0 : index
    %c0_20 = arith.constant 0 : index
    %27 = vector.load %arg9[%c0_18, %c0_19, %c0_20] : memref<4x1x8xf32, #tpu.memory_space<vmem>>, vector<4x1x8xf32>
    %c0_21 = arith.constant 0 : index
    %c0_22 = arith.constant 0 : index
    %c0_23 = arith.constant 0 : index
    %28 = vector.load %arg10[%c0_21, %c0_22, %c0_23] : memref<4x32x8xf32, #tpu.memory_space<vmem>>, vector<4x32x8xf32>
    %c0_24 = arith.constant 0 : index
    %c0_25 = arith.constant 0 : index
    %c0_26 = arith.constant 0 : index
    %29 = vector.load %arg11[%c0_24, %c0_25, %c0_26] : memref<4x1x8xf32, #tpu.memory_space<vmem>>, vector<4x1x8xf32>
    %c0_27 = arith.constant 0 : index
    %c0_28 = arith.constant 0 : index
    %c0_29 = arith.constant 0 : index
    %30 = vector.load %arg12[%c0_27, %c0_28, %c0_29] : memref<4x32x8xf32, #tpu.memory_space<vmem>>, vector<4x32x8xf32>
    %c0_30 = arith.constant 0 : index
    %c0_31 = arith.constant 0 : index
    %c0_32 = arith.constant 0 : index
    %31 = vector.load %arg13[%c0_30, %c0_31, %c0_32] : memref<4x1x8xf32, #tpu.memory_space<vmem>>, vector<4x1x8xf32>
    %c0_33 = arith.constant 0 : index
    %c0_34 = arith.constant 0 : index
    %c0_35 = arith.constant 0 : index
    %32 = vector.load %arg14[%c0_33, %c0_34, %c0_35] : memref<4x8x32xf32, #tpu.memory_space<vmem>>, vector<4x8x32xf32>
    %c0_36 = arith.constant 0 : index
    %c0_37 = arith.constant 0 : index
    %33 = vector.load %arg15[%c0_36, %c0_37] : memref<1x32xf32, #tpu.memory_space<vmem>>, vector<1x32xf32>
    %34 = vector.extract_strided_slice %26 {offsets = [0, 0, 0], sizes = [1, 32, 8], strides = [1, 1, 1]} : vector<4x32x8xf32> to vector<1x32x8xf32>
    %35 = vector.shape_cast %34 : vector<1x32x8xf32> to vector<32x8xf32>
    %cst_38 = arith.constant dense<0.000000e+00> : vector<16x8xf32>
    %36 = tpu.matmul %25, %35, %cst_38 {dimension_numbers = #tpu.dot_dimension_numbers<[1], [0], [0], [1], [0, 0, 1, 1], [], []>} : vector<16x32xf32>, vector<32x8xf32>, vector<16x8xf32> -> vector<16x8xf32>
    %37 = vector.extract_strided_slice %27 {offsets = [0, 0, 0], sizes = [1, 1, 8], strides = [1, 1, 1]} : vector<4x1x8xf32> to vector<1x1x8xf32>
    %38 = vector.shape_cast %37 : vector<1x1x8xf32> to vector<1x8xf32>
    %39 = vector.broadcast %38 : vector<1x8xf32> to vector<16x8xf32>
    %40 = arith.addf %36, %39 : vector<16x8xf32>
    %41 = vector.extract_strided_slice %26 {offsets = [1, 0, 0], sizes = [1, 32, 8], strides = [1, 1, 1]} : vector<4x32x8xf32> to vector<1x32x8xf32>
    %42 = vector.shape_cast %41 : vector<1x32x8xf32> to vector<32x8xf32>
    %cst_39 = arith.constant dense<0.000000e+00> : vector<16x8xf32>
    %43 = tpu.matmul %25, %42, %cst_39 {dimension_numbers = #tpu.dot_dimension_numbers<[1], [0], [0], [1], [0, 0, 1, 1], [], []>} : vector<16x32xf32>, vector<32x8xf32>, vector<16x8xf32> -> vector<16x8xf32>
    %44 = vector.extract_strided_slice %27 {offsets = [1, 0, 0], sizes = [1, 1, 8], strides = [1, 1, 1]} : vector<4x1x8xf32> to vector<1x1x8xf32>
    %45 = vector.shape_cast %44 : vector<1x1x8xf32> to vector<1x8xf32>
    %46 = vector.broadcast %45 : vector<1x8xf32> to vector<16x8xf32>
    %47 = arith.addf %43, %46 : vector<16x8xf32>
    %48 = vector.extract_strided_slice %26 {offsets = [2, 0, 0], sizes = [1, 32, 8], strides = [1, 1, 1]} : vector<4x32x8xf32> to vector<1x32x8xf32>
    %49 = vector.shape_cast %48 : vector<1x32x8xf32> to vector<32x8xf32>
    %cst_40 = arith.constant dense<0.000000e+00> : vector<16x8xf32>
    %50 = tpu.matmul %25, %49, %cst_40 {dimension_numbers = #tpu.dot_dimension_numbers<[1], [0], [0], [1], [0, 0, 1, 1], [], []>} : vector<16x32xf32>, vector<32x8xf32>, vector<16x8xf32> -> vector<16x8xf32>
    %51 = vector.extract_strided_slice %27 {offsets = [2, 0, 0], sizes = [1, 1, 8], strides = [1, 1, 1]} : vector<4x1x8xf32> to vector<1x1x8xf32>
    %52 = vector.shape_cast %51 : vector<1x1x8xf32> to vector<1x8xf32>
    %53 = vector.broadcast %52 : vector<1x8xf32> to vector<16x8xf32>
    %54 = arith.addf %50, %53 : vector<16x8xf32>
    %55 = vector.extract_strided_slice %26 {offsets = [3, 0, 0], sizes = [1, 32, 8], strides = [1, 1, 1]} : vector<4x32x8xf32> to vector<1x32x8xf32>
    %56 = vector.shape_cast %55 : vector<1x32x8xf32> to vector<32x8xf32>
    %cst_41 = arith.constant dense<0.000000e+00> : vector<16x8xf32>
    %57 = tpu.matmul %25, %56, %cst_41 {dimension_numbers = #tpu.dot_dimension_numbers<[1], [0], [0], [1], [0, 0, 1, 1], [], []>} : vector<16x32xf32>, vector<32x8xf32>, vector<16x8xf32> -> vector<16x8xf32>
    %58 = vector.extract_strided_slice %27 {offsets = [3, 0, 0], sizes = [1, 1, 8], strides = [1, 1, 1]} : vector<4x1x8xf32> to vector<1x1x8xf32>
    %59 = vector.shape_cast %58 : vector<1x1x8xf32> to vector<1x8xf32>
    %60 = vector.broadcast %59 : vector<1x8xf32> to vector<16x8xf32>
    %61 = arith.addf %57, %60 : vector<16x8xf32>
    %62 = vector.shape_cast %40 : vector<16x8xf32> to vector<1x16x8xf32>
    %63 = vector.shape_cast %47 : vector<16x8xf32> to vector<1x16x8xf32>
    %64 = vector.shape_cast %54 : vector<16x8xf32> to vector<1x16x8xf32>
    %65 = vector.shape_cast %61 : vector<16x8xf32> to vector<1x16x8xf32>
    %66 = tpu.concatenate %62, %63, %64, %65 in 0 : vector<1x16x8xf32>, vector<1x16x8xf32>, vector<1x16x8xf32>, vector<1x16x8xf32> -> vector<4x16x8xf32>
    %67 = vector.extract_strided_slice %28 {offsets = [0, 0, 0], sizes = [1, 32, 8], strides = [1, 1, 1]} : vector<4x32x8xf32> to vector<1x32x8xf32>
    %68 = vector.shape_cast %67 : vector<1x32x8xf32> to vector<32x8xf32>
    %cst_42 = arith.constant dense<0.000000e+00> : vector<16x8xf32>
    %69 = tpu.matmul %25, %68, %cst_42 {dimension_numbers = #tpu.dot_dimension_numbers<[1], [0], [0], [1], [0, 0, 1, 1], [], []>} : vector<16x32xf32>, vector<32x8xf32>, vector<16x8xf32> -> vector<16x8xf32>
    %70 = vector.extract_strided_slice %29 {offsets = [0, 0, 0], sizes = [1, 1, 8], strides = [1, 1, 1]} : vector<4x1x8xf32> to vector<1x1x8xf32>
    %71 = vector.shape_cast %70 : vector<1x1x8xf32> to vector<1x8xf32>
    %72 = vector.broadcast %71 : vector<1x8xf32> to vector<16x8xf32>
    %73 = arith.addf %69, %72 : vector<16x8xf32>
    %74 = vector.extract_strided_slice %28 {offsets = [1, 0, 0], sizes = [1, 32, 8], strides = [1, 1, 1]} : vector<4x32x8xf32> to vector<1x32x8xf32>
    %75 = vector.shape_cast %74 : vector<1x32x8xf32> to vector<32x8xf32>
    %cst_43 = arith.constant dense<0.000000e+00> : vector<16x8xf32>
    %76 = tpu.matmul %25, %75, %cst_43 {dimension_numbers = #tpu.dot_dimension_numbers<[1], [0], [0], [1], [0, 0, 1, 1], [], []>} : vector<16x32xf32>, vector<32x8xf32>, vector<16x8xf32> -> vector<16x8xf32>
    %77 = vector.extract_strided_slice %29 {offsets = [1, 0, 0], sizes = [1, 1, 8], strides = [1, 1, 1]} : vector<4x1x8xf32> to vector<1x1x8xf32>
    %78 = vector.shape_cast %77 : vector<1x1x8xf32> to vector<1x8xf32>
    %79 = vector.broadcast %78 : vector<1x8xf32> to vector<16x8xf32>
    %80 = arith.addf %76, %79 : vector<16x8xf32>
    %81 = vector.extract_strided_slice %28 {offsets = [2, 0, 0], sizes = [1, 32, 8], strides = [1, 1, 1]} : vector<4x32x8xf32> to vector<1x32x8xf32>
    %82 = vector.shape_cast %81 : vector<1x32x8xf32> to vector<32x8xf32>
    %cst_44 = arith.constant dense<0.000000e+00> : vector<16x8xf32>
    %83 = tpu.matmul %25, %82, %cst_44 {dimension_numbers = #tpu.dot_dimension_numbers<[1], [0], [0], [1], [0, 0, 1, 1], [], []>} : vector<16x32xf32>, vector<32x8xf32>, vector<16x8xf32> -> vector<16x8xf32>
    %84 = vector.extract_strided_slice %29 {offsets = [2, 0, 0], sizes = [1, 1, 8], strides = [1, 1, 1]} : vector<4x1x8xf32> to vector<1x1x8xf32>
    %85 = vector.shape_cast %84 : vector<1x1x8xf32> to vector<1x8xf32>
    %86 = vector.broadcast %85 : vector<1x8xf32> to vector<16x8xf32>
    %87 = arith.addf %83, %86 : vector<16x8xf32>
    %88 = vector.extract_strided_slice %28 {offsets = [3, 0, 0], sizes = [1, 32, 8], strides = [1, 1, 1]} : vector<4x32x8xf32> to vector<1x32x8xf32>
    %89 = vector.shape_cast %88 : vector<1x32x8xf32> to vector<32x8xf32>
    %cst_45 = arith.constant dense<0.000000e+00> : vector<16x8xf32>
    %90 = tpu.matmul %25, %89, %cst_45 {dimension_numbers = #tpu.dot_dimension_numbers<[1], [0], [0], [1], [0, 0, 1, 1], [], []>} : vector<16x32xf32>, vector<32x8xf32>, vector<16x8xf32> -> vector<16x8xf32>
    %91 = vector.extract_strided_slice %29 {offsets = [3, 0, 0], sizes = [1, 1, 8], strides = [1, 1, 1]} : vector<4x1x8xf32> to vector<1x1x8xf32>
    %92 = vector.shape_cast %91 : vector<1x1x8xf32> to vector<1x8xf32>
    %93 = vector.broadcast %92 : vector<1x8xf32> to vector<16x8xf32>
    %94 = arith.addf %90, %93 : vector<16x8xf32>
    %95 = vector.shape_cast %73 : vector<16x8xf32> to vector<1x16x8xf32>
    %96 = vector.shape_cast %80 : vector<16x8xf32> to vector<1x16x8xf32>
    %97 = vector.shape_cast %87 : vector<16x8xf32> to vector<1x16x8xf32>
    %98 = vector.shape_cast %94 : vector<16x8xf32> to vector<1x16x8xf32>
    %99 = tpu.concatenate %95, %96, %97, %98 in 0 : vector<1x16x8xf32>, vector<1x16x8xf32>, vector<1x16x8xf32>, vector<1x16x8xf32> -> vector<4x16x8xf32>
    %100 = vector.extract_strided_slice %30 {offsets = [0, 0, 0], sizes = [1, 32, 8], strides = [1, 1, 1]} : vector<4x32x8xf32> to vector<1x32x8xf32>
    %101 = vector.shape_cast %100 : vector<1x32x8xf32> to vector<32x8xf32>
    %cst_46 = arith.constant dense<0.000000e+00> : vector<16x8xf32>
    %102 = tpu.matmul %25, %101, %cst_46 {dimension_numbers = #tpu.dot_dimension_numbers<[1], [0], [0], [1], [0, 0, 1, 1], [], []>} : vector<16x32xf32>, vector<32x8xf32>, vector<16x8xf32> -> vector<16x8xf32>
    %103 = vector.extract_strided_slice %31 {offsets = [0, 0, 0], sizes = [1, 1, 8], strides = [1, 1, 1]} : vector<4x1x8xf32> to vector<1x1x8xf32>
    %104 = vector.shape_cast %103 : vector<1x1x8xf32> to vector<1x8xf32>
    %105 = vector.broadcast %104 : vector<1x8xf32> to vector<16x8xf32>
    %106 = arith.addf %102, %105 : vector<16x8xf32>
    %107 = vector.extract_strided_slice %30 {offsets = [1, 0, 0], sizes = [1, 32, 8], strides = [1, 1, 1]} : vector<4x32x8xf32> to vector<1x32x8xf32>
    %108 = vector.shape_cast %107 : vector<1x32x8xf32> to vector<32x8xf32>
    %cst_47 = arith.constant dense<0.000000e+00> : vector<16x8xf32>
    %109 = tpu.matmul %25, %108, %cst_47 {dimension_numbers = #tpu.dot_dimension_numbers<[1], [0], [0], [1], [0, 0, 1, 1], [], []>} : vector<16x32xf32>, vector<32x8xf32>, vector<16x8xf32> -> vector<16x8xf32>
    %110 = vector.extract_strided_slice %31 {offsets = [1, 0, 0], sizes = [1, 1, 8], strides = [1, 1, 1]} : vector<4x1x8xf32> to vector<1x1x8xf32>
    %111 = vector.shape_cast %110 : vector<1x1x8xf32> to vector<1x8xf32>
    %112 = vector.broadcast %111 : vector<1x8xf32> to vector<16x8xf32>
    %113 = arith.addf %109, %112 : vector<16x8xf32>
    %114 = vector.extract_strided_slice %30 {offsets = [2, 0, 0], sizes = [1, 32, 8], strides = [1, 1, 1]} : vector<4x32x8xf32> to vector<1x32x8xf32>
    %115 = vector.shape_cast %114 : vector<1x32x8xf32> to vector<32x8xf32>
    %cst_48 = arith.constant dense<0.000000e+00> : vector<16x8xf32>
    %116 = tpu.matmul %25, %115, %cst_48 {dimension_numbers = #tpu.dot_dimension_numbers<[1], [0], [0], [1], [0, 0, 1, 1], [], []>} : vector<16x32xf32>, vector<32x8xf32>, vector<16x8xf32> -> vector<16x8xf32>
    %117 = vector.extract_strided_slice %31 {offsets = [2, 0, 0], sizes = [1, 1, 8], strides = [1, 1, 1]} : vector<4x1x8xf32> to vector<1x1x8xf32>
    %118 = vector.shape_cast %117 : vector<1x1x8xf32> to vector<1x8xf32>
    %119 = vector.broadcast %118 : vector<1x8xf32> to vector<16x8xf32>
    %120 = arith.addf %116, %119 : vector<16x8xf32>
    %121 = vector.extract_strided_slice %30 {offsets = [3, 0, 0], sizes = [1, 32, 8], strides = [1, 1, 1]} : vector<4x32x8xf32> to vector<1x32x8xf32>
    %122 = vector.shape_cast %121 : vector<1x32x8xf32> to vector<32x8xf32>
    %cst_49 = arith.constant dense<0.000000e+00> : vector<16x8xf32>
    %123 = tpu.matmul %25, %122, %cst_49 {dimension_numbers = #tpu.dot_dimension_numbers<[1], [0], [0], [1], [0, 0, 1, 1], [], []>} : vector<16x32xf32>, vector<32x8xf32>, vector<16x8xf32> -> vector<16x8xf32>
    %124 = vector.extract_strided_slice %31 {offsets = [3, 0, 0], sizes = [1, 1, 8], strides = [1, 1, 1]} : vector<4x1x8xf32> to vector<1x1x8xf32>
    %125 = vector.shape_cast %124 : vector<1x1x8xf32> to vector<1x8xf32>
    %126 = vector.broadcast %125 : vector<1x8xf32> to vector<16x8xf32>
    %127 = arith.addf %123, %126 : vector<16x8xf32>
    %128 = vector.shape_cast %106 : vector<16x8xf32> to vector<1x16x8xf32>
    %129 = vector.shape_cast %113 : vector<16x8xf32> to vector<1x16x8xf32>
    %130 = vector.shape_cast %120 : vector<16x8xf32> to vector<1x16x8xf32>
    %131 = vector.shape_cast %127 : vector<16x8xf32> to vector<1x16x8xf32>
    %132 = tpu.concatenate %128, %129, %130, %131 in 0 : vector<1x16x8xf32>, vector<1x16x8xf32>, vector<1x16x8xf32>, vector<1x16x8xf32> -> vector<4x16x8xf32>
    "tpu.trace_start"() <{level = 10 : i32, message = "hqd,hkd->hqk"}> : () -> ()
    %cst_50 = arith.constant dense<0.000000e+00> : vector<4x16x16xf32>
    %133 = tpu.matmul %66, %99, %cst_50 {dimension_numbers = #tpu.dot_dimension_numbers<[2], [2], [1], [1], [0, 0, 0, 1, 1, 1], [0], [0]>} : vector<4x16x8xf32>, vector<4x16x8xf32>, vector<4x16x16xf32> -> vector<4x16x16xf32>
    "tpu.trace_stop"() : () -> ()
    %134 = vector.shape_cast %2 : vector<16x16xf32> to vector<1x16x16xf32>
    %135 = vector.broadcast %134 : vector<1x16x16xf32> to vector<4x16x16xf32>
    %136 = arith.addf %133, %135 : vector<4x16x16xf32>
    %cst_51 = arith.constant dense<0xFF800000> : vector<4x16xf32>
    %137 = vector.multi_reduction <maximumf>, %136, %cst_51 [2] : vector<4x16x16xf32> to vector<4x16xf32>
    %138 = vector.shape_cast %137 : vector<4x16xf32> to vector<4x16x1xf32>
    %139 = vector.broadcast %138 : vector<4x16x1xf32> to vector<4x16x16xf32>
    %140 = arith.subf %136, %139 : vector<4x16x16xf32>
    %141 = math.exp %140 : vector<4x16x16xf32>
    %cst_52 = arith.constant dense<0.000000e+00> : vector<4x16xf32>
    %142 = vector.multi_reduction <add>, %141, %cst_52 [2] : vector<4x16x16xf32> to vector<4x16xf32>
    %143 = vector.shape_cast %142 : vector<4x16xf32> to vector<4x16x1xf32>
    %144 = tpu.reciprocal %143 : vector<4x16x1xf32> -> vector<4x16x1xf32>
    %145 = vector.broadcast %144 : vector<4x16x1xf32> to vector<4x16x16xf32>
    %146 = arith.mulf %141, %145 : vector<4x16x16xf32>
    "tpu.trace_start"() <{level = 10 : i32, message = "hqk,hkd->hqd"}> : () -> ()
    %cst_53 = arith.constant dense<0.000000e+00> : vector<4x16x8xf32>
    %147 = tpu.matmul %146, %132, %cst_53 {dimension_numbers = #tpu.dot_dimension_numbers<[2], [1], [1], [2], [0, 0, 0, 1, 1, 2], [0], [0]>} : vector<4x16x16xf32>, vector<4x16x8xf32>, vector<4x16x8xf32> -> vector<4x16x8xf32>
    "tpu.trace_stop"() : () -> ()
    "tpu.trace_start"() <{level = 10 : i32, message = "hqd,hde->hqe"}> : () -> ()
    %cst_54 = arith.constant dense<0.000000e+00> : vector<4x16x32xf32>
    %148 = tpu.matmul %147, %32, %cst_54 {dimension_numbers = #tpu.dot_dimension_numbers<[2], [1], [1], [2], [0, 0, 0, 1, 1, 2], [0], [0]>} : vector<4x16x8xf32>, vector<4x8x32xf32>, vector<4x16x32xf32> -> vector<4x16x32xf32>
    "tpu.trace_stop"() : () -> ()
    %cst_55 = arith.constant dense<0.000000e+00> : vector<16x32xf32>
    %149 = vector.multi_reduction <add>, %148, %cst_55 [0] : vector<4x16x32xf32> to vector<16x32xf32>
    %150 = vector.broadcast %33 : vector<1x32xf32> to vector<16x32xf32>
    %151 = arith.addf %149, %150 : vector<16x32xf32>
    %152 = arith.addf %25, %151 : vector<16x32xf32>
    %c0_56 = arith.constant 0 : index
    %c0_57 = arith.constant 0 : index
    %153 = vector.load %arg6[%c0_56, %c0_57] : memref<1x32xf32, #tpu.memory_space<vmem>>, vector<1x32xf32>
    %c0_58 = arith.constant 0 : index
    %c0_59 = arith.constant 0 : index
    %154 = vector.load %arg7[%c0_58, %c0_59] : memref<1x32xf32, #tpu.memory_space<vmem>>, vector<1x32xf32>
    %cst_60 = arith.constant dense<0.000000e+00> : vector<16xf32>
    %155 = vector.multi_reduction <add>, %152, %cst_60 [1] : vector<16x32xf32> to vector<16xf32>
    %156 = vector.shape_cast %155 : vector<16xf32> to vector<16x1xf32>
    %cst_61 = arith.constant 3.200000e+01 : f32
    %157 = vector.broadcast %cst_61 : f32 to vector<16x1xf32>
    %158 = arith.divf %156, %157 : vector<16x1xf32>
    %159 = vector.broadcast %158 : vector<16x1xf32> to vector<16x32xf32>
    %160 = arith.subf %152, %159 : vector<16x32xf32>
    %161 = arith.mulf %160, %160 : vector<16x32xf32>
    %cst_62 = arith.constant dense<0.000000e+00> : vector<16xf32>
    %162 = vector.multi_reduction <add>, %161, %cst_62 [1] : vector<16x32xf32> to vector<16xf32>
    %163 = vector.shape_cast %162 : vector<16xf32> to vector<16x1xf32>
    %cst_63 = arith.constant 3.200000e+01 : f32
    %164 = vector.broadcast %cst_63 : f32 to vector<16x1xf32>
    %165 = arith.divf %163, %164 : vector<16x1xf32>
    %cst_64 = arith.constant 9.99999974E-6 : f32
    %166 = vector.broadcast %cst_64 : f32 to vector<16x1xf32>
    %167 = arith.addf %165, %166 : vector<16x1xf32>
    %168 = math.rsqrt %167 : vector<16x1xf32>
    %169 = vector.broadcast %168 : vector<16x1xf32> to vector<16x32xf32>
    %170 = arith.mulf %160, %169 : vector<16x32xf32>
    %171 = vector.broadcast %153 : vector<1x32xf32> to vector<16x32xf32>
    %172 = arith.mulf %170, %171 : vector<16x32xf32>
    %173 = vector.broadcast %154 : vector<1x32xf32> to vector<16x32xf32>
    %174 = arith.addf %172, %173 : vector<16x32xf32>
    %c0_65 = arith.constant 0 : index
    %c0_66 = arith.constant 0 : index
    %c0_67 = arith.constant 0 : index
    %175 = vector.load %arg16[%c0_65, %c0_66, %c0_67] : memref<4x32x8xf32, #tpu.memory_space<vmem>>, vector<4x32x8xf32>
    %c0_68 = arith.constant 0 : index
    %c0_69 = arith.constant 0 : index
    %c0_70 = arith.constant 0 : index
    %176 = vector.load %arg17[%c0_68, %c0_69, %c0_70] : memref<4x1x8xf32, #tpu.memory_space<vmem>>, vector<4x1x8xf32>
    %c0_71 = arith.constant 0 : index
    %c0_72 = arith.constant 0 : index
    %c0_73 = arith.constant 0 : index
    %177 = vector.load %arg18[%c0_71, %c0_72, %c0_73] : memref<4x32x8xf32, #tpu.memory_space<vmem>>, vector<4x32x8xf32>
    %c0_74 = arith.constant 0 : index
    %c0_75 = arith.constant 0 : index
    %c0_76 = arith.constant 0 : index
    %178 = vector.load %arg19[%c0_74, %c0_75, %c0_76] : memref<4x1x8xf32, #tpu.memory_space<vmem>>, vector<4x1x8xf32>
    %c0_77 = arith.constant 0 : index
    %c0_78 = arith.constant 0 : index
    %c0_79 = arith.constant 0 : index
    %179 = vector.load %arg20[%c0_77, %c0_78, %c0_79] : memref<4x32x8xf32, #tpu.memory_space<vmem>>, vector<4x32x8xf32>
    %c0_80 = arith.constant 0 : index
    %c0_81 = arith.constant 0 : index
    %c0_82 = arith.constant 0 : index
    %180 = vector.load %arg21[%c0_80, %c0_81, %c0_82] : memref<4x1x8xf32, #tpu.memory_space<vmem>>, vector<4x1x8xf32>
    %c0_83 = arith.constant 0 : index
    %c0_84 = arith.constant 0 : index
    %c0_85 = arith.constant 0 : index
    %181 = vector.load %arg22[%c0_83, %c0_84, %c0_85] : memref<4x8x32xf32, #tpu.memory_space<vmem>>, vector<4x8x32xf32>
    %c0_86 = arith.constant 0 : index
    %c0_87 = arith.constant 0 : index
    %182 = vector.load %arg23[%c0_86, %c0_87] : memref<1x32xf32, #tpu.memory_space<vmem>>, vector<1x32xf32>
    %183 = vector.extract_strided_slice %175 {offsets = [0, 0, 0], sizes = [1, 32, 8], strides = [1, 1, 1]} : vector<4x32x8xf32> to vector<1x32x8xf32>
    %184 = vector.shape_cast %183 : vector<1x32x8xf32> to vector<32x8xf32>
    %cst_88 = arith.constant dense<0.000000e+00> : vector<16x8xf32>
    %185 = tpu.matmul %1, %184, %cst_88 {dimension_numbers = #tpu.dot_dimension_numbers<[1], [0], [0], [1], [0, 0, 1, 1], [], []>} : vector<16x32xf32>, vector<32x8xf32>, vector<16x8xf32> -> vector<16x8xf32>
    %186 = vector.extract_strided_slice %176 {offsets = [0, 0, 0], sizes = [1, 1, 8], strides = [1, 1, 1]} : vector<4x1x8xf32> to vector<1x1x8xf32>
    %187 = vector.shape_cast %186 : vector<1x1x8xf32> to vector<1x8xf32>
    %188 = vector.broadcast %187 : vector<1x8xf32> to vector<16x8xf32>
    %189 = arith.addf %185, %188 : vector<16x8xf32>
    %190 = vector.extract_strided_slice %175 {offsets = [1, 0, 0], sizes = [1, 32, 8], strides = [1, 1, 1]} : vector<4x32x8xf32> to vector<1x32x8xf32>
    %191 = vector.shape_cast %190 : vector<1x32x8xf32> to vector<32x8xf32>
    %cst_89 = arith.constant dense<0.000000e+00> : vector<16x8xf32>
    %192 = tpu.matmul %1, %191, %cst_89 {dimension_numbers = #tpu.dot_dimension_numbers<[1], [0], [0], [1], [0, 0, 1, 1], [], []>} : vector<16x32xf32>, vector<32x8xf32>, vector<16x8xf32> -> vector<16x8xf32>
    %193 = vector.extract_strided_slice %176 {offsets = [1, 0, 0], sizes = [1, 1, 8], strides = [1, 1, 1]} : vector<4x1x8xf32> to vector<1x1x8xf32>
    %194 = vector.shape_cast %193 : vector<1x1x8xf32> to vector<1x8xf32>
    %195 = vector.broadcast %194 : vector<1x8xf32> to vector<16x8xf32>
    %196 = arith.addf %192, %195 : vector<16x8xf32>
    %197 = vector.extract_strided_slice %175 {offsets = [2, 0, 0], sizes = [1, 32, 8], strides = [1, 1, 1]} : vector<4x32x8xf32> to vector<1x32x8xf32>
    %198 = vector.shape_cast %197 : vector<1x32x8xf32> to vector<32x8xf32>
    %cst_90 = arith.constant dense<0.000000e+00> : vector<16x8xf32>
    %199 = tpu.matmul %1, %198, %cst_90 {dimension_numbers = #tpu.dot_dimension_numbers<[1], [0], [0], [1], [0, 0, 1, 1], [], []>} : vector<16x32xf32>, vector<32x8xf32>, vector<16x8xf32> -> vector<16x8xf32>
    %200 = vector.extract_strided_slice %176 {offsets = [2, 0, 0], sizes = [1, 1, 8], strides = [1, 1, 1]} : vector<4x1x8xf32> to vector<1x1x8xf32>
    %201 = vector.shape_cast %200 : vector<1x1x8xf32> to vector<1x8xf32>
    %202 = vector.broadcast %201 : vector<1x8xf32> to vector<16x8xf32>
    %203 = arith.addf %199, %202 : vector<16x8xf32>
    %204 = vector.extract_strided_slice %175 {offsets = [3, 0, 0], sizes = [1, 32, 8], strides = [1, 1, 1]} : vector<4x32x8xf32> to vector<1x32x8xf32>
    %205 = vector.shape_cast %204 : vector<1x32x8xf32> to vector<32x8xf32>
    %cst_91 = arith.constant dense<0.000000e+00> : vector<16x8xf32>
    %206 = tpu.matmul %1, %205, %cst_91 {dimension_numbers = #tpu.dot_dimension_numbers<[1], [0], [0], [1], [0, 0, 1, 1], [], []>} : vector<16x32xf32>, vector<32x8xf32>, vector<16x8xf32> -> vector<16x8xf32>
    %207 = vector.extract_strided_slice %176 {offsets = [3, 0, 0], sizes = [1, 1, 8], strides = [1, 1, 1]} : vector<4x1x8xf32> to vector<1x1x8xf32>
    %208 = vector.shape_cast %207 : vector<1x1x8xf32> to vector<1x8xf32>
    %209 = vector.broadcast %208 : vector<1x8xf32> to vector<16x8xf32>
    %210 = arith.addf %206, %209 : vector<16x8xf32>
    %211 = vector.shape_cast %189 : vector<16x8xf32> to vector<1x16x8xf32>
    %212 = vector.shape_cast %196 : vector<16x8xf32> to vector<1x16x8xf32>
    %213 = vector.shape_cast %203 : vector<16x8xf32> to vector<1x16x8xf32>
    %214 = vector.shape_cast %210 : vector<16x8xf32> to vector<1x16x8xf32>
    %215 = tpu.concatenate %211, %212, %213, %214 in 0 : vector<1x16x8xf32>, vector<1x16x8xf32>, vector<1x16x8xf32>, vector<1x16x8xf32> -> vector<4x16x8xf32>
    %216 = vector.extract_strided_slice %177 {offsets = [0, 0, 0], sizes = [1, 32, 8], strides = [1, 1, 1]} : vector<4x32x8xf32> to vector<1x32x8xf32>
    %217 = vector.shape_cast %216 : vector<1x32x8xf32> to vector<32x8xf32>
    %cst_92 = arith.constant dense<0.000000e+00> : vector<16x8xf32>
    %218 = tpu.matmul %1, %217, %cst_92 {dimension_numbers = #tpu.dot_dimension_numbers<[1], [0], [0], [1], [0, 0, 1, 1], [], []>} : vector<16x32xf32>, vector<32x8xf32>, vector<16x8xf32> -> vector<16x8xf32>
    %219 = vector.extract_strided_slice %178 {offsets = [0, 0, 0], sizes = [1, 1, 8], strides = [1, 1, 1]} : vector<4x1x8xf32> to vector<1x1x8xf32>
    %220 = vector.shape_cast %219 : vector<1x1x8xf32> to vector<1x8xf32>
    %221 = vector.broadcast %220 : vector<1x8xf32> to vector<16x8xf32>
    %222 = arith.addf %218, %221 : vector<16x8xf32>
    %223 = vector.extract_strided_slice %177 {offsets = [1, 0, 0], sizes = [1, 32, 8], strides = [1, 1, 1]} : vector<4x32x8xf32> to vector<1x32x8xf32>
    %224 = vector.shape_cast %223 : vector<1x32x8xf32> to vector<32x8xf32>
    %cst_93 = arith.constant dense<0.000000e+00> : vector<16x8xf32>
    %225 = tpu.matmul %1, %224, %cst_93 {dimension_numbers = #tpu.dot_dimension_numbers<[1], [0], [0], [1], [0, 0, 1, 1], [], []>} : vector<16x32xf32>, vector<32x8xf32>, vector<16x8xf32> -> vector<16x8xf32>
    %226 = vector.extract_strided_slice %178 {offsets = [1, 0, 0], sizes = [1, 1, 8], strides = [1, 1, 1]} : vector<4x1x8xf32> to vector<1x1x8xf32>
    %227 = vector.shape_cast %226 : vector<1x1x8xf32> to vector<1x8xf32>
    %228 = vector.broadcast %227 : vector<1x8xf32> to vector<16x8xf32>
    %229 = arith.addf %225, %228 : vector<16x8xf32>
    %230 = vector.extract_strided_slice %177 {offsets = [2, 0, 0], sizes = [1, 32, 8], strides = [1, 1, 1]} : vector<4x32x8xf32> to vector<1x32x8xf32>
    %231 = vector.shape_cast %230 : vector<1x32x8xf32> to vector<32x8xf32>
    %cst_94 = arith.constant dense<0.000000e+00> : vector<16x8xf32>
    %232 = tpu.matmul %1, %231, %cst_94 {dimension_numbers = #tpu.dot_dimension_numbers<[1], [0], [0], [1], [0, 0, 1, 1], [], []>} : vector<16x32xf32>, vector<32x8xf32>, vector<16x8xf32> -> vector<16x8xf32>
    %233 = vector.extract_strided_slice %178 {offsets = [2, 0, 0], sizes = [1, 1, 8], strides = [1, 1, 1]} : vector<4x1x8xf32> to vector<1x1x8xf32>
    %234 = vector.shape_cast %233 : vector<1x1x8xf32> to vector<1x8xf32>
    %235 = vector.broadcast %234 : vector<1x8xf32> to vector<16x8xf32>
    %236 = arith.addf %232, %235 : vector<16x8xf32>
    %237 = vector.extract_strided_slice %177 {offsets = [3, 0, 0], sizes = [1, 32, 8], strides = [1, 1, 1]} : vector<4x32x8xf32> to vector<1x32x8xf32>
    %238 = vector.shape_cast %237 : vector<1x32x8xf32> to vector<32x8xf32>
    %cst_95 = arith.constant dense<0.000000e+00> : vector<16x8xf32>
    %239 = tpu.matmul %1, %238, %cst_95 {dimension_numbers = #tpu.dot_dimension_numbers<[1], [0], [0], [1], [0, 0, 1, 1], [], []>} : vector<16x32xf32>, vector<32x8xf32>, vector<16x8xf32> -> vector<16x8xf32>
    %240 = vector.extract_strided_slice %178 {offsets = [3, 0, 0], sizes = [1, 1, 8], strides = [1, 1, 1]} : vector<4x1x8xf32> to vector<1x1x8xf32>
    %241 = vector.shape_cast %240 : vector<1x1x8xf32> to vector<1x8xf32>
    %242 = vector.broadcast %241 : vector<1x8xf32> to vector<16x8xf32>
    %243 = arith.addf %239, %242 : vector<16x8xf32>
    %244 = vector.shape_cast %222 : vector<16x8xf32> to vector<1x16x8xf32>
    %245 = vector.shape_cast %229 : vector<16x8xf32> to vector<1x16x8xf32>
    %246 = vector.shape_cast %236 : vector<16x8xf32> to vector<1x16x8xf32>
    %247 = vector.shape_cast %243 : vector<16x8xf32> to vector<1x16x8xf32>
    %248 = tpu.concatenate %244, %245, %246, %247 in 0 : vector<1x16x8xf32>, vector<1x16x8xf32>, vector<1x16x8xf32>, vector<1x16x8xf32> -> vector<4x16x8xf32>
    %249 = vector.extract_strided_slice %179 {offsets = [0, 0, 0], sizes = [1, 32, 8], strides = [1, 1, 1]} : vector<4x32x8xf32> to vector<1x32x8xf32>
    %250 = vector.shape_cast %249 : vector<1x32x8xf32> to vector<32x8xf32>
    %cst_96 = arith.constant dense<0.000000e+00> : vector<16x8xf32>
    %251 = tpu.matmul %174, %250, %cst_96 {dimension_numbers = #tpu.dot_dimension_numbers<[1], [0], [0], [1], [0, 0, 1, 1], [], []>} : vector<16x32xf32>, vector<32x8xf32>, vector<16x8xf32> -> vector<16x8xf32>
    %252 = vector.extract_strided_slice %180 {offsets = [0, 0, 0], sizes = [1, 1, 8], strides = [1, 1, 1]} : vector<4x1x8xf32> to vector<1x1x8xf32>
    %253 = vector.shape_cast %252 : vector<1x1x8xf32> to vector<1x8xf32>
    %254 = vector.broadcast %253 : vector<1x8xf32> to vector<16x8xf32>
    %255 = arith.addf %251, %254 : vector<16x8xf32>
    %256 = vector.extract_strided_slice %179 {offsets = [1, 0, 0], sizes = [1, 32, 8], strides = [1, 1, 1]} : vector<4x32x8xf32> to vector<1x32x8xf32>
    %257 = vector.shape_cast %256 : vector<1x32x8xf32> to vector<32x8xf32>
    %cst_97 = arith.constant dense<0.000000e+00> : vector<16x8xf32>
    %258 = tpu.matmul %174, %257, %cst_97 {dimension_numbers = #tpu.dot_dimension_numbers<[1], [0], [0], [1], [0, 0, 1, 1], [], []>} : vector<16x32xf32>, vector<32x8xf32>, vector<16x8xf32> -> vector<16x8xf32>
    %259 = vector.extract_strided_slice %180 {offsets = [1, 0, 0], sizes = [1, 1, 8], strides = [1, 1, 1]} : vector<4x1x8xf32> to vector<1x1x8xf32>
    %260 = vector.shape_cast %259 : vector<1x1x8xf32> to vector<1x8xf32>
    %261 = vector.broadcast %260 : vector<1x8xf32> to vector<16x8xf32>
    %262 = arith.addf %258, %261 : vector<16x8xf32>
    %263 = vector.extract_strided_slice %179 {offsets = [2, 0, 0], sizes = [1, 32, 8], strides = [1, 1, 1]} : vector<4x32x8xf32> to vector<1x32x8xf32>
    %264 = vector.shape_cast %263 : vector<1x32x8xf32> to vector<32x8xf32>
    %cst_98 = arith.constant dense<0.000000e+00> : vector<16x8xf32>
    %265 = tpu.matmul %174, %264, %cst_98 {dimension_numbers = #tpu.dot_dimension_numbers<[1], [0], [0], [1], [0, 0, 1, 1], [], []>} : vector<16x32xf32>, vector<32x8xf32>, vector<16x8xf32> -> vector<16x8xf32>
    %266 = vector.extract_strided_slice %180 {offsets = [2, 0, 0], sizes = [1, 1, 8], strides = [1, 1, 1]} : vector<4x1x8xf32> to vector<1x1x8xf32>
    %267 = vector.shape_cast %266 : vector<1x1x8xf32> to vector<1x8xf32>
    %268 = vector.broadcast %267 : vector<1x8xf32> to vector<16x8xf32>
    %269 = arith.addf %265, %268 : vector<16x8xf32>
    %270 = vector.extract_strided_slice %179 {offsets = [3, 0, 0], sizes = [1, 32, 8], strides = [1, 1, 1]} : vector<4x32x8xf32> to vector<1x32x8xf32>
    %271 = vector.shape_cast %270 : vector<1x32x8xf32> to vector<32x8xf32>
    %cst_99 = arith.constant dense<0.000000e+00> : vector<16x8xf32>
    %272 = tpu.matmul %174, %271, %cst_99 {dimension_numbers = #tpu.dot_dimension_numbers<[1], [0], [0], [1], [0, 0, 1, 1], [], []>} : vector<16x32xf32>, vector<32x8xf32>, vector<16x8xf32> -> vector<16x8xf32>
    %273 = vector.extract_strided_slice %180 {offsets = [3, 0, 0], sizes = [1, 1, 8], strides = [1, 1, 1]} : vector<4x1x8xf32> to vector<1x1x8xf32>
    %274 = vector.shape_cast %273 : vector<1x1x8xf32> to vector<1x8xf32>
    %275 = vector.broadcast %274 : vector<1x8xf32> to vector<16x8xf32>
    %276 = arith.addf %272, %275 : vector<16x8xf32>
    %277 = vector.shape_cast %255 : vector<16x8xf32> to vector<1x16x8xf32>
    %278 = vector.shape_cast %262 : vector<16x8xf32> to vector<1x16x8xf32>
    %279 = vector.shape_cast %269 : vector<16x8xf32> to vector<1x16x8xf32>
    %280 = vector.shape_cast %276 : vector<16x8xf32> to vector<1x16x8xf32>
    %281 = tpu.concatenate %277, %278, %279, %280 in 0 : vector<1x16x8xf32>, vector<1x16x8xf32>, vector<1x16x8xf32>, vector<1x16x8xf32> -> vector<4x16x8xf32>
    "tpu.trace_start"() <{level = 10 : i32, message = "hqd,hkd->hqk"}> : () -> ()
    %cst_100 = arith.constant dense<0.000000e+00> : vector<4x16x16xf32>
    %282 = tpu.matmul %215, %248, %cst_100 {dimension_numbers = #tpu.dot_dimension_numbers<[2], [2], [1], [1], [0, 0, 0, 1, 1, 1], [0], [0]>} : vector<4x16x8xf32>, vector<4x16x8xf32>, vector<4x16x16xf32> -> vector<4x16x16xf32>
    "tpu.trace_stop"() : () -> ()
    %283 = vector.shape_cast %3 : vector<16x16xf32> to vector<1x16x16xf32>
    %284 = vector.broadcast %283 : vector<1x16x16xf32> to vector<4x16x16xf32>
    %285 = arith.addf %282, %284 : vector<4x16x16xf32>
    %cst_101 = arith.constant dense<0xFF800000> : vector<4x16xf32>
    %286 = vector.multi_reduction <maximumf>, %285, %cst_101 [2] : vector<4x16x16xf32> to vector<4x16xf32>
    %287 = vector.shape_cast %286 : vector<4x16xf32> to vector<4x16x1xf32>
    %288 = vector.broadcast %287 : vector<4x16x1xf32> to vector<4x16x16xf32>
    %289 = arith.subf %285, %288 : vector<4x16x16xf32>
    %290 = math.exp %289 : vector<4x16x16xf32>
    %cst_102 = arith.constant dense<0.000000e+00> : vector<4x16xf32>
    %291 = vector.multi_reduction <add>, %290, %cst_102 [2] : vector<4x16x16xf32> to vector<4x16xf32>
    %292 = vector.shape_cast %291 : vector<4x16xf32> to vector<4x16x1xf32>
    %293 = tpu.reciprocal %292 : vector<4x16x1xf32> -> vector<4x16x1xf32>
    %294 = vector.broadcast %293 : vector<4x16x1xf32> to vector<4x16x16xf32>
    %295 = arith.mulf %290, %294 : vector<4x16x16xf32>
    "tpu.trace_start"() <{level = 10 : i32, message = "hqk,hkd->hqd"}> : () -> ()
    %cst_103 = arith.constant dense<0.000000e+00> : vector<4x16x8xf32>
    %296 = tpu.matmul %295, %281, %cst_103 {dimension_numbers = #tpu.dot_dimension_numbers<[2], [1], [1], [2], [0, 0, 0, 1, 1, 2], [0], [0]>} : vector<4x16x16xf32>, vector<4x16x8xf32>, vector<4x16x8xf32> -> vector<4x16x8xf32>
    "tpu.trace_stop"() : () -> ()
    "tpu.trace_start"() <{level = 10 : i32, message = "hqd,hde->hqe"}> : () -> ()
    %cst_104 = arith.constant dense<0.000000e+00> : vector<4x16x32xf32>
    %297 = tpu.matmul %296, %181, %cst_104 {dimension_numbers = #tpu.dot_dimension_numbers<[2], [1], [1], [2], [0, 0, 0, 1, 1, 2], [0], [0]>} : vector<4x16x8xf32>, vector<4x8x32xf32>, vector<4x16x32xf32> -> vector<4x16x32xf32>
    "tpu.trace_stop"() : () -> ()
    %cst_105 = arith.constant dense<0.000000e+00> : vector<16x32xf32>
    %298 = vector.multi_reduction <add>, %297, %cst_105 [0] : vector<4x16x32xf32> to vector<16x32xf32>
    %299 = vector.broadcast %182 : vector<1x32xf32> to vector<16x32xf32>
    %300 = arith.addf %298, %299 : vector<16x32xf32>
    %301 = arith.addf %174, %300 : vector<16x32xf32>
    %c0_106 = arith.constant 0 : index
    %c0_107 = arith.constant 0 : index
    %302 = vector.load %arg24[%c0_106, %c0_107] : memref<1x32xf32, #tpu.memory_space<vmem>>, vector<1x32xf32>
    %c0_108 = arith.constant 0 : index
    %c0_109 = arith.constant 0 : index
    %303 = vector.load %arg25[%c0_108, %c0_109] : memref<1x32xf32, #tpu.memory_space<vmem>>, vector<1x32xf32>
    %cst_110 = arith.constant dense<0.000000e+00> : vector<16xf32>
    %304 = vector.multi_reduction <add>, %301, %cst_110 [1] : vector<16x32xf32> to vector<16xf32>
    %305 = vector.shape_cast %304 : vector<16xf32> to vector<16x1xf32>
    %cst_111 = arith.constant 3.200000e+01 : f32
    %306 = vector.broadcast %cst_111 : f32 to vector<16x1xf32>
    %307 = arith.divf %305, %306 : vector<16x1xf32>
    %308 = vector.broadcast %307 : vector<16x1xf32> to vector<16x32xf32>
    %309 = arith.subf %301, %308 : vector<16x32xf32>
    %310 = arith.mulf %309, %309 : vector<16x32xf32>
    %cst_112 = arith.constant dense<0.000000e+00> : vector<16xf32>
    %311 = vector.multi_reduction <add>, %310, %cst_112 [1] : vector<16x32xf32> to vector<16xf32>
    %312 = vector.shape_cast %311 : vector<16xf32> to vector<16x1xf32>
    %cst_113 = arith.constant 3.200000e+01 : f32
    %313 = vector.broadcast %cst_113 : f32 to vector<16x1xf32>
    %314 = arith.divf %312, %313 : vector<16x1xf32>
    %cst_114 = arith.constant 9.99999974E-6 : f32
    %315 = vector.broadcast %cst_114 : f32 to vector<16x1xf32>
    %316 = arith.addf %314, %315 : vector<16x1xf32>
    %317 = math.rsqrt %316 : vector<16x1xf32>
    %318 = vector.broadcast %317 : vector<16x1xf32> to vector<16x32xf32>
    %319 = arith.mulf %309, %318 : vector<16x32xf32>
    %320 = vector.broadcast %302 : vector<1x32xf32> to vector<16x32xf32>
    %321 = arith.mulf %319, %320 : vector<16x32xf32>
    %322 = vector.broadcast %303 : vector<1x32xf32> to vector<16x32xf32>
    %323 = arith.addf %321, %322 : vector<16x32xf32>
    %c0_115 = arith.constant 0 : index
    %c0_116 = arith.constant 0 : index
    %324 = vector.load %arg26[%c0_115, %c0_116] : memref<32x128xf32, #tpu.memory_space<vmem>>, vector<32x128xf32>
    %cst_117 = arith.constant dense<0.000000e+00> : vector<16x128xf32>
    %325 = tpu.matmul %323, %324, %cst_117 {dimension_numbers = #tpu.dot_dimension_numbers<[1], [0], [0], [1], [0, 0, 1, 1], [], []>} : vector<16x32xf32>, vector<32x128xf32>, vector<16x128xf32> -> vector<16x128xf32>
    %c0_118 = arith.constant 0 : index
    %c0_119 = arith.constant 0 : index
    %326 = vector.load %arg27[%c0_118, %c0_119] : memref<1x128xf32, #tpu.memory_space<vmem>>, vector<1x128xf32>
    %327 = vector.broadcast %326 : vector<1x128xf32> to vector<16x128xf32>
    %328 = arith.addf %325, %327 : vector<16x128xf32>
    %cst_120 = arith.constant 0.000000e+00 : f32
    %329 = vector.broadcast %cst_120 : f32 to vector<16x128xf32>
    %330 = arith.maximumf %328, %329 : vector<16x128xf32>
    %c0_121 = arith.constant 0 : index
    %c0_122 = arith.constant 0 : index
    %331 = vector.load %arg28[%c0_121, %c0_122] : memref<128x32xf32, #tpu.memory_space<vmem>>, vector<128x32xf32>
    %cst_123 = arith.constant dense<0.000000e+00> : vector<16x32xf32>
    %332 = tpu.matmul %330, %331, %cst_123 {dimension_numbers = #tpu.dot_dimension_numbers<[1], [0], [0], [1], [0, 0, 1, 1], [], []>} : vector<16x128xf32>, vector<128x32xf32>, vector<16x32xf32> -> vector<16x32xf32>
    %333 = arith.addf %323, %332 : vector<16x32xf32>
    %c0_124 = arith.constant 0 : index
    %c0_125 = arith.constant 0 : index
    %334 = vector.load %arg29[%c0_124, %c0_125] : memref<1x32xf32, #tpu.memory_space<vmem>>, vector<1x32xf32>
    %335 = vector.broadcast %334 : vector<1x32xf32> to vector<16x32xf32>
    %336 = arith.addf %333, %335 : vector<16x32xf32>
    %c0_126 = arith.constant 0 : index
    %c0_127 = arith.constant 0 : index
    %337 = vector.load %arg30[%c0_126, %c0_127] : memref<16x32xf32, #tpu.memory_space<vmem>>, vector<16x32xf32>
    tpu.vector_store %arg30[%c0_126, %c0_127], %336 {strides = array<i32>} : memref<16x32xf32, #tpu.memory_space<vmem>>, vector<16x32xf32>,
    return
  }
}

</mosaic_0001>

<llo_original>
// kernel: tpu_custom_call.1
$region0: #{tpu_custom_call.1}
  #allocation0 [shape = 'u32[]', space=smem, size = 0x4, offset = 0x4, fixed_abs, tag = 'smem constant byte address 0x4 - core index']
  #allocation1 [shape = 'u32[144,128]{1,0:T(1,128)}', space=vmem, size = 0x12000, scoped, tag = 'internal scratch']
  %s0 = inlined_call_operand.smem [shape: u32[31], index: -1, kind: input, shape index: {}]
  %s1 = sld [smem:[%s0]]
  %s2 = scalar_lea.smem %s0, 1
  %s3 = sld [smem:[%s2]]
  %s4 = scalar_lea.smem %s0, 2
  %s5 = sld [smem:[%s4]]
  %s6 = scalar_lea.smem %s0, 3
  %s7 = sld [smem:[%s6]]
  %s8 = scalar_lea.smem %s0, 4
  %s9 = sld [smem:[%s8]]
  %s10 = scalar_lea.smem %s0, 5
  %s11 = sld [smem:[%s10]]
  %s12 = scalar_lea.smem %s0, 6
  %s13 = sld [smem:[%s12]]
  %s14 = scalar_lea.smem %s0, 7
  %s15 = sld [smem:[%s14]]
  %s16 = scalar_lea.smem %s0, 8
  %s17 = sld [smem:[%s16]]
  %s18 = scalar_lea.smem %s0, 9
  %s19 = sld [smem:[%s18]]
  %s20 = scalar_lea.smem %s0, 10
  %s21 = sld [smem:[%s20]]
  %s22 = scalar_lea.smem %s0, 11
  %s23 = sld [smem:[%s22]]
  %s24 = scalar_lea.smem %s0, 12
  %s25 = sld [smem:[%s24]]
  %s26 = scalar_lea.smem %s0, 13
  %s27 = sld [smem:[%s26]]
  %s28 = scalar_lea.smem %s0, 14
  %s29 = sld [smem:[%s28]]
  %s30 = scalar_lea.smem %s0, 15
  %s31 = sld [smem:[%s30]]
  %s32 = scalar_lea.smem %s0, 16
  %s33 = sld [smem:[%s32]]
  %s34 = scalar_lea.smem %s0, 17
  %s35 = sld [smem:[%s34]]
  %s36 = scalar_lea.smem %s0, 18
  %s37 = sld [smem:[%s36]]
  %s38 = scalar_lea.smem %s0, 19
  %s39 = sld [smem:[%s38]]
  %s40 = scalar_lea.smem %s0, 20
  %s41 = sld [smem:[%s40]]
  %s42 = scalar_lea.smem %s0, 21
  %s43 = sld [smem:[%s42]]
  %s44 = scalar_lea.smem %s0, 22
  %s45 = sld [smem:[%s44]]
  %s46 = scalar_lea.smem %s0, 23
  %s47 = sld [smem:[%s46]]
  %s48 = scalar_lea.smem %s0, 24
  %s49 = sld [smem:[%s48]]
  %s50 = scalar_lea.smem %s0, 25
  %s51 = sld [smem:[%s50]]
  %s52 = scalar_lea.smem %s0, 26
  %s53 = sld [smem:[%s52]]
  %s54 = scalar_lea.smem %s0, 27
  %s55 = sld [smem:[%s54]]
  %s56 = scalar_lea.smem %s0, 28
  %s57 = sld [smem:[%s56]]
  %s58 = scalar_lea.smem %s0, 29
  %s59 = sld [smem:[%s58]]
  %s60 = scalar_lea.smem %s0, 30
  %s61 = sld [smem:[%s60]]
  %s62 = sld [smem:[#allocation0]]
  $region130: #{tpu_custom_call.1} parent=0
    _
  %s64 = ssub.s32 1, %s62
  %s65 = scalar_select 0, %s64, %s62
  $region1: #{tpu_custom_call.1} parent=0
    #allocation2 [shape = 'u8[8192]{0}', space=vmem, size = 0x2000, scoped, tag = 'output window, operand 0, single buffered']
    #allocation3 [shape = 's32[1]{0}', space=sflag, size = 0x4, scoped, tag = 'scoped memory for tpu_custom_call.1']
    %66 = vsyncpa [#allocation3], 0
    // Predicated region
    $region2: #{tpu_custom_call.1} parent=1 // pred_check
      _
    $region3: #{tpu_custom_call.1} parent=1 // pred_check_branch
      %68 = sbr.rel (0) target = $region5
    $region4: #{tpu_custom_call.1} parent=1 // pred_region
      _
    $region5: #{tpu_custom_call.1} parent=1 // pred_fallthru
      _
    // Predicated region
    $region6: #{tpu_custom_call.1} parent=1 // pred_check
      _
    $region7: #{tpu_custom_call.1} parent=1 // pred_check_branch
      %70 = sbr.rel (0) target = $region9
    $region8: #{tpu_custom_call.1} parent=1 // pred_region
      _
    $region9: #{tpu_custom_call.1} parent=1 // pred_fallthru
      _
    // Predicated region
    $region10: #{tpu_custom_call.1} parent=1 // pred_check
      _
    $region11: #{tpu_custom_call.1} parent=1 // pred_check_branch
      %72 = sbr.rel (0) target = $region13
    $region12: #{tpu_custom_call.1} parent=1 // pred_region
      _
    $region13: #{tpu_custom_call.1} parent=1 // pred_fallthru
      _
    // Predicated region
    $region14: #{tpu_custom_call.1} parent=1 // pred_check
      _
    $region15: #{tpu_custom_call.1} parent=1 // pred_check_branch
      %74 = sbr.rel (0) target = $region17
    $region16: #{tpu_custom_call.1} parent=1 // pred_region
      _
    $region17: #{tpu_custom_call.1} parent=1 // pred_fallthru
      _
    // Predicated region
    $region18: #{tpu_custom_call.1} parent=1 // pred_check
      _
    $region19: #{tpu_custom_call.1} parent=1 // pred_check_branch
      %76 = sbr.rel (0) target = $region21
    $region20: #{tpu_custom_call.1} parent=1 // pred_region
      _
    $region21: #{tpu_custom_call.1} parent=1 // pred_fallthru
      _
    // Predicated region
    $region22: #{tpu_custom_call.1} parent=1 // pred_check
      _
    $region23: #{tpu_custom_call.1} parent=1 // pred_check_branch
      %78 = sbr.rel (0) target = $region25
    $region24: #{tpu_custom_call.1} parent=1 // pred_region
      _
    $region25: #{tpu_custom_call.1} parent=1 // pred_fallthru
      _
    // Predicated region
    $region26: #{tpu_custom_call.1} parent=1 // pred_check
      _
    $region27: #{tpu_custom_call.1} parent=1 // pred_check_branch
      %80 = sbr.rel (0) target = $region29
    $region28: #{tpu_custom_call.1} parent=1 // pred_region
      _
    $region29: #{tpu_custom_call.1} parent=1 // pred_fallthru
      _
    // Predicated region
    $region30: #{tpu_custom_call.1} parent=1 // pred_check
      _
    $region31: #{tpu_custom_call.1} parent=1 // pred_check_branch
      %82 = sbr.rel (0) target = $region33
    $region32: #{tpu_custom_call.1} parent=1 // pred_region
      _
    $region33: #{tpu_custom_call.1} parent=1 // pred_fallthru
      _
    // Predicated region
    $region34: #{tpu_custom_call.1} parent=1 // pred_check
      _
    $region35: #{tpu_custom_call.1} parent=1 // pred_check_branch
      %84 = sbr.rel (0) target = $region37
    $region36: #{tpu_custom_call.1} parent=1 // pred_region
      _
    $region37: #{tpu_custom_call.1} parent=1 // pred_fallthru
      _
    // Predicated region
    $region38: #{tpu_custom_call.1} parent=1 // pred_check
      _
    $region39: #{tpu_custom_call.1} parent=1 // pred_check_branch
      %86 = sbr.rel (0) target = $region41
    $region40: #{tpu_custom_call.1} parent=1 // pred_region
      _
    $region41: #{tpu_custom_call.1} parent=1 // pred_fallthru
      _
    // Predicated region
    $region42: #{tpu_custom_call.1} parent=1 // pred_check
      _
    $region43: #{tpu_custom_call.1} parent=1 // pred_check_branch
      %88 = sbr.rel (0) target = $region45
    $region44: #{tpu_custom_call.1} parent=1 // pred_region
      _
    $region45: #{tpu_custom_call.1} parent=1 // pred_fallthru
      _
    // Predicated region
    $region46: #{tpu_custom_call.1} parent=1 // pred_check
      _
    $region47: #{tpu_custom_call.1} parent=1 // pred_check_branch
      %90 = sbr.rel (0) target = $region49
    $region48: #{tpu_custom_call.1} parent=1 // pred_region
      _
    $region49: #{tpu_custom_call.1} parent=1 // pred_fallthru
      _
    // Predicated region
    $region50: #{tpu_custom_call.1} parent=1 // pred_check
      _
    $region51: #{tpu_custom_call.1} parent=1 // pred_check_branch
      %92 = sbr.rel (0) target = $region53
    $region52: #{tpu_custom_call.1} parent=1 // pred_region
      _
    $region53: #{tpu_custom_call.1} parent=1 // pred_fallthru
      _
    // Predicated region
    $region54: #{tpu_custom_call.1} parent=1 // pred_check
      _
    $region55: #{tpu_custom_call.1} parent=1 // pred_check_branch
      %94 = sbr.rel (0) target = $region57
    $region56: #{tpu_custom_call.1} parent=1 // pred_region
      _
    $region57: #{tpu_custom_call.1} parent=1 // pred_fallthru
      _
    // Predicated region
    $region58: #{tpu_custom_call.1} parent=1 // pred_check
      _
    $region59: #{tpu_custom_call.1} parent=1 // pred_check_branch
      %96 = sbr.rel (0) target = $region61
    $region60: #{tpu_custom_call.1} parent=1 // pred_region
      _
    $region61: #{tpu_custom_call.1} parent=1 // pred_fallthru
      _
    // Predicated region
    $region62: #{tpu_custom_call.1} parent=1 // pred_check
      _
    $region63: #{tpu_custom_call.1} parent=1 // pred_check_branch
      %98 = sbr.rel (0) target = $region65
    $region64: #{tpu_custom_call.1} parent=1 // pred_region
      _
    $region65: #{tpu_custom_call.1} parent=1 // pred_fallthru
      _
    // Predicated region
    $region66: #{tpu_custom_call.1} parent=1 // pred_check
      _
    $region67: #{tpu_custom_call.1} parent=1 // pred_check_branch
      %100 = sbr.rel (0) target = $region69
    $region68: #{tpu_custom_call.1} parent=1 // pred_region
      _
    $region69: #{tpu_custom_call.1} parent=1 // pred_fallthru
      _
    // Predicated region
    $region70: #{tpu_custom_call.1} parent=1 // pred_check
      _
    $region71: #{tpu_custom_call.1} parent=1 // pred_check_branch
      %102 = sbr.rel (0) target = $region73
    $region72: #{tpu_custom_call.1} parent=1 // pred_region
      _
    $region73: #{tpu_custom_call.1} parent=1 // pred_fallthru
      _
    // Predicated region
    $region74: #{tpu_custom_call.1} parent=1 // pred_check
      _
    $region75: #{tpu_custom_call.1} parent=1 // pred_check_branch
      %104 = sbr.rel (0) target = $region77
    $region76: #{tpu_custom_call.1} parent=1 // pred_region
      _
    $region77: #{tpu_custom_call.1} parent=1 // pred_fallthru
      _
    // Predicated region
    $region78: #{tpu_custom_call.1} parent=1 // pred_check
      _
    $region79: #{tpu_custom_call.1} parent=1 // pred_check_branch
      %106 = sbr.rel (0) target = $region81
    $region80: #{tpu_custom_call.1} parent=1 // pred_region
      _
    $region81: #{tpu_custom_call.1} parent=1 // pred_fallthru
      _
    // Predicated region
    $region82: #{tpu_custom_call.1} parent=1 // pred_check
      _
    $region83: #{tpu_custom_call.1} parent=1 // pred_check_branch
      %108 = sbr.rel (0) target = $region85
    $region84: #{tpu_custom_call.1} parent=1 // pred_region
      _
    $region85: #{tpu_custom_call.1} parent=1 // pred_fallthru
      _
    // Predicated region
    $region86: #{tpu_custom_call.1} parent=1 // pred_check
      _
    $region87: #{tpu_custom_call.1} parent=1 // pred_check_branch
      %110 = sbr.rel (0) target = $region89
    $region88: #{tpu_custom_call.1} parent=1 // pred_region
      _
    $region89: #{tpu_custom_call.1} parent=1 // pred_fallthru
      _
    // Predicated region
    $region90: #{tpu_custom_call.1} parent=1 // pred_check
      _
    $region91: #{tpu_custom_call.1} parent=1 // pred_check_branch
      %112 = sbr.rel (0) target = $region93
    $region92: #{tpu_custom_call.1} parent=1 // pred_region
      _
    $region93: #{tpu_custom_call.1} parent=1 // pred_fallthru
      _
    // Predicated region
    $region94: #{tpu_custom_call.1} parent=1 // pred_check
      _
    $region95: #{tpu_custom_call.1} parent=1 // pred_check_branch
      %114 = sbr.rel (0) target = $region97
    $region96: #{tpu_custom_call.1} parent=1 // pred_region
      _
    $region97: #{tpu_custom_call.1} parent=1 // pred_fallthru
      _
    // Predicated region
    $region98: #{tpu_custom_call.1} parent=1 // pred_check
      _
    $region99: #{tpu_custom_call.1} parent=1 // pred_check_branch
      %116 = sbr.rel (0) target = $region101
    $region100: #{tpu_custom_call.1} parent=1 // pred_region
      _
    $region101: #{tpu_custom_call.1} parent=1 // pred_fallthru
      _
    // Predicated region
    $region102: #{tpu_custom_call.1} parent=1 // pred_check
      _
    $region103: #{tpu_custom_call.1} parent=1 // pred_check_branch
      %118 = sbr.rel (0) target = $region105
    $region104: #{tpu_custom_call.1} parent=1 // pred_region
      _
    $region105: #{tpu_custom_call.1} parent=1 // pred_fallthru
      _
    // Predicated region
    $region106: #{tpu_custom_call.1} parent=1 // pred_check
      _
    $region107: #{tpu_custom_call.1} parent=1 // pred_check_branch
      %120 = sbr.rel (0) target = $region109
    $region108: #{tpu_custom_call.1} parent=1 // pred_region
      _
    $region109: #{tpu_custom_call.1} parent=1 // pred_fallthru
      _
    // Predicated region
    $region110: #{tpu_custom_call.1} parent=1 // pred_check
      _
    $region111: #{tpu_custom_call.1} parent=1 // pred_check_branch
      %122 = sbr.rel (0) target = $region113
    $region112: #{tpu_custom_call.1} parent=1 // pred_region
      _
    $region113: #{tpu_custom_call.1} parent=1 // pred_fallthru
      _
    // Predicated region
    $region114: #{tpu_custom_call.1} parent=1 // pred_check
      _
    $region115: #{tpu_custom_call.1} parent=1 // pred_check_branch
      %124 = sbr.rel (0) target = $region117
    $region116: #{tpu_custom_call.1} parent=1 // pred_region
      _
    $region117: #{tpu_custom_call.1} parent=1 // pred_fallthru
      _
    // Predicated region
    $region118: #{tpu_custom_call.1} parent=1 // pred_check
      _
    $region119: #{tpu_custom_call.1} parent=1 // pred_check_branch
      %126 = sbr.rel (0) target = $region121
    $region120: #{tpu_custom_call.1} parent=1 // pred_region
      _
    $region121: #{tpu_custom_call.1} parent=1 // pred_fallthru
      _
    %v127 = vld [vmem:[%s1] sm:$0xff]
    %v128 = vld [vmem:[%s1 + $0x8] sm:$0xff]
    %v129 = vld [vmem:[%s3] sm:$0xff]
    %v130 = vld [vmem:[%s3 + $0x8] sm:$0xff]
    %v131 = vld [vmem:[%s5] sm:$0xff]
    %v132 = vld [vmem:[%s5 + $0x8] sm:$0xff]
    %v133 = vld [vmem:[%s7] sm:$0xff]
    %v134 = vld [vmem:[%s7 + $0x8] sm:$0xff]
    %v135 = vld [vmem:[%s9] sm:$0x1]
    %v136 = vld [vmem:[%s11] sm:$0x1]
    %vm137 = vcmask 261120
    %v138 = vsel %vm137, %v127, 0.0
    %139 = vadd.xlane.f32.xlu0 %v138
    %v140 = vpop.xlane.xlu0 %139
    %v141 = vsel %vm137, %v128, 0.0
    %142 = vadd.xlane.f32.xlu0 %v141
    %v143 = vpop.xlane.xlu0 %142
    %v144 = vrcp.pop 32.0
    %v145 = vmul.f32 %v140, %v144
    %v146 = vmul.f32 %v143, %v144
    %v147 = vsub.f32 %v127, %v145
    %v148 = vsub.f32 %v128, %v146
    %v149 = vmul.f32 %v147, %v147
    %v150 = vmul.f32 %v148, %v148
    %v151 = vsel %vm137, %v149, 0.0
    %152 = vadd.xlane.f32.xlu0 %v151
    %v153 = vpop.xlane.xlu0 %152
    %v154 = vsel %vm137, %v150, 0.0
    %155 = vadd.xlane.f32.xlu0 %v154
    %v156 = vpop.xlane.xlu0 %155
    %v157 = vmul.f32 %v153, %v144
    %v158 = vmul.f32 %v156, %v144
    %v159 = vadd.f32 %v157, 1e-05
    %v160 = vadd.f32 %v158, 1e-05
    %v161 = vrsqrt.pop %v159
    %v162 = vrsqrt.pop %v160
    %v163 = vmul.f32 %v147, %v161
    %v164 = vmul.f32 %v148, %v162
    %v166 = vlaneseq
    %v167 = vshrl.u32 %v166, 7
    %v168 = vsub.s32 0, %v167
    %v169 = vrot.slane %v135, %v168
    %v171 = vmul.f32 %v163, %v169
    %v172 = vmul.f32 %v164, %v169
    %v174 = vlaneseq
    %v175 = vshrl.u32 %v174, 7
    %v176 = vsub.s32 0, %v175
    %v177 = vrot.slane %v136, %v176
    %v179 = vadd.f32 %v171, %v177
    %v180 = vadd.f32 %v172, %v177
    %v181 = vld [vmem:[%s17] sm:$0xff]
    %v182 = vld [vmem:[%s17 + $0x8] sm:$0xff]
    %v183 = vld [vmem:[%s17 + $0x10] sm:$0xff]
    %v184 = vld [vmem:[%s17 + $0x18] sm:$0xff]
    %v185 = vld [vmem:[%s17 + $0x20] sm:$0xff]
    %v186 = vld [vmem:[%s17 + $0x28] sm:$0xff]
    %v187 = vld [vmem:[%s17 + $0x30] sm:$0xff]
    %v188 = vld [vmem:[%s17 + $0x38] sm:$0xff]
    %v189 = vld [vmem:[%s17 + $0x40] sm:$0xff]
    %v190 = vld [vmem:[%s17 + $0x48] sm:$0xff]
    %v191 = vld [vmem:[%s17 + $0x50] sm:$0xff]
    %v192 = vld [vmem:[%s17 + $0x58] sm:$0xff]
    %v193 = vld [vmem:[%s17 + $0x60] sm:$0xff]
    %v194 = vld [vmem:[%s17 + $0x68] sm:$0xff]
    %v195 = vld [vmem:[%s17 + $0x70] sm:$0xff]
    %v196 = vld [vmem:[%s17 + $0x78] sm:$0xff]
    %v197 = vld [vmem:[%s19] sm:$0x1]
    %v198 = vld [vmem:[%s19 + $0x1] sm:$0x1]
    %v199 = vld [vmem:[%s19 + $0x2] sm:$0x1]
    %v200 = vld [vmem:[%s19 + $0x3] sm:$0x1]
    %v201 = vld [vmem:[%s21] sm:$0xff]
    %v202 = vld [vmem:[%s21 + $0x8] sm:$0xff]
    %v203 = vld [vmem:[%s21 + $0x10] sm:$0xff]
    %v204 = vld [vmem:[%s21 + $0x18] sm:$0xff]
    %v205 = vld [vmem:[%s21 + $0x20] sm:$0xff]
    %v206 = vld [vmem:[%s21 + $0x28] sm:$0xff]
    %v207 = vld [vmem:[%s21 + $0x30] sm:$0xff]
    %v208 = vld [vmem:[%s21 + $0x38] sm:$0xff]
    %v209 = vld [vmem:[%s21 + $0x40] sm:$0xff]
    %v210 = vld [vmem:[%s21 + $0x48] sm:$0xff]
    %v211 = vld [vmem:[%s21 + $0x50] sm:$0xff]
    %v212 = vld [vmem:[%s21 + $0x58] sm:$0xff]
    %v213 = vld [vmem:[%s21 + $0x60] sm:$0xff]
    %v214 = vld [vmem:[%s21 + $0x68] sm:$0xff]
    %v215 = vld [vmem:[%s21 + $0x70] sm:$0xff]
    %v216 = vld [vmem:[%s21 + $0x78] sm:$0xff]
    %v217 = vld [vmem:[%s23] sm:$0x1]
    %v218 = vld [vmem:[%s23 + $0x1] sm:$0x1]
    %v219 = vld [vmem:[%s23 + $0x2] sm:$0x1]
    %v220 = vld [vmem:[%s23 + $0x3] sm:$0x1]
    %v221 = vld [vmem:[%s25] sm:$0xff]
    %v222 = vld [vmem:[%s25 + $0x8] sm:$0xff]
    %v223 = vld [vmem:[%s25 + $0x10] sm:$0xff]
    %v224 = vld [vmem:[%s25 + $0x18] sm:$0xff]
    %v225 = vld [vmem:[%s25 + $0x20] sm:$0xff]
    %v226 = vld [vmem:[%s25 + $0x28] sm:$0xff]
    %v227 = vld [vmem:[%s25 + $0x30] sm:$0xff]
    %v228 = vld [vmem:[%s25 + $0x38] sm:$0xff]
    %v229 = vld [vmem:[%s25 + $0x40] sm:$0xff]
    %v230 = vld [vmem:[%s25 + $0x48] sm:$0xff]
    %v231 = vld [vmem:[%s25 + $0x50] sm:$0xff]
    %v232 = vld [vmem:[%s25 + $0x58] sm:$0xff]
    %v233 = vld [vmem:[%s25 + $0x60] sm:$0xff]
    %v234 = vld [vmem:[%s25 + $0x68] sm:$0xff]
    %v235 = vld [vmem:[%s25 + $0x70] sm:$0xff]
    %v236 = vld [vmem:[%s25 + $0x78] sm:$0xff]
    %v237 = vld [vmem:[%s27] sm:$0x1]
    %v238 = vld [vmem:[%s27 + $0x1] sm:$0x1]
    %v239 = vld [vmem:[%s27 + $0x2] sm:$0x1]
    %v240 = vld [vmem:[%s27 + $0x3] sm:$0x1]
    %v241 = vld [vmem:[%s29] sm:$0xff]
    %v242 = vld [vmem:[%s29 + $0x8] sm:$0xff]
    %v243 = vld [vmem:[%s29 + $0x10] sm:$0xff]
    %v244 = vld [vmem:[%s29 + $0x18] sm:$0xff]
    %v245 = vld [vmem:[%s31] sm:$0x1]
    %v247 = vlaneseq
    %v248 = vshrl.u32 %v247, 7
    %v249 = vsub.s32 0, %v248
    %v250 = vrot.slane %v197, %v249
    %v253 = vsel %vm137, %v179, 0
    %v256 = vsel %vm137, %v180, 0
    %258 = vmatprep.subr.mxu0 0.0
    %259 = vmatpush1.msra.mxu0 0.0
    %260 = vmatprep.subr.mxu0 0.0
    %261 = vmatpush1.msra.mxu0 0.0
    %262 = vmatprep.subr.mxu0 0.0
    %263 = vmatpush1.msra.mxu0 0.0
    %264 = vmatprep.subr.mxu0 0.0
    %265 = vmatpush1.msra.mxu0 0.0
    %266 = vmatprep.subr.mxu0 0.0
    %267 = vmatpush1.msra.mxu0 0.0
    %268 = vmatprep.subr.mxu0 0.0
    %269 = vmatpush1.msra.mxu0 0.0
    %270 = vmatprep.subr.mxu0 0.0
    %271 = vmatpush1.msra.mxu0 0.0
    %272 = vmatprep.subr.mxu0 0.0
    %273 = vmatpush1.msra.mxu0 0.0
    %274 = vmatprep.subr.mxu0 0.0
    %275 = vmatpush1.msra.mxu0 0.0
    %276 = vmatprep.subr.mxu0 0.0
    %277 = vmatpush1.msra.mxu0 0.0
    %278 = vmatprep.subr.mxu0 0.0
    %279 = vmatpush1.msra.mxu0 0.0
    %280 = vmatprep.subr.mxu0 0.0
    %281 = vmatpush1.msra.mxu0 0.0
    %282 = vmatprep.subr.mxu0 0.0
    %283 = vmatpush1.msra.mxu0 %v184
    %284 = vmatprep.subr.mxu0 0.0
    %285 = vmatpush1.msra.mxu0 %v183
    %286 = vmatprep.subr.mxu0 0.0
    %287 = vmatpush1.msra.mxu0 %v182
    %288 = vmatprep.subr.mxu0 0.0
    %289 = vmatpush1.msra.mxu0 %v181
    %290 = vmatprep.subr.mxu0 0.0
    %291 = vmatpush2.msra.mxu0 0.0
    %292 = vmatprep.subr.mxu0 0.0
    %293 = vmatpush2.msra.mxu0 0.0
    %294 = vmatprep.subr.mxu0 0.0
    %295 = vmatpush2.msra.mxu0 0.0
    %296 = vmatprep.subr.mxu0 0.0
    %297 = vmatpush2.msra.mxu0 0.0
    %298 = vmatprep.subr.mxu0 0.0
    %299 = vmatpush2.msra.mxu0 0.0
    %300 = vmatprep.subr.mxu0 0.0
    %301 = vmatpush2.msra.mxu0 0.0
    %302 = vmatprep.subr.mxu0 0.0
    %303 = vmatpush2.msra.mxu0 0.0
    %304 = vmatprep.subr.mxu0 0.0
    %305 = vmatpush2.msra.mxu0 0.0
    %306 = vmatprep.subr.mxu0 0.0
    %307 = vmatpush2.msra.mxu0 0.0
    %308 = vmatprep.subr.mxu0 0.0
    %309 = vmatpush2.msra.mxu0 0.0
    %310 = vmatprep.subr.mxu0 0.0
    %311 = vmatpush2.msra.mxu0 0.0
    %312 = vmatprep.subr.mxu0 0.0
    %313 = vmatpush2.msra.mxu0 0.0
    %314 = vmatprep.subr.mxu0 0.0
    %315 = vmatpush2.msra.mxu0 0.0
    %316 = vmatprep.subr.mxu0 0.0
    %317 = vmatpush2.msra.mxu0 0.0
    %318 = vmatprep.subr.mxu0 0.0
    %319 = vmatpush2.msra.mxu0 0.0
    %320 = vmatprep.subr.mxu0 0.0
    %321 = vmatpush2.msra.mxu0 0.0
    %322 = vmatprep.mubr.f32.mxu0 0.0
    %323 = vmatmul.mubr.f32.gmra.mxu0 %v253
    %v324 = vpop.f32.mrf.mxu0
    %v325 = vadd.f32 %v250, %v324
    %v326 = vpop.f32.mrf.mxu0
    %327 = vmatprep.mubr.f32.mxu0 0.0
    %328 = vmatmul.mubr.f32.gmra.mxu0 %v256
    %v329 = vpop.f32.mrf.mxu0
    %v330 = vadd.f32 %v250, %v329
    %v331 = vpop.f32.mrf.mxu0
    %332 = vdwg.mxu0
    %v334 = vlaneseq
    %v335 = vshrl.u32 %v334, 7
    %v336 = vsub.s32 0, %v335
    %v337 = vrot.slane %v198, %v336
    %339 = vmatprep.subr.mxu0 0.0
    %340 = vmatpush1.msra.mxu0 0.0
    %341 = vmatprep.subr.mxu0 0.0
    %342 = vmatpush1.msra.mxu0 0.0
    %343 = vmatprep.subr.mxu0 0.0
    %344 = vmatpush1.msra.mxu0 0.0
    %345 = vmatprep.subr.mxu0 0.0
    %346 = vmatpush1.msra.mxu0 0.0
    %347 = vmatprep.subr.mxu0 0.0
    %348 = vmatpush1.msra.mxu0 0.0
    %349 = vmatprep.subr.mxu0 0.0
    %350 = vmatpush1.msra.mxu0 0.0
    %351 = vmatprep.subr.mxu0 0.0
    %352 = vmatpush1.msra.mxu0 0.0
    %353 = vmatprep.subr.mxu0 0.0
    %354 = vmatpush1.msra.mxu0 0.0
    %355 = vmatprep.subr.mxu0 0.0
    %356 = vmatpush1.msra.mxu0 0.0
    %357 = vmatprep.subr.mxu0 0.0
    %358 = vmatpush1.msra.mxu0 0.0
    %359 = vmatprep.subr.mxu0 0.0
    %360 = vmatpush1.msra.mxu0 0.0
    %361 = vmatprep.subr.mxu0 0.0
    %362 = vmatpush1.msra.mxu0 0.0
    %363 = vmatprep.subr.mxu0 0.0
    %364 = vmatpush1.msra.mxu0 %v188
    %365 = vmatprep.subr.mxu0 0.0
    %366 = vmatpush1.msra.mxu0 %v187
    %367 = vmatprep.subr.mxu0 0.0
    %368 = vmatpush1.msra.mxu0 %v186
    %369 = vmatprep.subr.mxu0 0.0
    %370 = vmatpush1.msra.mxu0 %v185
    %371 = vmatprep.subr.mxu0 0.0
    %372 = vmatpush2.msra.mxu0 0.0
    %373 = vmatprep.subr.mxu0 0.0
    %374 = vmatpush2.msra.mxu0 0.0
    %375 = vmatprep.subr.mxu0 0.0
    %376 = vmatpush2.msra.mxu0 0.0
    %377 = vmatprep.subr.mxu0 0.0
    %378 = vmatpush2.msra.mxu0 0.0
    %379 = vmatprep.subr.mxu0 0.0
    %380 = vmatpush2.msra.mxu0 0.0
    %381 = vmatprep.subr.mxu0 0.0
    %382 = vmatpush2.msra.mxu0 0.0
    %383 = vmatprep.subr.mxu0 0.0
    %384 = vmatpush2.msra.mxu0 0.0
    %385 = vmatprep.subr.mxu0 0.0
    %386 = vmatpush2.msra.mxu0 0.0
    %387 = vmatprep.subr.mxu0 0.0
    %388 = vmatpush2.msra.mxu0 0.0
    %389 = vmatprep.subr.mxu0 0.0
    %390 = vmatpush2.msra.mxu0 0.0
    %391 = vmatprep.subr.mxu0 0.0
    %392 = vmatpush2.msra.mxu0 0.0
    %393 = vmatprep.subr.mxu0 0.0
    %394 = vmatpush2.msra.mxu0 0.0
    %395 = vmatprep.subr.mxu0 0.0
    %396 = vmatpush2.msra.mxu0 0.0
    %397 = vmatprep.subr.mxu0 0.0
    %398 = vmatpush2.msra.mxu0 0.0
    %399 = vmatprep.subr.mxu0 0.0
    %400 = vmatpush2.msra.mxu0 0.0
    %401 = vmatprep.subr.mxu0 0.0
    %402 = vmatpush2.msra.mxu0 0.0
    %403 = vmatprep.mubr.f32.mxu0 0.0
    %404 = vmatmul.mubr.f32.gmra.mxu0 %v253
    %v405 = vpop.f32.mrf.mxu0
    %v406 = vadd.f32 %v337, %v405
    %v407 = vpop.f32.mrf.mxu0
    %408 = vmatprep.mubr.f32.mxu0 0.0
    %409 = vmatmul.mubr.f32.gmra.mxu0 %v256
    %v410 = vpop.f32.mrf.mxu0
    %v411 = vadd.f32 %v337, %v410
    %v412 = vpop.f32.mrf.mxu0
    %413 = vdwg.mxu0
    %v415 = vlaneseq
    %v416 = vshrl.u32 %v415, 7
    %v417 = vsub.s32 0, %v416
    %v418 = vrot.slane %v199, %v417
    %420 = vmatprep.subr.mxu0 0.0
    %421 = vmatpush1.msra.mxu0 0.0
    %422 = vmatprep.subr.mxu0 0.0
    %423 = vmatpush1.msra.mxu0 0.0
    %424 = vmatprep.subr.mxu0 0.0
    %425 = vmatpush1.msra.mxu0 0.0
    %426 = vmatprep.subr.mxu0 0.0
    %427 = vmatpush1.msra.mxu0 0.0
    %428 = vmatprep.subr.mxu0 0.0
    %429 = vmatpush1.msra.mxu0 0.0
    %430 = vmatprep.subr.mxu0 0.0
    %431 = vmatpush1.msra.mxu0 0.0
    %432 = vmatprep.subr.mxu0 0.0
    %433 = vmatpush1.msra.mxu0 0.0
    %434 = vmatprep.subr.mxu0 0.0
    %435 = vmatpush1.msra.mxu0 0.0
    %436 = vmatprep.subr.mxu0 0.0
    %437 = vmatpush1.msra.mxu0 0.0
    %438 = vmatprep.subr.mxu0 0.0
    %439 = vmatpush1.msra.mxu0 0.0
    %440 = vmatprep.subr.mxu0 0.0
    %441 = vmatpush1.msra.mxu0 0.0
    %442 = vmatprep.subr.mxu0 0.0
    %443 = vmatpush1.msra.mxu0 0.0
    %444 = vmatprep.subr.mxu0 0.0
    %445 = vmatpush1.msra.mxu0 %v192
    %446 = vmatprep.subr.mxu0 0.0
    %447 = vmatpush1.msra.mxu0 %v191
    %448 = vmatprep.subr.mxu0 0.0
    %449 = vmatpush1.msra.mxu0 %v190
    %450 = vmatprep.subr.mxu0 0.0
    %451 = vmatpush1.msra.mxu0 %v189
    %452 = vmatprep.subr.mxu0 0.0
    %453 = vmatpush2.msra.mxu0 0.0
    %454 = vmatprep.subr.mxu0 0.0
    %455 = vmatpush2.msra.mxu0 0.0
    %456 = vmatprep.subr.mxu0 0.0
    %457 = vmatpush2.msra.mxu0 0.0
    %458 = vmatprep.subr.mxu0 0.0
    %459 = vmatpush2.msra.mxu0 0.0
    %460 = vmatprep.subr.mxu0 0.0
    %461 = vmatpush2.msra.mxu0 0.0
    %462 = vmatprep.subr.mxu0 0.0
    %463 = vmatpush2.msra.mxu0 0.0
    %464 = vmatprep.subr.mxu0 0.0
    %465 = vmatpush2.msra.mxu0 0.0
    %466 = vmatprep.subr.mxu0 0.0
    %467 = vmatpush2.msra.mxu0 0.0
    %468 = vmatprep.subr.mxu0 0.0
    %469 = vmatpush2.msra.mxu0 0.0
    %470 = vmatprep.subr.mxu0 0.0
    %471 = vmatpush2.msra.mxu0 0.0
    %472 = vmatprep.subr.mxu0 0.0
    %473 = vmatpush2.msra.mxu0 0.0
    %474 = vmatprep.subr.mxu0 0.0
    %475 = vmatpush2.msra.mxu0 0.0
    %476 = vmatprep.subr.mxu0 0.0
    %477 = vmatpush2.msra.mxu0 0.0
    %478 = vmatprep.subr.mxu0 0.0
    %479 = vmatpush2.msra.mxu0 0.0
    %480 = vmatprep.subr.mxu0 0.0
    %481 = vmatpush2.msra.mxu0 0.0
    %482 = vmatprep.subr.mxu0 0.0
    %483 = vmatpush2.msra.mxu0 0.0
    %484 = vmatprep.mubr.f32.mxu0 0.0
    %485 = vmatmul.mubr.f32.gmra.mxu0 %v253
    %v486 = vpop.f32.mrf.mxu0
    %v487 = vadd.f32 %v418, %v486
    %v488 = vpop.f32.mrf.mxu0
    %489 = vmatprep.mubr.f32.mxu0 0.0
    %490 = vmatmul.mubr.f32.gmra.mxu0 %v256
    %v491 = vpop.f32.mrf.mxu0
    %v492 = vadd.f32 %v418, %v491
    %v493 = vpop.f32.mrf.mxu0
    %494 = vdwg.mxu0
    %v496 = vlaneseq
    %v497 = vshrl.u32 %v496, 7
    %v498 = vsub.s32 0, %v497
    %v499 = vrot.slane %v200, %v498
    %501 = vmatprep.subr.mxu0 0.0
    %502 = vmatpush1.msra.mxu0 0.0
    %503 = vmatprep.subr.mxu0 0.0
    %504 = vmatpush1.msra.mxu0 0.0
    %505 = vmatprep.subr.mxu0 0.0
    %506 = vmatpush1.msra.mxu0 0.0
    %507 = vmatprep.subr.mxu0 0.0
    %508 = vmatpush1.msra.mxu0 0.0
    %509 = vmatprep.subr.mxu0 0.0
    %510 = vmatpush1.msra.mxu0 0.0
    %511 = vmatprep.subr.mxu0 0.0
    %512 = vmatpush1.msra.mxu0 0.0
    %513 = vmatprep.subr.mxu0 0.0
    %514 = vmatpush1.msra.mxu0 0.0
    %515 = vmatprep.subr.mxu0 0.0
    %516 = vmatpush1.msra.mxu0 0.0
    %517 = vmatprep.subr.mxu0 0.0
    %518 = vmatpush1.msra.mxu0 0.0
    %519 = vmatprep.subr.mxu0 0.0
    %520 = vmatpush1.msra.mxu0 0.0
    %521 = vmatprep.subr.mxu0 0.0
    %522 = vmatpush1.msra.mxu0 0.0
    %523 = vmatprep.subr.mxu0 0.0
    %524 = vmatpush1.msra.mxu0 0.0
    %525 = vmatprep.subr.mxu0 0.0
    %526 = vmatpush1.msra.mxu0 %v196
    %527 = vmatprep.subr.mxu0 0.0
    %528 = vmatpush1.msra.mxu0 %v195
    %529 = vmatprep.subr.mxu0 0.0
    %530 = vmatpush1.msra.mxu0 %v194
    %531 = vmatprep.subr.mxu0 0.0
    %532 = vmatpush1.msra.mxu0 %v193
    %533 = vmatprep.subr.mxu0 0.0
    %534 = vmatpush2.msra.mxu0 0.0
    %535 = vmatprep.subr.mxu0 0.0
    %536 = vmatpush2.msra.mxu0 0.0
    %537 = vmatprep.subr.mxu0 0.0
    %538 = vmatpush2.msra.mxu0 0.0
    %539 = vmatprep.subr.mxu0 0.0
    %540 = vmatpush2.msra.mxu0 0.0
    %541 = vmatprep.subr.mxu0 0.0
    %542 = vmatpush2.msra.mxu0 0.0
    %543 = vmatprep.subr.mxu0 0.0
    %544 = vmatpush2.msra.mxu0 0.0
    %545 = vmatprep.subr.mxu0 0.0
    %546 = vmatpush2.msra.mxu0 0.0
    %547 = vmatprep.subr.mxu0 0.0
    %548 = vmatpush2.msra.mxu0 0.0
    %549 = vmatprep.subr.mxu0 0.0
    %550 = vmatpush2.msra.mxu0 0.0
    %551 = vmatprep.subr.mxu0 0.0
    %552 = vmatpush2.msra.mxu0 0.0
    %553 = vmatprep.subr.mxu0 0.0
    %554 = vmatpush2.msra.mxu0 0.0
    %555 = vmatprep.subr.mxu0 0.0
    %556 = vmatpush2.msra.mxu0 0.0
    %557 = vmatprep.subr.mxu0 0.0
    %558 = vmatpush2.msra.mxu0 0.0
    %559 = vmatprep.subr.mxu0 0.0
    %560 = vmatpush2.msra.mxu0 0.0
    %561 = vmatprep.subr.mxu0 0.0
    %562 = vmatpush2.msra.mxu0 0.0
    %563 = vmatprep.subr.mxu0 0.0
    %564 = vmatpush2.msra.mxu0 0.0
    %565 = vmatprep.mubr.f32.mxu0 0.0
    %566 = vmatmul.mubr.f32.gmra.mxu0 %v253
    %v567 = vpop.f32.mrf.mxu0
    %v568 = vadd.f32 %v499, %v567
    %v569 = vpop.f32.mrf.mxu0
    %570 = vmatprep.mubr.f32.mxu0 0.0
    %571 = vmatmul.mubr.f32.gmra.mxu0 %v256
    %v572 = vpop.f32.mrf.mxu0
    %v573 = vadd.f32 %v499, %v572
    %v574 = vpop.f32.mrf.mxu0
    %575 = vdwg.mxu0
    %v577 = vlaneseq
    %v578 = vshrl.u32 %v577, 7
    %v579 = vsub.s32 0, %v578
    %v580 = vrot.slane %v217, %v579
    %582 = vmatprep.subr.mxu0 0.0
    %583 = vmatpush1.msra.mxu0 0.0
    %584 = vmatprep.subr.mxu0 0.0
    %585 = vmatpush1.msra.mxu0 0.0
    %586 = vmatprep.subr.mxu0 0.0
    %587 = vmatpush1.msra.mxu0 0.0
    %588 = vmatprep.subr.mxu0 0.0
    %589 = vmatpush1.msra.mxu0 0.0
    %590 = vmatprep.subr.mxu0 0.0
    %591 = vmatpush1.msra.mxu0 0.0
    %592 = vmatprep.subr.mxu0 0.0
    %593 = vmatpush1.msra.mxu0 0.0
    %594 = vmatprep.subr.mxu0 0.0
    %595 = vmatpush1.msra.mxu0 0.0
    %596 = vmatprep.subr.mxu0 0.0
    %597 = vmatpush1.msra.mxu0 0.0
    %598 = vmatprep.subr.mxu0 0.0
    %599 = vmatpush1.msra.mxu0 0.0
    %600 = vmatprep.subr.mxu0 0.0
    %601 = vmatpush1.msra.mxu0 0.0
    %602 = vmatprep.subr.mxu0 0.0
    %603 = vmatpush1.msra.mxu0 0.0
    %604 = vmatprep.subr.mxu0 0.0
    %605 = vmatpush1.msra.mxu0 0.0
    %606 = vmatprep.subr.mxu0 0.0
    %607 = vmatpush1.msra.mxu0 %v204
    %608 = vmatprep.subr.mxu0 0.0
    %609 = vmatpush1.msra.mxu0 %v203
    %610 = vmatprep.subr.mxu0 0.0
    %611 = vmatpush1.msra.mxu0 %v202
    %612 = vmatprep.subr.mxu0 0.0
    %613 = vmatpush1.msra.mxu0 %v201
    %614 = vmatprep.subr.mxu0 0.0
    %615 = vmatpush2.msra.mxu0 0.0
    %616 = vmatprep.subr.mxu0 0.0
    %617 = vmatpush2.msra.mxu0 0.0
    %618 = vmatprep.subr.mxu0 0.0
    %619 = vmatpush2.msra.mxu0 0.0
    %620 = vmatprep.subr.mxu0 0.0
    %621 = vmatpush2.msra.mxu0 0.0
    %622 = vmatprep.subr.mxu0 0.0
    %623 = vmatpush2.msra.mxu0 0.0
    %624 = vmatprep.subr.mxu0 0.0
    %625 = vmatpush2.msra.mxu0 0.0
    %626 = vmatprep.subr.mxu0 0.0
    %627 = vmatpush2.msra.mxu0 0.0
    %628 = vmatprep.subr.mxu0 0.0
    %629 = vmatpush2.msra.mxu0 0.0
    %630 = vmatprep.subr.mxu0 0.0
    %631 = vmatpush2.msra.mxu0 0.0
    %632 = vmatprep.subr.mxu0 0.0
    %633 = vmatpush2.msra.mxu0 0.0
    %634 = vmatprep.subr.mxu0 0.0
    %635 = vmatpush2.msra.mxu0 0.0
    %636 = vmatprep.subr.mxu0 0.0
    %637 = vmatpush2.msra.mxu0 0.0
    %638 = vmatprep.subr.mxu0 0.0
    %639 = vmatpush2.msra.mxu0 0.0
    %640 = vmatprep.subr.mxu0 0.0
    %641 = vmatpush2.msra.mxu0 0.0
    %642 = vmatprep.subr.mxu0 0.0
    %643 = vmatpush2.msra.mxu0 0.0
    %644 = vmatprep.subr.mxu0 0.0
    %645 = vmatpush2.msra.mxu0 0.0
    %646 = vmatprep.mubr.f32.mxu0 0.0
    %647 = vmatmul.mubr.f32.gmra.mxu0 %v253
    %v648 = vpop.f32.mrf.mxu0
    %v649 = vadd.f32 %v580, %v648
    %v650 = vpop.f32.mrf.mxu0
    %651 = vmatprep.mubr.f32.mxu0 0.0
    %652 = vmatmul.mubr.f32.gmra.mxu0 %v256
    %v653 = vpop.f32.mrf.mxu0
    %v654 = vadd.f32 %v580, %v653
    %v655 = vpop.f32.mrf.mxu0
    %656 = vdwg.mxu0
    %v658 = vlaneseq
    %v659 = vshrl.u32 %v658, 7
    %v660 = vsub.s32 0, %v659
    %v661 = vrot.slane %v218, %v660
    %663 = vmatprep.subr.mxu0 0.0
    %664 = vmatpush1.msra.mxu0 0.0
    %665 = vmatprep.subr.mxu0 0.0
    %666 = vmatpush1.msra.mxu0 0.0
    %667 = vmatprep.subr.mxu0 0.0
    %668 = vmatpush1.msra.mxu0 0.0
    %669 = vmatprep.subr.mxu0 0.0
    %670 = vmatpush1.msra.mxu0 0.0
    %671 = vmatprep.subr.mxu0 0.0
    %672 = vmatpush1.msra.mxu0 0.0
    %673 = vmatprep.subr.mxu0 0.0
    %674 = vmatpush1.msra.mxu0 0.0
    %675 = vmatprep.subr.mxu0 0.0
    %676 = vmatpush1.msra.mxu0 0.0
    %677 = vmatprep.subr.mxu0 0.0
    %678 = vmatpush1.msra.mxu0 0.0
    %679 = vmatprep.subr.mxu0 0.0
    %680 = vmatpush1.msra.mxu0 0.0
    %681 = vmatprep.subr.mxu0 0.0
    %682 = vmatpush1.msra.mxu0 0.0
    %683 = vmatprep.subr.mxu0 0.0
    %684 = vmatpush1.msra.mxu0 0.0
    %685 = vmatprep.subr.mxu0 0.0
    %686 = vmatpush1.msra.mxu0 0.0
    %687 = vmatprep.subr.mxu0 0.0
    %688 = vmatpush1.msra.mxu0 %v208
    %689 = vmatprep.subr.mxu0 0.0
    %690 = vmatpush1.msra.mxu0 %v207
    %691 = vmatprep.subr.mxu0 0.0
    %692 = vmatpush1.msra.mxu0 %v206
    %693 = vmatprep.subr.mxu0 0.0
    %694 = vmatpush1.msra.mxu0 %v205
    %695 = vmatprep.subr.mxu0 0.0
    %696 = vmatpush2.msra.mxu0 0.0
    %697 = vmatprep.subr.mxu0 0.0
    %698 = vmatpush2.msra.mxu0 0.0
    %699 = vmatprep.subr.mxu0 0.0
    %700 = vmatpush2.msra.mxu0 0.0
    %701 = vmatprep.subr.mxu0 0.0
    %702 = vmatpush2.msra.mxu0 0.0
    %703 = vmatprep.subr.mxu0 0.0
    %704 = vmatpush2.msra.mxu0 0.0
    %705 = vmatprep.subr.mxu0 0.0
    %706 = vmatpush2.msra.mxu0 0.0
    %707 = vmatprep.subr.mxu0 0.0
    %708 = vmatpush2.msra.mxu0 0.0
    %709 = vmatprep.subr.mxu0 0.0
    %710 = vmatpush2.msra.mxu0 0.0
    %711 = vmatprep.subr.mxu0 0.0
    %712 = vmatpush2.msra.mxu0 0.0
    %713 = vmatprep.subr.mxu0 0.0
    %714 = vmatpush2.msra.mxu0 0.0
    %715 = vmatprep.subr.mxu0 0.0
    %716 = vmatpush2.msra.mxu0 0.0
    %717 = vmatprep.subr.mxu0 0.0
    %718 = vmatpush2.msra.mxu0 0.0
    %719 = vmatprep.subr.mxu0 0.0
    %720 = vmatpush2.msra.mxu0 0.0
    %721 = vmatprep.subr.mxu0 0.0
    %722 = vmatpush2.msra.mxu0 0.0
    %723 = vmatprep.subr.mxu0 0.0
    %724 = vmatpush2.msra.mxu0 0.0
    %725 = vmatprep.subr.mxu0 0.0
    %726 = vmatpush2.msra.mxu0 0.0
    %727 = vmatprep.mubr.f32.mxu0 0.0
    %728 = vmatmul.mubr.f32.gmra.mxu0 %v253
    %v729 = vpop.f32.mrf.mxu0
    %v730 = vadd.f32 %v661, %v729
    %v731 = vpop.f32.mrf.mxu0
    %732 = vmatprep.mubr.f32.mxu0 0.0
    %733 = vmatmul.mubr.f32.gmra.mxu0 %v256
    %v734 = vpop.f32.mrf.mxu0
    %v735 = vadd.f32 %v661, %v734
    %v736 = vpop.f32.mrf.mxu0
    %737 = vdwg.mxu0
    %v739 = vlaneseq
    %v740 = vshrl.u32 %v739, 7
    %v741 = vsub.s32 0, %v740
    %v742 = vrot.slane %v219, %v741
    %744 = vmatprep.subr.mxu0 0.0
    %745 = vmatpush1.msra.mxu0 0.0
    %746 = vmatprep.subr.mxu0 0.0
    %747 = vmatpush1.msra.mxu0 0.0
    %748 = vmatprep.subr.mxu0 0.0
    %749 = vmatpush1.msra.mxu0 0.0
    %750 = vmatprep.subr.mxu0 0.0
    %751 = vmatpush1.msra.mxu0 0.0
    %752 = vmatprep.subr.mxu0 0.0
    %753 = vmatpush1.msra.mxu0 0.0
    %754 = vmatprep.subr.mxu0 0.0
    %755 = vmatpush1.msra.mxu0 0.0
    %756 = vmatprep.subr.mxu0 0.0
    %757 = vmatpush1.msra.mxu0 0.0
    %758 = vmatprep.subr.mxu0 0.0
    %759 = vmatpush1.msra.mxu0 0.0
    %760 = vmatprep.subr.mxu0 0.0
    %761 = vmatpush1.msra.mxu0 0.0
    %762 = vmatprep.subr.mxu0 0.0
    %763 = vmatpush1.msra.mxu0 0.0
    %764 = vmatprep.subr.mxu0 0.0
    %765 = vmatpush1.msra.mxu0 0.0
    %766 = vmatprep.subr.mxu0 0.0
    %767 = vmatpush1.msra.mxu0 0.0
    %768 = vmatprep.subr.mxu0 0.0
    %769 = vmatpush1.msra.mxu0 %v212
    %770 = vmatprep.subr.mxu0 0.0
    %771 = vmatpush1.msra.mxu0 %v211
    %772 = vmatprep.subr.mxu0 0.0
    %773 = vmatpush1.msra.mxu0 %v210
    %774 = vmatprep.subr.mxu0 0.0
    %775 = vmatpush1.msra.mxu0 %v209
    %776 = vmatprep.subr.mxu0 0.0
    %777 = vmatpush2.msra.mxu0 0.0
    %778 = vmatprep.subr.mxu0 0.0
    %779 = vmatpush2.msra.mxu0 0.0
    %780 = vmatprep.subr.mxu0 0.0
    %781 = vmatpush2.msra.mxu0 0.0
    %782 = vmatprep.subr.mxu0 0.0
    %783 = vmatpush2.msra.mxu0 0.0
    %784 = vmatprep.subr.mxu0 0.0
    %785 = vmatpush2.msra.mxu0 0.0
    %786 = vmatprep.subr.mxu0 0.0
    %787 = vmatpush2.msra.mxu0 0.0
    %788 = vmatprep.subr.mxu0 0.0
    %789 = vmatpush2.msra.mxu0 0.0
    %790 = vmatprep.subr.mxu0 0.0
    %791 = vmatpush2.msra.mxu0 0.0
    %792 = vmatprep.subr.mxu0 0.0
    %793 = vmatpush2.msra.mxu0 0.0
    %794 = vmatprep.subr.mxu0 0.0
    %795 = vmatpush2.msra.mxu0 0.0
    %796 = vmatprep.subr.mxu0 0.0
    %797 = vmatpush2.msra.mxu0 0.0
    %798 = vmatprep.subr.mxu0 0.0
    %799 = vmatpush2.msra.mxu0 0.0
    %800 = vmatprep.subr.mxu0 0.0
    %801 = vmatpush2.msra.mxu0 0.0
    %802 = vmatprep.subr.mxu0 0.0
    %803 = vmatpush2.msra.mxu0 0.0
    %804 = vmatprep.subr.mxu0 0.0
    %805 = vmatpush2.msra.mxu0 0.0
    %806 = vmatprep.subr.mxu0 0.0
    %807 = vmatpush2.msra.mxu0 0.0
    %808 = vmatprep.mubr.f32.mxu0 0.0
    %809 = vmatmul.mubr.f32.gmra.mxu0 %v253
    %v810 = vpop.f32.mrf.mxu0
    %v811 = vadd.f32 %v742, %v810
    %v812 = vpop.f32.mrf.mxu0
    %813 = vmatprep.mubr.f32.mxu0 0.0
    %814 = vmatmul.mubr.f32.gmra.mxu0 %v256
    %v815 = vpop.f32.mrf.mxu0
    %v816 = vadd.f32 %v742, %v815
    %v817 = vpop.f32.mrf.mxu0
    %818 = vdwg.mxu0
    %v820 = vlaneseq
    %v821 = vshrl.u32 %v820, 7
    %v822 = vsub.s32 0, %v821
    %v823 = vrot.slane %v220, %v822
    %825 = vmatprep.subr.mxu0 0.0
    %826 = vmatpush1.msra.mxu0 0.0
    %827 = vmatprep.subr.mxu0 0.0
    %828 = vmatpush1.msra.mxu0 0.0
    %829 = vmatprep.subr.mxu0 0.0
    %830 = vmatpush1.msra.mxu0 0.0
    %831 = vmatprep.subr.mxu0 0.0
    %832 = vmatpush1.msra.mxu0 0.0
    %833 = vmatprep.subr.mxu0 0.0
    %834 = vmatpush1.msra.mxu0 0.0
    %835 = vmatprep.subr.mxu0 0.0
    %836 = vmatpush1.msra.mxu0 0.0
    %837 = vmatprep.subr.mxu0 0.0
    %838 = vmatpush1.msra.mxu0 0.0
    %839 = vmatprep.subr.mxu0 0.0
    %840 = vmatpush1.msra.mxu0 0.0
    %841 = vmatprep.subr.mxu0 0.0
    %842 = vmatpush1.msra.mxu0 0.0
    %843 = vmatprep.subr.mxu0 0.0
    %844 = vmatpush1.msra.mxu0 0.0
    %845 = vmatprep.subr.mxu0 0.0
    %846 = vmatpush1.msra.mxu0 0.0
    %847 = vmatprep.subr.mxu0 0.0
    %848 = vmatpush1.msra.mxu0 0.0
    %849 = vmatprep.subr.mxu0 0.0
    %850 = vmatpush1.msra.mxu0 %v216
    %851 = vmatprep.subr.mxu0 0.0
    %852 = vmatpush1.msra.mxu0 %v215
    %853 = vmatprep.subr.mxu0 0.0
    %854 = vmatpush1.msra.mxu0 %v214
    %855 = vmatprep.subr.mxu0 0.0
    %856 = vmatpush1.msra.mxu0 %v213
    %857 = vmatprep.subr.mxu0 0.0
    %858 = vmatpush2.msra.mxu0 0.0
    %859 = vmatprep.subr.mxu0 0.0
    %860 = vmatpush2.msra.mxu0 0.0
    %861 = vmatprep.subr.mxu0 0.0
    %862 = vmatpush2.msra.mxu0 0.0
    %863 = vmatprep.subr.mxu0 0.0
    %864 = vmatpush2.msra.mxu0 0.0
    %865 = vmatprep.subr.mxu0 0.0
    %866 = vmatpush2.msra.mxu0 0.0
    %867 = vmatprep.subr.mxu0 0.0
    %868 = vmatpush2.msra.mxu0 0.0
    %869 = vmatprep.subr.mxu0 0.0
    %870 = vmatpush2.msra.mxu0 0.0
    %871 = vmatprep.subr.mxu0 0.0
    %872 = vmatpush2.msra.mxu0 0.0
    %873 = vmatprep.subr.mxu0 0.0
    %874 = vmatpush2.msra.mxu0 0.0
    %875 = vmatprep.subr.mxu0 0.0
    %876 = vmatpush2.msra.mxu0 0.0
    %877 = vmatprep.subr.mxu0 0.0
    %878 = vmatpush2.msra.mxu0 0.0
    %879 = vmatprep.subr.mxu0 0.0
    %880 = vmatpush2.msra.mxu0 0.0
    %881 = vmatprep.subr.mxu0 0.0
    %882 = vmatpush2.msra.mxu0 0.0
    %883 = vmatprep.subr.mxu0 0.0
    %884 = vmatpush2.msra.mxu0 0.0
    %885 = vmatprep.subr.mxu0 0.0
    %886 = vmatpush2.msra.mxu0 0.0
    %887 = vmatprep.subr.mxu0 0.0
    %888 = vmatpush2.msra.mxu0 0.0
    %889 = vmatprep.mubr.f32.mxu0 0.0
    %890 = vmatmul.mubr.f32.gmra.mxu0 %v253
    %v891 = vpop.f32.mrf.mxu0
    %v892 = vadd.f32 %v823, %v891
    %v893 = vpop.f32.mrf.mxu0
    %894 = vmatprep.mubr.f32.mxu0 0.0
    %895 = vmatmul.mubr.f32.gmra.mxu0 %v256
    %v896 = vpop.f32.mrf.mxu0
    %v897 = vadd.f32 %v823, %v896
    %v898 = vpop.f32.mrf.mxu0
    %899 = vdwg.mxu0
    %v901 = vlaneseq
    %v902 = vshrl.u32 %v901, 7
    %v903 = vsub.s32 0, %v902
    %v904 = vrot.slane %v237, %v903
    %906 = vmatprep.subr.mxu0 0.0
    %907 = vmatpush1.msra.mxu0 0.0
    %908 = vmatprep.subr.mxu0 0.0
    %909 = vmatpush1.msra.mxu0 0.0
    %910 = vmatprep.subr.mxu0 0.0
    %911 = vmatpush1.msra.mxu0 0.0
    %912 = vmatprep.subr.mxu0 0.0
    %913 = vmatpush1.msra.mxu0 0.0
    %914 = vmatprep.subr.mxu0 0.0
    %915 = vmatpush1.msra.mxu0 0.0
    %916 = vmatprep.subr.mxu0 0.0
    %917 = vmatpush1.msra.mxu0 0.0
    %918 = vmatprep.subr.mxu0 0.0
    %919 = vmatpush1.msra.mxu0 0.0
    %920 = vmatprep.subr.mxu0 0.0
    %921 = vmatpush1.msra.mxu0 0.0
    %922 = vmatprep.subr.mxu0 0.0
    %923 = vmatpush1.msra.mxu0 0.0
    %924 = vmatprep.subr.mxu0 0.0
    %925 = vmatpush1.msra.mxu0 0.0
    %926 = vmatprep.subr.mxu0 0.0
    %927 = vmatpush1.msra.mxu0 0.0
    %928 = vmatprep.subr.mxu0 0.0
    %929 = vmatpush1.msra.mxu0 0.0
    %930 = vmatprep.subr.mxu0 0.0
    %931 = vmatpush1.msra.mxu0 %v224
    %932 = vmatprep.subr.mxu0 0.0
    %933 = vmatpush1.msra.mxu0 %v223
    %934 = vmatprep.subr.mxu0 0.0
    %935 = vmatpush1.msra.mxu0 %v222
    %936 = vmatprep.subr.mxu0 0.0
    %937 = vmatpush1.msra.mxu0 %v221
    %938 = vmatprep.subr.mxu0 0.0
    %939 = vmatpush2.msra.mxu0 0.0
    %940 = vmatprep.subr.mxu0 0.0
    %941 = vmatpush2.msra.mxu0 0.0
    %942 = vmatprep.subr.mxu0 0.0
    %943 = vmatpush2.msra.mxu0 0.0
    %944 = vmatprep.subr.mxu0 0.0
    %945 = vmatpush2.msra.mxu0 0.0
    %946 = vmatprep.subr.mxu0 0.0
    %947 = vmatpush2.msra.mxu0 0.0
    %948 = vmatprep.subr.mxu0 0.0
    %949 = vmatpush2.msra.mxu0 0.0
    %950 = vmatprep.subr.mxu0 0.0
    %951 = vmatpush2.msra.mxu0 0.0
    %952 = vmatprep.subr.mxu0 0.0
    %953 = vmatpush2.msra.mxu0 0.0
    %954 = vmatprep.subr.mxu0 0.0
    %955 = vmatpush2.msra.mxu0 0.0
    %956 = vmatprep.subr.mxu0 0.0
    %957 = vmatpush2.msra.mxu0 0.0
    %958 = vmatprep.subr.mxu0 0.0
    %959 = vmatpush2.msra.mxu0 0.0
    %960 = vmatprep.subr.mxu0 0.0
    %961 = vmatpush2.msra.mxu0 0.0
    %962 = vmatprep.subr.mxu0 0.0
    %963 = vmatpush2.msra.mxu0 0.0
    %964 = vmatprep.subr.mxu0 0.0
    %965 = vmatpush2.msra.mxu0 0.0
    %966 = vmatprep.subr.mxu0 0.0
    %967 = vmatpush2.msra.mxu0 0.0
    %968 = vmatprep.subr.mxu0 0.0
    %969 = vmatpush2.msra.mxu0 0.0
    %970 = vmatprep.mubr.f32.mxu0 0.0
    %971 = vmatmul.mubr.f32.gmra.mxu0 %v253
    %v972 = vpop.f32.mrf.mxu0
    %v973 = vadd.f32 %v904, %v972
    %v974 = vpop.f32.mrf.mxu0
    %975 = vmatprep.mubr.f32.mxu0 0.0
    %976 = vmatmul.mubr.f32.gmra.mxu0 %v256
    %v977 = vpop.f32.mrf.mxu0
    %v978 = vadd.f32 %v904, %v977
    %v979 = vpop.f32.mrf.mxu0
    %980 = vdwg.mxu0
    %v982 = vlaneseq
    %v983 = vshrl.u32 %v982, 7
    %v984 = vsub.s32 0, %v983
    %v985 = vrot.slane %v238, %v984
    %987 = vmatprep.subr.mxu0 0.0
    %988 = vmatpush1.msra.mxu0 0.0
    %989 = vmatprep.subr.mxu0 0.0
    %990 = vmatpush1.msra.mxu0 0.0
    %991 = vmatprep.subr.mxu0 0.0
    %992 = vmatpush1.msra.mxu0 0.0
    %993 = vmatprep.subr.mxu0 0.0
    %994 = vmatpush1.msra.mxu0 0.0
    %995 = vmatprep.subr.mxu0 0.0
    %996 = vmatpush1.msra.mxu0 0.0
    %997 = vmatprep.subr.mxu0 0.0
    %998 = vmatpush1.msra.mxu0 0.0
    %999 = vmatprep.subr.mxu0 0.0
    %1000 = vmatpush1.msra.mxu0 0.0
    %1001 = vmatprep.subr.mxu0 0.0
    %1002 = vmatpush1.msra.mxu0 0.0
    %1003 = vmatprep.subr.mxu0 0.0
    %1004 = vmatpush1.msra.mxu0 0.0
    %1005 = vmatprep.subr.mxu0 0.0
    %1006 = vmatpush1.msra.mxu0 0.0
    %1007 = vmatprep.subr.mxu0 0.0
    %1008 = vmatpush1.msra.mxu0 0.0
    %1009 = vmatprep.subr.mxu0 0.0
    %1010 = vmatpush1.msra.mxu0 0.0
    %1011 = vmatprep.subr.mxu0 0.0
    %1012 = vmatpush1.msra.mxu0 %v228
    %1013 = vmatprep.subr.mxu0 0.0
    %1014 = vmatpush1.msra.mxu0 %v227
    %1015 = vmatprep.subr.mxu0 0.0
    %1016 = vmatpush1.msra.mxu0 %v226
    %1017 = vmatprep.subr.mxu0 0.0
    %1018 = vmatpush1.msra.mxu0 %v225
    %1019 = vmatprep.subr.mxu0 0.0
    %1020 = vmatpush2.msra.mxu0 0.0
    %1021 = vmatprep.subr.mxu0 0.0
    %1022 = vmatpush2.msra.mxu0 0.0
    %1023 = vmatprep.subr.mxu0 0.0
    %1024 = vmatpush2.msra.mxu0 0.0
    %1025 = vmatprep.subr.mxu0 0.0
    %1026 = vmatpush2.msra.mxu0 0.0
    %1027 = vmatprep.subr.mxu0 0.0
    %1028 = vmatpush2.msra.mxu0 0.0
    %1029 = vmatprep.subr.mxu0 0.0
    %1030 = vmatpush2.msra.mxu0 0.0
    %1031 = vmatprep.subr.mxu0 0.0
    %1032 = vmatpush2.msra.mxu0 0.0
    %1033 = vmatprep.subr.mxu0 0.0
    %1034 = vmatpush2.msra.mxu0 0.0
    %1035 = vmatprep.subr.mxu0 0.0
    %1036 = vmatpush2.msra.mxu0 0.0
    %1037 = vmatprep.subr.mxu0 0.0
    %1038 = vmatpush2.msra.mxu0 0.0
    %1039 = vmatprep.subr.mxu0 0.0
    %1040 = vmatpush2.msra.mxu0 0.0
    %1041 = vmatprep.subr.mxu0 0.0
    %1042 = vmatpush2.msra.mxu0 0.0
    %1043 = vmatprep.subr.mxu0 0.0
    %1044 = vmatpush2.msra.mxu0 0.0
    %1045 = vmatprep.subr.mxu0 0.0
    %1046 = vmatpush2.msra.mxu0 0.0
    %1047 = vmatprep.subr.mxu0 0.0
    %1048 = vmatpush2.msra.mxu0 0.0
    %1049 = vmatprep.subr.mxu0 0.0
    %1050 = vmatpush2.msra.mxu0 0.0
    %1051 = vmatprep.mubr.f32.mxu0 0.0
    %1052 = vmatmul.mubr.f32.gmra.mxu0 %v253
    %v1053 = vpop.f32.mrf.mxu0
    %v1054 = vadd.f32 %v985, %v1053
    %v1055 = vpop.f32.mrf.mxu0
    %1056 = vmatprep.mubr.f32.mxu0 0.0
    %1057 = vmatmul.mubr.f32.gmra.mxu0 %v256
    %v1058 = vpop.f32.mrf.mxu0
    %v1059 = vadd.f32 %v985, %v1058
    %v1060 = vpop.f32.mrf.mxu0
    %1061 = vdwg.mxu0
    %v1063 = vlaneseq
    %v1064 = vshrl.u32 %v1063, 7
    %v1065 = vsub.s32 0, %v1064
    %v1066 = vrot.slane %v239, %v1065
    %1068 = vmatprep.subr.mxu0 0.0
    %1069 = vmatpush1.msra.mxu0 0.0
    %1070 = vmatprep.subr.mxu0 0.0
    %1071 = vmatpush1.msra.mxu0 0.0
    %1072 = vmatprep.subr.mxu0 0.0
    %1073 = vmatpush1.msra.mxu0 0.0
    %1074 = vmatprep.subr.mxu0 0.0
    %1075 = vmatpush1.msra.mxu0 0.0
    %1076 = vmatprep.subr.mxu0 0.0
    %1077 = vmatpush1.msra.mxu0 0.0
    %1078 = vmatprep.subr.mxu0 0.0
    %1079 = vmatpush1.msra.mxu0 0.0
    %1080 = vmatprep.subr.mxu0 0.0
    %1081 = vmatpush1.msra.mxu0 0.0
    %1082 = vmatprep.subr.mxu0 0.0
    %1083 = vmatpush1.msra.mxu0 0.0
    %1084 = vmatprep.subr.mxu0 0.0
    %1085 = vmatpush1.msra.mxu0 0.0
    %1086 = vmatprep.subr.mxu0 0.0
    %1087 = vmatpush1.msra.mxu0 0.0
    %1088 = vmatprep.subr.mxu0 0.0
    %1089 = vmatpush1.msra.mxu0 0.0
    %1090 = vmatprep.subr.mxu0 0.0
    %1091 = vmatpush1.msra.mxu0 0.0
    %1092 = vmatprep.subr.mxu0 0.0
    %1093 = vmatpush1.msra.mxu0 %v232
    %1094 = vmatprep.subr.mxu0 0.0
    %1095 = vmatpush1.msra.mxu0 %v231
    %1096 = vmatprep.subr.mxu0 0.0
    %1097 = vmatpush1.msra.mxu0 %v230
    %1098 = vmatprep.subr.mxu0 0.0
    %1099 = vmatpush1.msra.mxu0 %v229
    %1100 = vmatprep.subr.mxu0 0.0
    %1101 = vmatpush2.msra.mxu0 0.0
    %1102 = vmatprep.subr.mxu0 0.0
    %1103 = vmatpush2.msra.mxu0 0.0
    %1104 = vmatprep.subr.mxu0 0.0
    %1105 = vmatpush2.msra.mxu0 0.0
    %1106 = vmatprep.subr.mxu0 0.0
    %1107 = vmatpush2.msra.mxu0 0.0
    %1108 = vmatprep.subr.mxu0 0.0
    %1109 = vmatpush2.msra.mxu0 0.0
    %1110 = vmatprep.subr.mxu0 0.0
    %1111 = vmatpush2.msra.mxu0 0.0
    %1112 = vmatprep.subr.mxu0 0.0
    %1113 = vmatpush2.msra.mxu0 0.0
    %1114 = vmatprep.subr.mxu0 0.0
    %1115 = vmatpush2.msra.mxu0 0.0
    %1116 = vmatprep.subr.mxu0 0.0
    %1117 = vmatpush2.msra.mxu0 0.0
    %1118 = vmatprep.subr.mxu0 0.0
    %1119 = vmatpush2.msra.mxu0 0.0
    %1120 = vmatprep.subr.mxu0 0.0
    %1121 = vmatpush2.msra.mxu0 0.0
    %1122 = vmatprep.subr.mxu0 0.0
    %1123 = vmatpush2.msra.mxu0 0.0
    %1124 = vmatprep.subr.mxu0 0.0
    %1125 = vmatpush2.msra.mxu0 0.0
    %1126 = vmatprep.subr.mxu0 0.0
    %1127 = vmatpush2.msra.mxu0 0.0
    %1128 = vmatprep.subr.mxu0 0.0
    %1129 = vmatpush2.msra.mxu0 0.0
    %1130 = vmatprep.subr.mxu0 0.0
    %1131 = vmatpush2.msra.mxu0 0.0
    %1132 = vmatprep.mubr.f32.mxu0 0.0
    %1133 = vmatmul.mubr.f32.gmra.mxu0 %v253
    %v1134 = vpop.f32.mrf.mxu0
    %v1135 = vadd.f32 %v1066, %v1134
    %v1136 = vpop.f32.mrf.mxu0
    %1137 = vmatprep.mubr.f32.mxu0 0.0
    %1138 = vmatmul.mubr.f32.gmra.mxu0 %v256
    %v1139 = vpop.f32.mrf.mxu0
    %v1140 = vadd.f32 %v1066, %v1139
    %v1141 = vpop.f32.mrf.mxu0
    %1142 = vdwg.mxu0
    %v1144 = vlaneseq
    %v1145 = vshrl.u32 %v1144, 7
    %v1146 = vsub.s32 0, %v1145
    %v1147 = vrot.slane %v240, %v1146
    %1149 = vmatprep.subr.mxu0 0.0
    %1150 = vmatpush1.msra.mxu0 0.0
    %1151 = vmatprep.subr.mxu0 0.0
    %1152 = vmatpush1.msra.mxu0 0.0
    %1153 = vmatprep.subr.mxu0 0.0
    %1154 = vmatpush1.msra.mxu0 0.0
    %1155 = vmatprep.subr.mxu0 0.0
    %1156 = vmatpush1.msra.mxu0 0.0
    %1157 = vmatprep.subr.mxu0 0.0
    %1158 = vmatpush1.msra.mxu0 0.0
    %1159 = vmatprep.subr.mxu0 0.0
    %1160 = vmatpush1.msra.mxu0 0.0
    %1161 = vmatprep.subr.mxu0 0.0
    %1162 = vmatpush1.msra.mxu0 0.0
    %1163 = vmatprep.subr.mxu0 0.0
    %1164 = vmatpush1.msra.mxu0 0.0
    %1165 = vmatprep.subr.mxu0 0.0
    %1166 = vmatpush1.msra.mxu0 0.0
    %1167 = vmatprep.subr.mxu0 0.0
    %1168 = vmatpush1.msra.mxu0 0.0
    %1169 = vmatprep.subr.mxu0 0.0
    %1170 = vmatpush1.msra.mxu0 0.0
    %1171 = vmatprep.subr.mxu0 0.0
    %1172 = vmatpush1.msra.mxu0 0.0
    %1173 = vmatprep.subr.mxu0 0.0
    %1174 = vmatpush1.msra.mxu0 %v236
    %1175 = vmatprep.subr.mxu0 0.0
    %1176 = vmatpush1.msra.mxu0 %v235
    %1177 = vmatprep.subr.mxu0 0.0
    %1178 = vmatpush1.msra.mxu0 %v234
    %1179 = vmatprep.subr.mxu0 0.0
    %1180 = vmatpush1.msra.mxu0 %v233
    %1181 = vmatprep.subr.mxu0 0.0
    %1182 = vmatpush2.msra.mxu0 0.0
    %1183 = vmatprep.subr.mxu0 0.0
    %1184 = vmatpush2.msra.mxu0 0.0
    %1185 = vmatprep.subr.mxu0 0.0
    %1186 = vmatpush2.msra.mxu0 0.0
    %1187 = vmatprep.subr.mxu0 0.0
    %1188 = vmatpush2.msra.mxu0 0.0
    %1189 = vmatprep.subr.mxu0 0.0
    %1190 = vmatpush2.msra.mxu0 0.0
    %1191 = vmatprep.subr.mxu0 0.0
    %1192 = vmatpush2.msra.mxu0 0.0
    %1193 = vmatprep.subr.mxu0 0.0
    %1194 = vmatpush2.msra.mxu0 0.0
    %1195 = vmatprep.subr.mxu0 0.0
    %1196 = vmatpush2.msra.mxu0 0.0
    %1197 = vmatprep.subr.mxu0 0.0
    %1198 = vmatpush2.msra.mxu0 0.0
    %1199 = vmatprep.subr.mxu0 0.0
    %1200 = vmatpush2.msra.mxu0 0.0
    %1201 = vmatprep.subr.mxu0 0.0
    %1202 = vmatpush2.msra.mxu0 0.0
    %1203 = vmatprep.subr.mxu0 0.0
    %1204 = vmatpush2.msra.mxu0 0.0
    %1205 = vmatprep.subr.mxu0 0.0
    %1206 = vmatpush2.msra.mxu0 0.0
    %1207 = vmatprep.subr.mxu0 0.0
    %1208 = vmatpush2.msra.mxu0 0.0
    %1209 = vmatprep.subr.mxu0 0.0
    %1210 = vmatpush2.msra.mxu0 0.0
    %1211 = vmatprep.subr.mxu0 0.0
    %1212 = vmatpush2.msra.mxu0 0.0
    %1213 = vmatprep.mubr.f32.mxu0 0.0
    %1214 = vmatmul.mubr.f32.gmra.mxu0 %v253
    %v1215 = vpop.f32.mrf.mxu0
    %v1216 = vadd.f32 %v1147, %v1215
    %v1217 = vpop.f32.mrf.mxu0
    %1218 = vmatprep.mubr.f32.mxu0 0.0
    %1219 = vmatmul.mubr.f32.gmra.mxu0 %v256
    %v1220 = vpop.f32.mrf.mxu0
    %v1221 = vadd.f32 %v1147, %v1220
    %v1222 = vpop.f32.mrf.mxu0
    %1223 = vdwg.mxu0
    %vm1224 = vcmask 64512
    %v1226 = vsel %vm1224, %v325, 0
    %v1229 = vsel %vm1224, %v330, 0
    %v1232 = vsel %vm1224, %v649, 0
    %v1235 = vsel %vm1224, %v654, 0
    %1237 = vmatprep.subr.mxu0 0.0
    %1238 = vmatpush1.xpose.msra.mxu0 0.0
    %1239 = vmatprep.subr.mxu0 0.0
    %1240 = vmatpush1.xpose.msra.mxu0 0.0
    %1241 = vmatprep.subr.mxu0 0.0
    %1242 = vmatpush1.xpose.msra.mxu0 0.0
    %1243 = vmatprep.subr.mxu0 0.0
    %1244 = vmatpush1.xpose.msra.mxu0 0.0
    %1245 = vmatprep.subr.mxu0 0.0
    %1246 = vmatpush1.xpose.msra.mxu0 0.0
    %1247 = vmatprep.subr.mxu0 0.0
    %1248 = vmatpush1.xpose.msra.mxu0 0.0
    %1249 = vmatprep.subr.mxu0 0.0
    %1250 = vmatpush1.xpose.msra.mxu0 0.0
    %1251 = vmatprep.subr.mxu0 0.0
    %1252 = vmatpush1.xpose.msra.mxu0 0.0
    %1253 = vmatprep.subr.mxu0 0.0
    %1254 = vmatpush1.xpose.msra.mxu0 0.0
    %1255 = vmatprep.subr.mxu0 0.0
    %1256 = vmatpush1.xpose.msra.mxu0 0.0
    %1257 = vmatprep.subr.mxu0 0.0
    %1258 = vmatpush1.xpose.msra.mxu0 0.0
    %1259 = vmatprep.subr.mxu0 0.0
    %1260 = vmatpush1.xpose.msra.mxu0 0.0
    %1261 = vmatprep.subr.mxu0 0.0
    %1262 = vmatpush1.xpose.msra.mxu0 0.0
    %1263 = vmatprep.subr.mxu0 0.0
    %1264 = vmatpush1.xpose.msra.mxu0 0.0
    %1265 = vmatprep.subr.mxu0 0.0
    %1266 = vmatpush1.xpose.msra.mxu0 %v1235
    %1267 = vmatprep.subr.mxu0 0.0
    %1268 = vmatpush1.xpose.msra.mxu0 %v1232
    %1269 = vmatprep.subr.mxu0 0.0
    %1270 = vmatpush2.xpose.msra.mxu0 0.0
    %1271 = vmatprep.subr.mxu0 0.0
    %1272 = vmatpush2.xpose.msra.mxu0 0.0
    %1273 = vmatprep.subr.mxu0 0.0
    %1274 = vmatpush2.xpose.msra.mxu0 0.0
    %1275 = vmatprep.subr.mxu0 0.0
    %1276 = vmatpush2.xpose.msra.mxu0 0.0
    %1277 = vmatprep.subr.mxu0 0.0
    %1278 = vmatpush2.xpose.msra.mxu0 0.0
    %1279 = vmatprep.subr.mxu0 0.0
    %1280 = vmatpush2.xpose.msra.mxu0 0.0
    %1281 = vmatprep.subr.mxu0 0.0
    %1282 = vmatpush2.xpose.msra.mxu0 0.0
    %1283 = vmatprep.subr.mxu0 0.0
    %1284 = vmatpush2.xpose.msra.mxu0 0.0
    %1285 = vmatprep.subr.mxu0 0.0
    %1286 = vmatpush2.xpose.msra.mxu0 0.0
    %1287 = vmatprep.subr.mxu0 0.0
    %1288 = vmatpush2.xpose.msra.mxu0 0.0
    %1289 = vmatprep.subr.mxu0 0.0
    %1290 = vmatpush2.xpose.msra.mxu0 0.0
    %1291 = vmatprep.subr.mxu0 0.0
    %1292 = vmatpush2.xpose.msra.mxu0 0.0
    %1293 = vmatprep.subr.mxu0 0.0
    %1294 = vmatpush2.xpose.msra.mxu0 0.0
    %1295 = vmatprep.subr.mxu0 0.0
    %1296 = vmatpush2.xpose.msra.mxu0 0.0
    %1297 = vmatprep.subr.mxu0 0.0
    %1298 = vmatpush2.xpose.msra.mxu0 0.0
    %1299 = vmatprep.subr.mxu0 0.0
    %1300 = vmatpush2.xpose.msra.mxu0 0.0
    %1301 = vmatprep.mubr.f32.mxu0 0.0
    %1302 = vmatmul.mubr.f32.gmra.mxu0 %v1226
    %v1303 = vpop.f32.mrf.mxu0
    %v1304 = vadd.f32 %v131, %v1303
    %v1305 = vpop.f32.mrf.mxu0
    %1306 = vmatprep.mubr.f32.mxu0 0.0
    %1307 = vmatmul.mubr.f32.gmra.mxu0 %v1229
    %v1308 = vpop.f32.mrf.mxu0
    %v1309 = vadd.f32 %v132, %v1308
    %v1310 = vpop.f32.mrf.mxu0
    %1311 = vdwg.mxu0
    %v1313 = vsel %vm1224, %v406, 0
    %v1316 = vsel %vm1224, %v411, 0
    %v1319 = vsel %vm1224, %v730, 0
    %v1322 = vsel %vm1224, %v735, 0
    %1324 = vmatprep.subr.mxu0 0.0
    %1325 = vmatpush1.xpose.msra.mxu0 0.0
    %1326 = vmatprep.subr.mxu0 0.0
    %1327 = vmatpush1.xpose.msra.mxu0 0.0
    %1328 = vmatprep.subr.mxu0 0.0
    %1329 = vmatpush1.xpose.msra.mxu0 0.0
    %1330 = vmatprep.subr.mxu0 0.0
    %1331 = vmatpush1.xpose.msra.mxu0 0.0
    %1332 = vmatprep.subr.mxu0 0.0
    %1333 = vmatpush1.xpose.msra.mxu0 0.0
    %1334 = vmatprep.subr.mxu0 0.0
    %1335 = vmatpush1.xpose.msra.mxu0 0.0
    %1336 = vmatprep.subr.mxu0 0.0
    %1337 = vmatpush1.xpose.msra.mxu0 0.0
    %1338 = vmatprep.subr.mxu0 0.0
    %1339 = vmatpush1.xpose.msra.mxu0 0.0
    %1340 = vmatprep.subr.mxu0 0.0
    %1341 = vmatpush1.xpose.msra.mxu0 0.0
    %1342 = vmatprep.subr.mxu0 0.0
    %1343 = vmatpush1.xpose.msra.mxu0 0.0
    %1344 = vmatprep.subr.mxu0 0.0
    %1345 = vmatpush1.xpose.msra.mxu0 0.0
    %1346 = vmatprep.subr.mxu0 0.0
    %1347 = vmatpush1.xpose.msra.mxu0 0.0
    %1348 = vmatprep.subr.mxu0 0.0
    %1349 = vmatpush1.xpose.msra.mxu0 0.0
    %1350 = vmatprep.subr.mxu0 0.0
    %1351 = vmatpush1.xpose.msra.mxu0 0.0
    %1352 = vmatprep.subr.mxu0 0.0
    %1353 = vmatpush1.xpose.msra.mxu0 %v1322
    %1354 = vmatprep.subr.mxu0 0.0
    %1355 = vmatpush1.xpose.msra.mxu0 %v1319
    %1356 = vmatprep.subr.mxu0 0.0
    %1357 = vmatpush2.xpose.msra.mxu0 0.0
    %1358 = vmatprep.subr.mxu0 0.0
    %1359 = vmatpush2.xpose.msra.mxu0 0.0
    %1360 = vmatprep.subr.mxu0 0.0
    %1361 = vmatpush2.xpose.msra.mxu0 0.0
    %1362 = vmatprep.subr.mxu0 0.0
    %1363 = vmatpush2.xpose.msra.mxu0 0.0
    %1364 = vmatprep.subr.mxu0 0.0
    %1365 = vmatpush2.xpose.msra.mxu0 0.0
    %1366 = vmatprep.subr.mxu0 0.0
    %1367 = vmatpush2.xpose.msra.mxu0 0.0
    %1368 = vmatprep.subr.mxu0 0.0
    %1369 = vmatpush2.xpose.msra.mxu0 0.0
    %1370 = vmatprep.subr.mxu0 0.0
    %1371 = vmatpush2.xpose.msra.mxu0 0.0
    %1372 = vmatprep.subr.mxu0 0.0
    %1373 = vmatpush2.xpose.msra.mxu0 0.0
    %1374 = vmatprep.subr.mxu0 0.0
    %1375 = vmatpush2.xpose.msra.mxu0 0.0
    %1376 = vmatprep.subr.mxu0 0.0
    %1377 = vmatpush2.xpose.msra.mxu0 0.0
    %1378 = vmatprep.subr.mxu0 0.0
    %1379 = vmatpush2.xpose.msra.mxu0 0.0
    %1380 = vmatprep.subr.mxu0 0.0
    %1381 = vmatpush2.xpose.msra.mxu0 0.0
    %1382 = vmatprep.subr.mxu0 0.0
    %1383 = vmatpush2.xpose.msra.mxu0 0.0
    %1384 = vmatprep.subr.mxu0 0.0
    %1385 = vmatpush2.xpose.msra.mxu0 0.0
    %1386 = vmatprep.subr.mxu0 0.0
    %1387 = vmatpush2.xpose.msra.mxu0 0.0
    %1388 = vmatprep.mubr.f32.mxu0 0.0
    %1389 = vmatmul.mubr.f32.gmra.mxu0 %v1313
    %v1390 = vpop.f32.mrf.mxu0
    %v1391 = vadd.f32 %v131, %v1390
    %v1392 = vpop.f32.mrf.mxu0
    %1393 = vmatprep.mubr.f32.mxu0 0.0
    %1394 = vmatmul.mubr.f32.gmra.mxu0 %v1316
    %v1395 = vpop.f32.mrf.mxu0
    %v1396 = vadd.f32 %v132, %v1395
    %v1397 = vpop.f32.mrf.mxu0
    %1398 = vdwg.mxu0
    %v1400 = vsel %vm1224, %v487, 0
    %v1403 = vsel %vm1224, %v492, 0
    %v1406 = vsel %vm1224, %v811, 0
    %v1409 = vsel %vm1224, %v816, 0
    %1411 = vmatprep.subr.mxu0 0.0
    %1412 = vmatpush1.xpose.msra.mxu0 0.0
    %1413 = vmatprep.subr.mxu0 0.0
    %1414 = vmatpush1.xpose.msra.mxu0 0.0
    %1415 = vmatprep.subr.mxu0 0.0
    %1416 = vmatpush1.xpose.msra.mxu0 0.0
    %1417 = vmatprep.subr.mxu0 0.0
    %1418 = vmatpush1.xpose.msra.mxu0 0.0
    %1419 = vmatprep.subr.mxu0 0.0
    %1420 = vmatpush1.xpose.msra.mxu0 0.0
    %1421 = vmatprep.subr.mxu0 0.0
    %1422 = vmatpush1.xpose.msra.mxu0 0.0
    %1423 = vmatprep.subr.mxu0 0.0
    %1424 = vmatpush1.xpose.msra.mxu0 0.0
    %1425 = vmatprep.subr.mxu0 0.0
    %1426 = vmatpush1.xpose.msra.mxu0 0.0
    %1427 = vmatprep.subr.mxu0 0.0
    %1428 = vmatpush1.xpose.msra.mxu0 0.0
    %1429 = vmatprep.subr.mxu0 0.0
    %1430 = vmatpush1.xpose.msra.mxu0 0.0
    %1431 = vmatprep.subr.mxu0 0.0
    %1432 = vmatpush1.xpose.msra.mxu0 0.0
    %1433 = vmatprep.subr.mxu0 0.0
    %1434 = vmatpush1.xpose.msra.mxu0 0.0
    %1435 = vmatprep.subr.mxu0 0.0
    %1436 = vmatpush1.xpose.msra.mxu0 0.0
    %1437 = vmatprep.subr.mxu0 0.0
    %1438 = vmatpush1.xpose.msra.mxu0 0.0
    %1439 = vmatprep.subr.mxu0 0.0
    %1440 = vmatpush1.xpose.msra.mxu0 %v1409
    %1441 = vmatprep.subr.mxu0 0.0
    %1442 = vmatpush1.xpose.msra.mxu0 %v1406
    %1443 = vmatprep.subr.mxu0 0.0
    %1444 = vmatpush2.xpose.msra.mxu0 0.0
    %1445 = vmatprep.subr.mxu0 0.0
    %1446 = vmatpush2.xpose.msra.mxu0 0.0
    %1447 = vmatprep.subr.mxu0 0.0
    %1448 = vmatpush2.xpose.msra.mxu0 0.0
    %1449 = vmatprep.subr.mxu0 0.0
    %1450 = vmatpush2.xpose.msra.mxu0 0.0
    %1451 = vmatprep.subr.mxu0 0.0
    %1452 = vmatpush2.xpose.msra.mxu0 0.0
    %1453 = vmatprep.subr.mxu0 0.0
    %1454 = vmatpush2.xpose.msra.mxu0 0.0
    %1455 = vmatprep.subr.mxu0 0.0
    %1456 = vmatpush2.xpose.msra.mxu0 0.0
    %1457 = vmatprep.subr.mxu0 0.0
    %1458 = vmatpush2.xpose.msra.mxu0 0.0
    %1459 = vmatprep.subr.mxu0 0.0
    %1460 = vmatpush2.xpose.msra.mxu0 0.0
    %1461 = vmatprep.subr.mxu0 0.0
    %1462 = vmatpush2.xpose.msra.mxu0 0.0
    %1463 = vmatprep.subr.mxu0 0.0
    %1464 = vmatpush2.xpose.msra.mxu0 0.0
    %1465 = vmatprep.subr.mxu0 0.0
    %1466 = vmatpush2.xpose.msra.mxu0 0.0
    %1467 = vmatprep.subr.mxu0 0.0
    %1468 = vmatpush2.xpose.msra.mxu0 0.0
    %1469 = vmatprep.subr.mxu0 0.0
    %1470 = vmatpush2.xpose.msra.mxu0 0.0
    %1471 = vmatprep.subr.mxu0 0.0
    %1472 = vmatpush2.xpose.msra.mxu0 0.0
    %1473 = vmatprep.subr.mxu0 0.0
    %1474 = vmatpush2.xpose.msra.mxu0 0.0
    %1475 = vmatprep.mubr.f32.mxu0 0.0
    %1476 = vmatmul.mubr.f32.gmra.mxu0 %v1400
    %v1477 = vpop.f32.mrf.mxu0
    %v1478 = vadd.f32 %v131, %v1477
    %v1479 = vpop.f32.mrf.mxu0
    %1480 = vmatprep.mubr.f32.mxu0 0.0
    %1481 = vmatmul.mubr.f32.gmra.mxu0 %v1403
    %v1482 = vpop.f32.mrf.mxu0
    %v1483 = vadd.f32 %v132, %v1482
    %v1484 = vpop.f32.mrf.mxu0
    %1485 = vdwg.mxu0
    %v1487 = vsel %vm1224, %v568, 0
    %v1490 = vsel %vm1224, %v573, 0
    %v1493 = vsel %vm1224, %v892, 0
    %v1496 = vsel %vm1224, %v897, 0
    %1498 = vmatprep.subr.mxu0 0.0
    %1499 = vmatpush1.xpose.msra.mxu0 0.0
    %1500 = vmatprep.subr.mxu0 0.0
    %1501 = vmatpush1.xpose.msra.mxu0 0.0
    %1502 = vmatprep.subr.mxu0 0.0
    %1503 = vmatpush1.xpose.msra.mxu0 0.0
    %1504 = vmatprep.subr.mxu0 0.0
    %1505 = vmatpush1.xpose.msra.mxu0 0.0
    %1506 = vmatprep.subr.mxu0 0.0
    %1507 = vmatpush1.xpose.msra.mxu0 0.0
    %1508 = vmatprep.subr.mxu0 0.0
    %1509 = vmatpush1.xpose.msra.mxu0 0.0
    %1510 = vmatprep.subr.mxu0 0.0
    %1511 = vmatpush1.xpose.msra.mxu0 0.0
    %1512 = vmatprep.subr.mxu0 0.0
    %1513 = vmatpush1.xpose.msra.mxu0 0.0
    %1514 = vmatprep.subr.mxu0 0.0
    %1515 = vmatpush1.xpose.msra.mxu0 0.0
    %1516 = vmatprep.subr.mxu0 0.0
    %1517 = vmatpush1.xpose.msra.mxu0 0.0
    %1518 = vmatprep.subr.mxu0 0.0
    %1519 = vmatpush1.xpose.msra.mxu0 0.0
    %1520 = vmatprep.subr.mxu0 0.0
    %1521 = vmatpush1.xpose.msra.mxu0 0.0
    %1522 = vmatprep.subr.mxu0 0.0
    %1523 = vmatpush1.xpose.msra.mxu0 0.0
    %1524 = vmatprep.subr.mxu0 0.0
    %1525 = vmatpush1.xpose.msra.mxu0 0.0
    %1526 = vmatprep.subr.mxu0 0.0
    %1527 = vmatpush1.xpose.msra.mxu0 %v1496
    %1528 = vmatprep.subr.mxu0 0.0
    %1529 = vmatpush1.xpose.msra.mxu0 %v1493
    %1530 = vmatprep.subr.mxu0 0.0
    %1531 = vmatpush2.xpose.msra.mxu0 0.0
    %1532 = vmatprep.subr.mxu0 0.0
    %1533 = vmatpush2.xpose.msra.mxu0 0.0
    %1534 = vmatprep.subr.mxu0 0.0
    %1535 = vmatpush2.xpose.msra.mxu0 0.0
    %1536 = vmatprep.subr.mxu0 0.0
    %1537 = vmatpush2.xpose.msra.mxu0 0.0
    %1538 = vmatprep.subr.mxu0 0.0
    %1539 = vmatpush2.xpose.msra.mxu0 0.0
    %1540 = vmatprep.subr.mxu0 0.0
    %1541 = vmatpush2.xpose.msra.mxu0 0.0
    %1542 = vmatprep.subr.mxu0 0.0
    %1543 = vmatpush2.xpose.msra.mxu0 0.0
    %1544 = vmatprep.subr.mxu0 0.0
    %1545 = vmatpush2.xpose.msra.mxu0 0.0
    %1546 = vmatprep.subr.mxu0 0.0
    %1547 = vmatpush2.xpose.msra.mxu0 0.0
    %1548 = vmatprep.subr.mxu0 0.0
    %1549 = vmatpush2.xpose.msra.mxu0 0.0
    %1550 = vmatprep.subr.mxu0 0.0
    %1551 = vmatpush2.xpose.msra.mxu0 0.0
    %1552 = vmatprep.subr.mxu0 0.0
    %1553 = vmatpush2.xpose.msra.mxu0 0.0
    %1554 = vmatprep.subr.mxu0 0.0
    %1555 = vmatpush2.xpose.msra.mxu0 0.0
    %1556 = vmatprep.subr.mxu0 0.0
    %1557 = vmatpush2.xpose.msra.mxu0 0.0
    %1558 = vmatprep.subr.mxu0 0.0
    %1559 = vmatpush2.xpose.msra.mxu0 0.0
    %1560 = vmatprep.subr.mxu0 0.0
    %1561 = vmatpush2.xpose.msra.mxu0 0.0
    %1562 = vmatprep.mubr.f32.mxu0 0.0
    %1563 = vmatmul.mubr.f32.gmra.mxu0 %v1487
    %v1564 = vpop.f32.mrf.mxu0
    %v1565 = vadd.f32 %v131, %v1564
    %v1566 = vpop.f32.mrf.mxu0
    %1567 = vmatprep.mubr.f32.mxu0 0.0
    %1568 = vmatmul.mubr.f32.gmra.mxu0 %v1490
    %v1569 = vpop.f32.mrf.mxu0
    %v1570 = vadd.f32 %v132, %v1569
    %v1571 = vpop.f32.mrf.mxu0
    %1572 = vdwg.mxu0
    %vm1573 = vcmask 130048
    %v1574 = vsel %vm1573, %v1304, -inf
    %1575 = vmax.xlane.f32.xlu0 %v1574
    %v1576 = vpop.xlane.xlu0 %1575
    %v1577 = vsel %vm1573, %v1309, -inf
    %1578 = vmax.xlane.f32.xlu0 %v1577
    %v1579 = vpop.xlane.xlu0 %1578
    %v1580 = vsel %vm1573, %v1391, -inf
    %1581 = vmax.xlane.f32.xlu0 %v1580
    %v1582 = vpop.xlane.xlu0 %1581
    %v1583 = vsel %vm1573, %v1396, -inf
    %1584 = vmax.xlane.f32.xlu0 %v1583
    %v1585 = vpop.xlane.xlu0 %1584
    %v1586 = vsel %vm1573, %v1478, -inf
    %1587 = vmax.xlane.f32.xlu0 %v1586
    %v1588 = vpop.xlane.xlu0 %1587
    %v1589 = vsel %vm1573, %v1483, -inf
    %1590 = vmax.xlane.f32.xlu0 %v1589
    %v1591 = vpop.xlane.xlu0 %1590
    %v1592 = vsel %vm1573, %v1565, -inf
    %1593 = vmax.xlane.f32.xlu0 %v1592
    %v1594 = vpop.xlane.xlu0 %1593
    %v1595 = vsel %vm1573, %v1570, -inf
    %1596 = vmax.xlane.f32.xlu0 %v1595
    %v1597 = vpop.xlane.xlu0 %1596
    %v1598 = vsub.f32 %v1304, %v1576
    %v1599 = vsub.f32 %v1309, %v1579
    %v1600 = vsub.f32 %v1391, %v1582
    %v1601 = vsub.f32 %v1396, %v1585
    %v1602 = vsub.f32 %v1478, %v1588
    %v1603 = vsub.f32 %v1483, %v1591
    %v1604 = vsub.f32 %v1565, %v1594
    %v1605 = vsub.f32 %v1570, %v1597
    %v1606 = vmul.f32 %v1598, 1.442695
    %v1607 = vpow.pop %v1606
    %v1608 = vmul.f32 %v1599, 1.442695
    %v1609 = vpow.pop %v1608
    %v1610 = vmul.f32 %v1600, 1.442695
    %v1611 = vpow.pop %v1610
    %v1612 = vmul.f32 %v1601, 1.442695
    %v1613 = vpow.pop %v1612
    %v1614 = vmul.f32 %v1602, 1.442695
    %v1615 = vpow.pop %v1614
    %v1616 = vmul.f32 %v1603, 1.442695
    %v1617 = vpow.pop %v1616
    %v1618 = vmul.f32 %v1604, 1.442695
    %v1619 = vpow.pop %v1618
    %v1620 = vmul.f32 %v1605, 1.442695
    %v1621 = vpow.pop %v1620
    %v1622 = vsel %vm1573, %v1607, 0.0
    %1623 = vadd.xlane.f32.xlu0 %v1622
    %v1624 = vpop.xlane.xlu0 %1623
    %v1625 = vsel %vm1573, %v1609, 0.0
    %1626 = vadd.xlane.f32.xlu0 %v1625
    %v1627 = vpop.xlane.xlu0 %1626
    %v1628 = vsel %vm1573, %v1611, 0.0
    %1629 = vadd.xlane.f32.xlu0 %v1628
    %v1630 = vpop.xlane.xlu0 %1629
    %v1631 = vsel %vm1573, %v1613, 0.0
    %1632 = vadd.xlane.f32.xlu0 %v1631
    %v1633 = vpop.xlane.xlu0 %1632
    %v1634 = vsel %vm1573, %v1615, 0.0
    %1635 = vadd.xlane.f32.xlu0 %v1634
    %v1636 = vpop.xlane.xlu0 %1635
    %v1637 = vsel %vm1573, %v1617, 0.0
    %1638 = vadd.xlane.f32.xlu0 %v1637
    %v1639 = vpop.xlane.xlu0 %1638
    %v1640 = vsel %vm1573, %v1619, 0.0
    %1641 = vadd.xlane.f32.xlu0 %v1640
    %v1642 = vpop.xlane.xlu0 %1641
    %v1643 = vsel %vm1573, %v1621, 0.0
    %1644 = vadd.xlane.f32.xlu0 %v1643
    %v1645 = vpop.xlane.xlu0 %1644
    %v1646 = vrcp.pop %v1624
    %v1647 = vrcp.pop %v1627
    %v1648 = vrcp.pop %v1630
    %v1649 = vrcp.pop %v1633
    %v1650 = vrcp.pop %v1636
    %v1651 = vrcp.pop %v1639
    %v1652 = vrcp.pop %v1642
    %v1653 = vrcp.pop %v1645
    %v1654 = vmul.f32 %v1607, %v1646
    %v1655 = vmul.f32 %v1609, %v1647
    %v1656 = vmul.f32 %v1611, %v1648
    %v1657 = vmul.f32 %v1613, %v1649
    %v1658 = vmul.f32 %v1615, %v1650
    %v1659 = vmul.f32 %v1617, %v1651
    %v1660 = vmul.f32 %v1619, %v1652
    %v1661 = vmul.f32 %v1621, %v1653
    %v1663 = vsel %vm1573, %v1654, 0
    %v1666 = vsel %vm1573, %v1655, 0
    %1668 = vmatprep.subr.mxu0 0.0
    %1669 = vmatpush1.msra.mxu0 0.0
    %1670 = vmatprep.subr.mxu0 0.0
    %1671 = vmatpush1.msra.mxu0 0.0
    %1672 = vmatprep.subr.mxu0 0.0
    %1673 = vmatpush1.msra.mxu0 0.0
    %1674 = vmatprep.subr.mxu0 0.0
    %1675 = vmatpush1.msra.mxu0 0.0
    %1676 = vmatprep.subr.mxu0 0.0
    %1677 = vmatpush1.msra.mxu0 0.0
    %1678 = vmatprep.subr.mxu0 0.0
    %1679 = vmatpush1.msra.mxu0 0.0
    %1680 = vmatprep.subr.mxu0 0.0
    %1681 = vmatpush1.msra.mxu0 0.0
    %1682 = vmatprep.subr.mxu0 0.0
    %1683 = vmatpush1.msra.mxu0 0.0
    %1684 = vmatprep.subr.mxu0 0.0
    %1685 = vmatpush1.msra.mxu0 0.0
    %1686 = vmatprep.subr.mxu0 0.0
    %1687 = vmatpush1.msra.mxu0 0.0
    %1688 = vmatprep.subr.mxu0 0.0
    %1689 = vmatpush1.msra.mxu0 0.0
    %1690 = vmatprep.subr.mxu0 0.0
    %1691 = vmatpush1.msra.mxu0 0.0
    %1692 = vmatprep.subr.mxu0 0.0
    %1693 = vmatpush1.msra.mxu0 0.0
    %1694 = vmatprep.subr.mxu0 0.0
    %1695 = vmatpush1.msra.mxu0 0.0
    %1696 = vmatprep.subr.mxu0 0.0
    %1697 = vmatpush1.msra.mxu0 %v978
    %1698 = vmatprep.subr.mxu0 0.0
    %1699 = vmatpush1.msra.mxu0 %v973
    %1700 = vmatprep.subr.mxu0 0.0
    %1701 = vmatpush2.msra.mxu0 0.0
    %1702 = vmatprep.subr.mxu0 0.0
    %1703 = vmatpush2.msra.mxu0 0.0
    %1704 = vmatprep.subr.mxu0 0.0
    %1705 = vmatpush2.msra.mxu0 0.0
    %1706 = vmatprep.subr.mxu0 0.0
    %1707 = vmatpush2.msra.mxu0 0.0
    %1708 = vmatprep.subr.mxu0 0.0
    %1709 = vmatpush2.msra.mxu0 0.0
    %1710 = vmatprep.subr.mxu0 0.0
    %1711 = vmatpush2.msra.mxu0 0.0
    %1712 = vmatprep.subr.mxu0 0.0
    %1713 = vmatpush2.msra.mxu0 0.0
    %1714 = vmatprep.subr.mxu0 0.0
    %1715 = vmatpush2.msra.mxu0 0.0
    %1716 = vmatprep.subr.mxu0 0.0
    %1717 = vmatpush2.msra.mxu0 0.0
    %1718 = vmatprep.subr.mxu0 0.0
    %1719 = vmatpush2.msra.mxu0 0.0
    %1720 = vmatprep.subr.mxu0 0.0
    %1721 = vmatpush2.msra.mxu0 0.0
    %1722 = vmatprep.subr.mxu0 0.0
    %1723 = vmatpush2.msra.mxu0 0.0
    %1724 = vmatprep.subr.mxu0 0.0
    %1725 = vmatpush2.msra.mxu0 0.0
    %1726 = vmatprep.subr.mxu0 0.0
    %1727 = vmatpush2.msra.mxu0 0.0
    %1728 = vmatprep.subr.mxu0 0.0
    %1729 = vmatpush2.msra.mxu0 0.0
    %1730 = vmatprep.subr.mxu0 0.0
    %1731 = vmatpush2.msra.mxu0 0.0
    %1732 = vmatprep.mubr.f32.mxu0 0.0
    %1733 = vmatmul.mubr.f32.gmra.mxu0 %v1663
    %v1734 = vpop.f32.mrf.mxu0
    %v1735 = vadd.f32 0.0, %v1734
    %v1736 = vpop.f32.mrf.mxu0
    %1737 = vmatprep.mubr.f32.mxu0 0.0
    %1738 = vmatmul.mubr.f32.gmra.mxu0 %v1666
    %v1739 = vpop.f32.mrf.mxu0
    %v1740 = vadd.f32 0.0, %v1739
    %v1741 = vpop.f32.mrf.mxu0
    %1742 = vdwg.mxu0
    %v1744 = vsel %vm1573, %v1656, 0
    %v1747 = vsel %vm1573, %v1657, 0
    %1749 = vmatprep.subr.mxu0 0.0
    %1750 = vmatpush1.msra.mxu0 0.0
    %1751 = vmatprep.subr.mxu0 0.0
    %1752 = vmatpush1.msra.mxu0 0.0
    %1753 = vmatprep.subr.mxu0 0.0
    %1754 = vmatpush1.msra.mxu0 0.0
    %1755 = vmatprep.subr.mxu0 0.0
    %1756 = vmatpush1.msra.mxu0 0.0
    %1757 = vmatprep.subr.mxu0 0.0
    %1758 = vmatpush1.msra.mxu0 0.0
    %1759 = vmatprep.subr.mxu0 0.0
    %1760 = vmatpush1.msra.mxu0 0.0
    %1761 = vmatprep.subr.mxu0 0.0
    %1762 = vmatpush1.msra.mxu0 0.0
    %1763 = vmatprep.subr.mxu0 0.0
    %1764 = vmatpush1.msra.mxu0 0.0
    %1765 = vmatprep.subr.mxu0 0.0
    %1766 = vmatpush1.msra.mxu0 0.0
    %1767 = vmatprep.subr.mxu0 0.0
    %1768 = vmatpush1.msra.mxu0 0.0
    %1769 = vmatprep.subr.mxu0 0.0
    %1770 = vmatpush1.msra.mxu0 0.0
    %1771 = vmatprep.subr.mxu0 0.0
    %1772 = vmatpush1.msra.mxu0 0.0
    %1773 = vmatprep.subr.mxu0 0.0
    %1774 = vmatpush1.msra.mxu0 0.0
    %1775 = vmatprep.subr.mxu0 0.0
    %1776 = vmatpush1.msra.mxu0 0.0
    %1777 = vmatprep.subr.mxu0 0.0
    %1778 = vmatpush1.msra.mxu0 %v1059
    %1779 = vmatprep.subr.mxu0 0.0
    %1780 = vmatpush1.msra.mxu0 %v1054
    %1781 = vmatprep.subr.mxu0 0.0
    %1782 = vmatpush2.msra.mxu0 0.0
    %1783 = vmatprep.subr.mxu0 0.0
    %1784 = vmatpush2.msra.mxu0 0.0
    %1785 = vmatprep.subr.mxu0 0.0
    %1786 = vmatpush2.msra.mxu0 0.0
    %1787 = vmatprep.subr.mxu0 0.0
    %1788 = vmatpush2.msra.mxu0 0.0
    %1789 = vmatprep.subr.mxu0 0.0
    %1790 = vmatpush2.msra.mxu0 0.0
    %1791 = vmatprep.subr.mxu0 0.0
    %1792 = vmatpush2.msra.mxu0 0.0
    %1793 = vmatprep.subr.mxu0 0.0
    %1794 = vmatpush2.msra.mxu0 0.0
    %1795 = vmatprep.subr.mxu0 0.0
    %1796 = vmatpush2.msra.mxu0 0.0
    %1797 = vmatprep.subr.mxu0 0.0
    %1798 = vmatpush2.msra.mxu0 0.0
    %1799 = vmatprep.subr.mxu0 0.0
    %1800 = vmatpush2.msra.mxu0 0.0
    %1801 = vmatprep.subr.mxu0 0.0
    %1802 = vmatpush2.msra.mxu0 0.0
    %1803 = vmatprep.subr.mxu0 0.0
    %1804 = vmatpush2.msra.mxu0 0.0
    %1805 = vmatprep.subr.mxu0 0.0
    %1806 = vmatpush2.msra.mxu0 0.0
    %1807 = vmatprep.subr.mxu0 0.0
    %1808 = vmatpush2.msra.mxu0 0.0
    %1809 = vmatprep.subr.mxu0 0.0
    %1810 = vmatpush2.msra.mxu0 0.0
    %1811 = vmatprep.subr.mxu0 0.0
    %1812 = vmatpush2.msra.mxu0 0.0
    %1813 = vmatprep.mubr.f32.mxu0 0.0
    %1814 = vmatmul.mubr.f32.gmra.mxu0 %v1744
    %v1815 = vpop.f32.mrf.mxu0
    %v1816 = vadd.f32 0.0, %v1815
    %v1817 = vpop.f32.mrf.mxu0
    %1818 = vmatprep.mubr.f32.mxu0 0.0
    %1819 = vmatmul.mubr.f32.gmra.mxu0 %v1747
    %v1820 = vpop.f32.mrf.mxu0
    %v1821 = vadd.f32 0.0, %v1820
    %v1822 = vpop.f32.mrf.mxu0
    %1823 = vdwg.mxu0
    %v1825 = vsel %vm1573, %v1658, 0
    %v1828 = vsel %vm1573, %v1659, 0
    %1830 = vmatprep.subr.mxu0 0.0
    %1831 = vmatpush1.msra.mxu0 0.0
    %1832 = vmatprep.subr.mxu0 0.0
    %1833 = vmatpush1.msra.mxu0 0.0
    %1834 = vmatprep.subr.mxu0 0.0
    %1835 = vmatpush1.msra.mxu0 0.0
    %1836 = vmatprep.subr.mxu0 0.0
    %1837 = vmatpush1.msra.mxu0 0.0
    %1838 = vmatprep.subr.mxu0 0.0
    %1839 = vmatpush1.msra.mxu0 0.0
    %1840 = vmatprep.subr.mxu0 0.0
    %1841 = vmatpush1.msra.mxu0 0.0
    %1842 = vmatprep.subr.mxu0 0.0
    %1843 = vmatpush1.msra.mxu0 0.0
    %1844 = vmatprep.subr.mxu0 0.0
    %1845 = vmatpush1.msra.mxu0 0.0
    %1846 = vmatprep.subr.mxu0 0.0
    %1847 = vmatpush1.msra.mxu0 0.0
    %1848 = vmatprep.subr.mxu0 0.0
    %1849 = vmatpush1.msra.mxu0 0.0
    %1850 = vmatprep.subr.mxu0 0.0
    %1851 = vmatpush1.msra.mxu0 0.0
    %1852 = vmatprep.subr.mxu0 0.0
    %1853 = vmatpush1.msra.mxu0 0.0
    %1854 = vmatprep.subr.mxu0 0.0
    %1855 = vmatpush1.msra.mxu0 0.0
    %1856 = vmatprep.subr.mxu0 0.0
    %1857 = vmatpush1.msra.mxu0 0.0
    %1858 = vmatprep.subr.mxu0 0.0
    %1859 = vmatpush1.msra.mxu0 %v1140
    %1860 = vmatprep.subr.mxu0 0.0
    %1861 = vmatpush1.msra.mxu0 %v1135
    %1862 = vmatprep.subr.mxu0 0.0
    %1863 = vmatpush2.msra.mxu0 0.0
    %1864 = vmatprep.subr.mxu0 0.0
    %1865 = vmatpush2.msra.mxu0 0.0
    %1866 = vmatprep.subr.mxu0 0.0
    %1867 = vmatpush2.msra.mxu0 0.0
    %1868 = vmatprep.subr.mxu0 0.0
    %1869 = vmatpush2.msra.mxu0 0.0
    %1870 = vmatprep.subr.mxu0 0.0
    %1871 = vmatpush2.msra.mxu0 0.0
    %1872 = vmatprep.subr.mxu0 0.0
    %1873 = vmatpush2.msra.mxu0 0.0
    %1874 = vmatprep.subr.mxu0 0.0
    %1875 = vmatpush2.msra.mxu0 0.0
    %1876 = vmatprep.subr.mxu0 0.0
    %1877 = vmatpush2.msra.mxu0 0.0
    %1878 = vmatprep.subr.mxu0 0.0
    %1879 = vmatpush2.msra.mxu0 0.0
    %1880 = vmatprep.subr.mxu0 0.0
    %1881 = vmatpush2.msra.mxu0 0.0
    %1882 = vmatprep.subr.mxu0 0.0
    %1883 = vmatpush2.msra.mxu0 0.0
    %1884 = vmatprep.subr.mxu0 0.0
    %1885 = vmatpush2.msra.mxu0 0.0
    %1886 = vmatprep.subr.mxu0 0.0
    %1887 = vmatpush2.msra.mxu0 0.0
    %1888 = vmatprep.subr.mxu0 0.0
    %1889 = vmatpush2.msra.mxu0 0.0
    %1890 = vmatprep.subr.mxu0 0.0
    %1891 = vmatpush2.msra.mxu0 0.0
    %1892 = vmatprep.subr.mxu0 0.0
    %1893 = vmatpush2.msra.mxu0 0.0
    %1894 = vmatprep.mubr.f32.mxu0 0.0
    %1895 = vmatmul.mubr.f32.gmra.mxu0 %v1825
    %v1896 = vpop.f32.mrf.mxu0
    %v1897 = vadd.f32 0.0, %v1896
    %v1898 = vpop.f32.mrf.mxu0
    %1899 = vmatprep.mubr.f32.mxu0 0.0
    %1900 = vmatmul.mubr.f32.gmra.mxu0 %v1828
    %v1901 = vpop.f32.mrf.mxu0
    %v1902 = vadd.f32 0.0, %v1901
    %v1903 = vpop.f32.mrf.mxu0
    %1904 = vdwg.mxu0
    %v1906 = vsel %vm1573, %v1660, 0
    %v1909 = vsel %vm1573, %v1661, 0
    %1911 = vmatprep.subr.mxu0 0.0
    %1912 = vmatpush1.msra.mxu0 0.0
    %1913 = vmatprep.subr.mxu0 0.0
    %1914 = vmatpush1.msra.mxu0 0.0
    %1915 = vmatprep.subr.mxu0 0.0
    %1916 = vmatpush1.msra.mxu0 0.0
    %1917 = vmatprep.subr.mxu0 0.0
    %1918 = vmatpush1.msra.mxu0 0.0
    %1919 = vmatprep.subr.mxu0 0.0
    %1920 = vmatpush1.msra.mxu0 0.0
    %1921 = vmatprep.subr.mxu0 0.0
    %1922 = vmatpush1.msra.mxu0 0.0
    %1923 = vmatprep.subr.mxu0 0.0
    %1924 = vmatpush1.msra.mxu0 0.0
    %1925 = vmatprep.subr.mxu0 0.0
    %1926 = vmatpush1.msra.mxu0 0.0
    %1927 = vmatprep.subr.mxu0 0.0
    %1928 = vmatpush1.msra.mxu0 0.0
    %1929 = vmatprep.subr.mxu0 0.0
    %1930 = vmatpush1.msra.mxu0 0.0
    %1931 = vmatprep.subr.mxu0 0.0
    %1932 = vmatpush1.msra.mxu0 0.0
    %1933 = vmatprep.subr.mxu0 0.0
    %1934 = vmatpush1.msra.mxu0 0.0
    %1935 = vmatprep.subr.mxu0 0.0
    %1936 = vmatpush1.msra.mxu0 0.0
    %1937 = vmatprep.subr.mxu0 0.0
    %1938 = vmatpush1.msra.mxu0 0.0
    %1939 = vmatprep.subr.mxu0 0.0
    %1940 = vmatpush1.msra.mxu0 %v1221
    %1941 = vmatprep.subr.mxu0 0.0
    %1942 = vmatpush1.msra.mxu0 %v1216
    %1943 = vmatprep.subr.mxu0 0.0
    %1944 = vmatpush2.msra.mxu0 0.0
    %1945 = vmatprep.subr.mxu0 0.0
    %1946 = vmatpush2.msra.mxu0 0.0
    %1947 = vmatprep.subr.mxu0 0.0
    %1948 = vmatpush2.msra.mxu0 0.0
    %1949 = vmatprep.subr.mxu0 0.0
    %1950 = vmatpush2.msra.mxu0 0.0
    %1951 = vmatprep.subr.mxu0 0.0
    %1952 = vmatpush2.msra.mxu0 0.0
    %1953 = vmatprep.subr.mxu0 0.0
    %1954 = vmatpush2.msra.mxu0 0.0
    %1955 = vmatprep.subr.mxu0 0.0
    %1956 = vmatpush2.msra.mxu0 0.0
    %1957 = vmatprep.subr.mxu0 0.0
    %1958 = vmatpush2.msra.mxu0 0.0
    %1959 = vmatprep.subr.mxu0 0.0
    %1960 = vmatpush2.msra.mxu0 0.0
    %1961 = vmatprep.subr.mxu0 0.0
    %1962 = vmatpush2.msra.mxu0 0.0
    %1963 = vmatprep.subr.mxu0 0.0
    %1964 = vmatpush2.msra.mxu0 0.0
    %1965 = vmatprep.subr.mxu0 0.0
    %1966 = vmatpush2.msra.mxu0 0.0
    %1967 = vmatprep.subr.mxu0 0.0
    %1968 = vmatpush2.msra.mxu0 0.0
    %1969 = vmatprep.subr.mxu0 0.0
    %1970 = vmatpush2.msra.mxu0 0.0
    %1971 = vmatprep.subr.mxu0 0.0
    %1972 = vmatpush2.msra.mxu0 0.0
    %1973 = vmatprep.subr.mxu0 0.0
    %1974 = vmatpush2.msra.mxu0 0.0
    %1975 = vmatprep.mubr.f32.mxu0 0.0
    %1976 = vmatmul.mubr.f32.gmra.mxu0 %v1906
    %v1977 = vpop.f32.mrf.mxu0
    %v1978 = vadd.f32 0.0, %v1977
    %v1979 = vpop.f32.mrf.mxu0
    %1980 = vmatprep.mubr.f32.mxu0 0.0
    %1981 = vmatmul.mubr.f32.gmra.mxu0 %v1909
    %v1982 = vpop.f32.mrf.mxu0
    %v1983 = vadd.f32 0.0, %v1982
    %v1984 = vpop.f32.mrf.mxu0
    %1985 = vdwg.mxu0
    %v1987 = vsel %vm1224, %v1735, 0
    %v1990 = vsel %vm1224, %v1740, 0
    %1992 = vmatprep.subr.mxu0 0.0
    %1993 = vmatpush1.msra.mxu0 0.0
    %1994 = vmatprep.subr.mxu0 0.0
    %1995 = vmatpush1.msra.mxu0 0.0
    %1996 = vmatprep.subr.mxu0 0.0
    %1997 = vmatpush1.msra.mxu0 0.0
    %1998 = vmatprep.subr.mxu0 0.0
    %1999 = vmatpush1.msra.mxu0 0.0
    %2000 = vmatprep.subr.mxu0 0.0
    %2001 = vmatpush1.msra.mxu0 0.0
    %2002 = vmatprep.subr.mxu0 0.0
    %2003 = vmatpush1.msra.mxu0 0.0
    %2004 = vmatprep.subr.mxu0 0.0
    %2005 = vmatpush1.msra.mxu0 0.0
    %2006 = vmatprep.subr.mxu0 0.0
    %2007 = vmatpush1.msra.mxu0 0.0
    %2008 = vmatprep.subr.mxu0 0.0
    %2009 = vmatpush1.msra.mxu0 0.0
    %2010 = vmatprep.subr.mxu0 0.0
    %2011 = vmatpush1.msra.mxu0 0.0
    %2012 = vmatprep.subr.mxu0 0.0
    %2013 = vmatpush1.msra.mxu0 0.0
    %2014 = vmatprep.subr.mxu0 0.0
    %2015 = vmatpush1.msra.mxu0 0.0
    %2016 = vmatprep.subr.mxu0 0.0
    %2017 = vmatpush1.msra.mxu0 0.0
    %2018 = vmatprep.subr.mxu0 0.0
    %2019 = vmatpush1.msra.mxu0 0.0
    %2020 = vmatprep.subr.mxu0 0.0
    %2021 = vmatpush1.msra.mxu0 0.0
    %2022 = vmatprep.subr.mxu0 0.0
    %2023 = vmatpush1.msra.mxu0 %v241
    %2024 = vmatprep.subr.mxu0 0.0
    %2025 = vmatpush2.msra.mxu0 0.0
    %2026 = vmatprep.subr.mxu0 0.0
    %2027 = vmatpush2.msra.mxu0 0.0
    %2028 = vmatprep.subr.mxu0 0.0
    %2029 = vmatpush2.msra.mxu0 0.0
    %2030 = vmatprep.subr.mxu0 0.0
    %2031 = vmatpush2.msra.mxu0 0.0
    %2032 = vmatprep.subr.mxu0 0.0
    %2033 = vmatpush2.msra.mxu0 0.0
    %2034 = vmatprep.subr.mxu0 0.0
    %2035 = vmatpush2.msra.mxu0 0.0
    %2036 = vmatprep.subr.mxu0 0.0
    %2037 = vmatpush2.msra.mxu0 0.0
    %2038 = vmatprep.subr.mxu0 0.0
    %2039 = vmatpush2.msra.mxu0 0.0
    %2040 = vmatprep.subr.mxu0 0.0
    %2041 = vmatpush2.msra.mxu0 0.0
    %2042 = vmatprep.subr.mxu0 0.0
    %2043 = vmatpush2.msra.mxu0 0.0
    %2044 = vmatprep.subr.mxu0 0.0
    %2045 = vmatpush2.msra.mxu0 0.0
    %2046 = vmatprep.subr.mxu0 0.0
    %2047 = vmatpush2.msra.mxu0 0.0
    %2048 = vmatprep.subr.mxu0 0.0
    %2049 = vmatpush2.msra.mxu0 0.0
    %2050 = vmatprep.subr.mxu0 0.0
    %2051 = vmatpush2.msra.mxu0 0.0
    %2052 = vmatprep.subr.mxu0 0.0
    %2053 = vmatpush2.msra.mxu0 0.0
    %2054 = vmatprep.subr.mxu0 0.0
    %2055 = vmatpush2.msra.mxu0 0.0
    %2056 = vmatprep.mubr.f32.mxu0 0.0
    %2057 = vmatmul.mubr.f32.gmra.mxu0 %v1987
    %v2058 = vpop.f32.mrf.mxu0
    %v2059 = vadd.f32 0.0, %v2058
    %v2060 = vpop.f32.mrf.mxu0
    %2061 = vmatprep.mubr.f32.mxu0 0.0
    %2062 = vmatmul.mubr.f32.gmra.mxu0 %v1990
    %v2063 = vpop.f32.mrf.mxu0
    %v2064 = vadd.f32 0.0, %v2063
    %v2065 = vpop.f32.mrf.mxu0
    %2066 = vdwg.mxu0
    %v2068 = vsel %vm1224, %v1816, 0
    %v2071 = vsel %vm1224, %v1821, 0
    %2073 = vmatprep.subr.mxu0 0.0
    %2074 = vmatpush1.msra.mxu0 0.0
    %2075 = vmatprep.subr.mxu0 0.0
    %2076 = vmatpush1.msra.mxu0 0.0
    %2077 = vmatprep.subr.mxu0 0.0
    %2078 = vmatpush1.msra.mxu0 0.0
    %2079 = vmatprep.subr.mxu0 0.0
    %2080 = vmatpush1.msra.mxu0 0.0
    %2081 = vmatprep.subr.mxu0 0.0
    %2082 = vmatpush1.msra.mxu0 0.0
    %2083 = vmatprep.subr.mxu0 0.0
    %2084 = vmatpush1.msra.mxu0 0.0
    %2085 = vmatprep.subr.mxu0 0.0
    %2086 = vmatpush1.msra.mxu0 0.0
    %2087 = vmatprep.subr.mxu0 0.0
    %2088 = vmatpush1.msra.mxu0 0.0
    %2089 = vmatprep.subr.mxu0 0.0
    %2090 = vmatpush1.msra.mxu0 0.0
    %2091 = vmatprep.subr.mxu0 0.0
    %2092 = vmatpush1.msra.mxu0 0.0
    %2093 = vmatprep.subr.mxu0 0.0
    %2094 = vmatpush1.msra.mxu0 0.0
    %2095 = vmatprep.subr.mxu0 0.0
    %2096 = vmatpush1.msra.mxu0 0.0
    %2097 = vmatprep.subr.mxu0 0.0
    %2098 = vmatpush1.msra.mxu0 0.0
    %2099 = vmatprep.subr.mxu0 0.0
    %2100 = vmatpush1.msra.mxu0 0.0
    %2101 = vmatprep.subr.mxu0 0.0
    %2102 = vmatpush1.msra.mxu0 0.0
    %2103 = vmatprep.subr.mxu0 0.0
    %2104 = vmatpush1.msra.mxu0 %v242
    %2105 = vmatprep.subr.mxu0 0.0
    %2106 = vmatpush2.msra.mxu0 0.0
    %2107 = vmatprep.subr.mxu0 0.0
    %2108 = vmatpush2.msra.mxu0 0.0
    %2109 = vmatprep.subr.mxu0 0.0
    %2110 = vmatpush2.msra.mxu0 0.0
    %2111 = vmatprep.subr.mxu0 0.0
    %2112 = vmatpush2.msra.mxu0 0.0
    %2113 = vmatprep.subr.mxu0 0.0
    %2114 = vmatpush2.msra.mxu0 0.0
    %2115 = vmatprep.subr.mxu0 0.0
    %2116 = vmatpush2.msra.mxu0 0.0
    %2117 = vmatprep.subr.mxu0 0.0
    %2118 = vmatpush2.msra.mxu0 0.0
    %2119 = vmatprep.subr.mxu0 0.0
    %2120 = vmatpush2.msra.mxu0 0.0
    %2121 = vmatprep.subr.mxu0 0.0
    %2122 = vmatpush2.msra.mxu0 0.0
    %2123 = vmatprep.subr.mxu0 0.0
    %2124 = vmatpush2.msra.mxu0 0.0
    %2125 = vmatprep.subr.mxu0 0.0
    %2126 = vmatpush2.msra.mxu0 0.0
    %2127 = vmatprep.subr.mxu0 0.0
    %2128 = vmatpush2.msra.mxu0 0.0
    %2129 = vmatprep.subr.mxu0 0.0
    %2130 = vmatpush2.msra.mxu0 0.0
    %2131 = vmatprep.subr.mxu0 0.0
    %2132 = vmatpush2.msra.mxu0 0.0
    %2133 = vmatprep.subr.mxu0 0.0
    %2134 = vmatpush2.msra.mxu0 0.0
    %2135 = vmatprep.subr.mxu0 0.0
    %2136 = vmatpush2.msra.mxu0 0.0
    %2137 = vmatprep.mubr.f32.mxu0 0.0
    %2138 = vmatmul.mubr.f32.gmra.mxu0 %v2068
    %v2139 = vpop.f32.mrf.mxu0
    %v2140 = vadd.f32 0.0, %v2139
    %v2141 = vpop.f32.mrf.mxu0
    %2142 = vmatprep.mubr.f32.mxu0 0.0
    %2143 = vmatmul.mubr.f32.gmra.mxu0 %v2071
    %v2144 = vpop.f32.mrf.mxu0
    %v2145 = vadd.f32 0.0, %v2144
    %v2146 = vpop.f32.mrf.mxu0
    %2147 = vdwg.mxu0
    %v2149 = vsel %vm1224, %v1897, 0
    %v2152 = vsel %vm1224, %v1902, 0
    %2154 = vmatprep.subr.mxu0 0.0
    %2155 = vmatpush1.msra.mxu0 0.0
    %2156 = vmatprep.subr.mxu0 0.0
    %2157 = vmatpush1.msra.mxu0 0.0
    %2158 = vmatprep.subr.mxu0 0.0
    %2159 = vmatpush1.msra.mxu0 0.0
    %2160 = vmatprep.subr.mxu0 0.0
    %2161 = vmatpush1.msra.mxu0 0.0
    %2162 = vmatprep.subr.mxu0 0.0
    %2163 = vmatpush1.msra.mxu0 0.0
    %2164 = vmatprep.subr.mxu0 0.0
    %2165 = vmatpush1.msra.mxu0 0.0
    %2166 = vmatprep.subr.mxu0 0.0
    %2167 = vmatpush1.msra.mxu0 0.0
    %2168 = vmatprep.subr.mxu0 0.0
    %2169 = vmatpush1.msra.mxu0 0.0
    %2170 = vmatprep.subr.mxu0 0.0
    %2171 = vmatpush1.msra.mxu0 0.0
    %2172 = vmatprep.subr.mxu0 0.0
    %2173 = vmatpush1.msra.mxu0 0.0
    %2174 = vmatprep.subr.mxu0 0.0
    %2175 = vmatpush1.msra.mxu0 0.0
    %2176 = vmatprep.subr.mxu0 0.0
    %2177 = vmatpush1.msra.mxu0 0.0
    %2178 = vmatprep.subr.mxu0 0.0
    %2179 = vmatpush1.msra.mxu0 0.0
    %2180 = vmatprep.subr.mxu0 0.0
    %2181 = vmatpush1.msra.mxu0 0.0
    %2182 = vmatprep.subr.mxu0 0.0
    %2183 = vmatpush1.msra.mxu0 0.0
    %2184 = vmatprep.subr.mxu0 0.0
    %2185 = vmatpush1.msra.mxu0 %v243
    %2186 = vmatprep.subr.mxu0 0.0
    %2187 = vmatpush2.msra.mxu0 0.0
    %2188 = vmatprep.subr.mxu0 0.0
    %2189 = vmatpush2.msra.mxu0 0.0
    %2190 = vmatprep.subr.mxu0 0.0
    %2191 = vmatpush2.msra.mxu0 0.0
    %2192 = vmatprep.subr.mxu0 0.0
    %2193 = vmatpush2.msra.mxu0 0.0
    %2194 = vmatprep.subr.mxu0 0.0
    %2195 = vmatpush2.msra.mxu0 0.0
    %2196 = vmatprep.subr.mxu0 0.0
    %2197 = vmatpush2.msra.mxu0 0.0
    %2198 = vmatprep.subr.mxu0 0.0
    %2199 = vmatpush2.msra.mxu0 0.0
    %2200 = vmatprep.subr.mxu0 0.0
    %2201 = vmatpush2.msra.mxu0 0.0
    %2202 = vmatprep.subr.mxu0 0.0
    %2203 = vmatpush2.msra.mxu0 0.0
    %2204 = vmatprep.subr.mxu0 0.0
    %2205 = vmatpush2.msra.mxu0 0.0
    %2206 = vmatprep.subr.mxu0 0.0
    %2207 = vmatpush2.msra.mxu0 0.0
    %2208 = vmatprep.subr.mxu0 0.0
    %2209 = vmatpush2.msra.mxu0 0.0
    %2210 = vmatprep.subr.mxu0 0.0
    %2211 = vmatpush2.msra.mxu0 0.0
    %2212 = vmatprep.subr.mxu0 0.0
    %2213 = vmatpush2.msra.mxu0 0.0
    %2214 = vmatprep.subr.mxu0 0.0
    %2215 = vmatpush2.msra.mxu0 0.0
    %2216 = vmatprep.subr.mxu0 0.0
    %2217 = vmatpush2.msra.mxu0 0.0
    %2218 = vmatprep.mubr.f32.mxu0 0.0
    %2219 = vmatmul.mubr.f32.gmra.mxu0 %v2149
    %v2220 = vpop.f32.mrf.mxu0
    %v2221 = vadd.f32 0.0, %v2220
    %v2222 = vpop.f32.mrf.mxu0
    %2223 = vmatprep.mubr.f32.mxu0 0.0
    %2224 = vmatmul.mubr.f32.gmra.mxu0 %v2152
    %v2225 = vpop.f32.mrf.mxu0
    %v2226 = vadd.f32 0.0, %v2225
    %v2227 = vpop.f32.mrf.mxu0
    %2228 = vdwg.mxu0
    %v2230 = vsel %vm1224, %v1978, 0
    %v2233 = vsel %vm1224, %v1983, 0
    %2235 = vmatprep.subr.mxu0 0.0
    %2236 = vmatpush1.msra.mxu0 0.0
    %2237 = vmatprep.subr.mxu0 0.0
    %2238 = vmatpush1.msra.mxu0 0.0
    %2239 = vmatprep.subr.mxu0 0.0
    %2240 = vmatpush1.msra.mxu0 0.0
    %2241 = vmatprep.subr.mxu0 0.0
    %2242 = vmatpush1.msra.mxu0 0.0
    %2243 = vmatprep.subr.mxu0 0.0
    %2244 = vmatpush1.msra.mxu0 0.0
    %2245 = vmatprep.subr.mxu0 0.0
    %2246 = vmatpush1.msra.mxu0 0.0
    %2247 = vmatprep.subr.mxu0 0.0
    %2248 = vmatpush1.msra.mxu0 0.0
    %2249 = vmatprep.subr.mxu0 0.0
    %2250 = vmatpush1.msra.mxu0 0.0
    %2251 = vmatprep.subr.mxu0 0.0
    %2252 = vmatpush1.msra.mxu0 0.0
    %2253 = vmatprep.subr.mxu0 0.0
    %2254 = vmatpush1.msra.mxu0 0.0
    %2255 = vmatprep.subr.mxu0 0.0
    %2256 = vmatpush1.msra.mxu0 0.0
    %2257 = vmatprep.subr.mxu0 0.0
    %2258 = vmatpush1.msra.mxu0 0.0
    %2259 = vmatprep.subr.mxu0 0.0
    %2260 = vmatpush1.msra.mxu0 0.0
    %2261 = vmatprep.subr.mxu0 0.0
    %2262 = vmatpush1.msra.mxu0 0.0
    %2263 = vmatprep.subr.mxu0 0.0
    %2264 = vmatpush1.msra.mxu0 0.0
    %2265 = vmatprep.subr.mxu0 0.0
    %2266 = vmatpush1.msra.mxu0 %v244
    %2267 = vmatprep.subr.mxu0 0.0
    %2268 = vmatpush2.msra.mxu0 0.0
    %2269 = vmatprep.subr.mxu0 0.0
    %2270 = vmatpush2.msra.mxu0 0.0
    %2271 = vmatprep.subr.mxu0 0.0
    %2272 = vmatpush2.msra.mxu0 0.0
    %2273 = vmatprep.subr.mxu0 0.0
    %2274 = vmatpush2.msra.mxu0 0.0
    %2275 = vmatprep.subr.mxu0 0.0
    %2276 = vmatpush2.msra.mxu0 0.0
    %2277 = vmatprep.subr.mxu0 0.0
    %2278 = vmatpush2.msra.mxu0 0.0
    %2279 = vmatprep.subr.mxu0 0.0
    %2280 = vmatpush2.msra.mxu0 0.0
    %2281 = vmatprep.subr.mxu0 0.0
    %2282 = vmatpush2.msra.mxu0 0.0
    %2283 = vmatprep.subr.mxu0 0.0
    %2284 = vmatpush2.msra.mxu0 0.0
    %2285 = vmatprep.subr.mxu0 0.0
    %2286 = vmatpush2.msra.mxu0 0.0
    %2287 = vmatprep.subr.mxu0 0.0
    %2288 = vmatpush2.msra.mxu0 0.0
    %2289 = vmatprep.subr.mxu0 0.0
    %2290 = vmatpush2.msra.mxu0 0.0
    %2291 = vmatprep.subr.mxu0 0.0
    %2292 = vmatpush2.msra.mxu0 0.0
    %2293 = vmatprep.subr.mxu0 0.0
    %2294 = vmatpush2.msra.mxu0 0.0
    %2295 = vmatprep.subr.mxu0 0.0
    %2296 = vmatpush2.msra.mxu0 0.0
    %2297 = vmatprep.subr.mxu0 0.0
    %2298 = vmatpush2.msra.mxu0 0.0
    %2299 = vmatprep.mubr.f32.mxu0 0.0
    %2300 = vmatmul.mubr.f32.gmra.mxu0 %v2230
    %v2301 = vpop.f32.mrf.mxu0
    %v2302 = vadd.f32 0.0, %v2301
    %v2303 = vpop.f32.mrf.mxu0
    %2304 = vmatprep.mubr.f32.mxu0 0.0
    %2305 = vmatmul.mubr.f32.gmra.mxu0 %v2233
    %v2306 = vpop.f32.mrf.mxu0
    %v2307 = vadd.f32 0.0, %v2306
    %v2308 = vpop.f32.mrf.mxu0
    %2309 = vdwg.mxu0
    %v2310 = vsel %vm137, %v2059, 0.0
    %v2311 = vsel %vm137, %v2140, 0.0
    %v2312 = vadd.f32 %v2310, %v2311
    %v2313 = vsel %vm137, %v2221, 0.0
    %v2314 = vadd.f32 %v2312, %v2313
    %v2315 = vsel %vm137, %v2302, 0.0
    %v2316 = vadd.f32 %v2314, %v2315
    %v2317 = vsel %vm137, %v2064, 0.0
    %v2318 = vsel %vm137, %v2145, 0.0
    %v2319 = vadd.f32 %v2317, %v2318
    %v2320 = vsel %vm137, %v2226, 0.0
    %v2321 = vadd.f32 %v2319, %v2320
    %v2322 = vsel %vm137, %v2307, 0.0
    %v2323 = vadd.f32 %v2321, %v2322
    %v2325 = vlaneseq
    %v2326 = vshrl.u32 %v2325, 7
    %v2327 = vsub.s32 0, %v2326
    %v2328 = vrot.slane %v245, %v2327
    %v2330 = vadd.f32 %v2316, %v2328
    %v2331 = vadd.f32 %v2323, %v2328
    %v2332 = vadd.f32 %v179, %v2330
    %v2333 = vadd.f32 %v180, %v2331
    %v2334 = vld [vmem:[%s13] sm:$0x1]
    %v2335 = vld [vmem:[%s15] sm:$0x1]
    %v2336 = vsel %vm137, %v2332, 0.0
    %2337 = vadd.xlane.f32.xlu0 %v2336
    %v2338 = vpop.xlane.xlu0 %2337
    %v2339 = vsel %vm137, %v2333, 0.0
    %2340 = vadd.xlane.f32.xlu0 %v2339
    %v2341 = vpop.xlane.xlu0 %2340
    %v2342 = vmul.f32 %v2338, %v144
    %v2343 = vmul.f32 %v2341, %v144
    %v2344 = vsub.f32 %v2332, %v2342
    %v2345 = vsub.f32 %v2333, %v2343
    %v2346 = vmul.f32 %v2344, %v2344
    %v2347 = vmul.f32 %v2345, %v2345
    %v2348 = vsel %vm137, %v2346, 0.0
    %2349 = vadd.xlane.f32.xlu0 %v2348
    %v2350 = vpop.xlane.xlu0 %2349
    %v2351 = vsel %vm137, %v2347, 0.0
    %2352 = vadd.xlane.f32.xlu0 %v2351
    %v2353 = vpop.xlane.xlu0 %2352
    %v2354 = vmul.f32 %v2350, %v144
    %v2355 = vmul.f32 %v2353, %v144
    %v2356 = vadd.f32 %v2354, 1e-05
    %v2357 = vadd.f32 %v2355, 1e-05
    %v2358 = vrsqrt.pop %v2356
    %v2359 = vrsqrt.pop %v2357
    %v2360 = vmul.f32 %v2344, %v2358
    %v2361 = vmul.f32 %v2345, %v2359
    %v2363 = vlaneseq
    %v2364 = vshrl.u32 %v2363, 7
    %v2365 = vsub.s32 0, %v2364
    %v2366 = vrot.slane %v2334, %v2365
    %v2368 = vmul.f32 %v2360, %v2366
    %v2369 = vmul.f32 %v2361, %v2366
    %v2371 = vlaneseq
    %v2372 = vshrl.u32 %v2371, 7
    %v2373 = vsub.s32 0, %v2372
    %v2374 = vrot.slane %v2335, %v2373
    %v2376 = vadd.f32 %v2368, %v2374
    %v2377 = vadd.f32 %v2369, %v2374
    %v2378 = vld [vmem:[%s33] sm:$0xff]
    %v2379 = vld [vmem:[%s33 + $0x8] sm:$0xff]
    %v2380 = vld [vmem:[%s33 + $0x10] sm:$0xff]
    %v2381 = vld [vmem:[%s33 + $0x18] sm:$0xff]
    %v2382 = vld [vmem:[%s33 + $0x20] sm:$0xff]
    %v2383 = vld [vmem:[%s33 + $0x28] sm:$0xff]
    %v2384 = vld [vmem:[%s33 + $0x30] sm:$0xff]
    %v2385 = vld [vmem:[%s33 + $0x38] sm:$0xff]
    %v2386 = vld [vmem:[%s33 + $0x40] sm:$0xff]
    %v2387 = vld [vmem:[%s33 + $0x48] sm:$0xff]
    %v2388 = vld [vmem:[%s33 + $0x50] sm:$0xff]
    %v2389 = vld [vmem:[%s33 + $0x58] sm:$0xff]
    %v2390 = vld [vmem:[%s33 + $0x60] sm:$0xff]
    %v2391 = vld [vmem:[%s33 + $0x68] sm:$0xff]
    %v2392 = vld [vmem:[%s33 + $0x70] sm:$0xff]
    %v2393 = vld [vmem:[%s33 + $0x78] sm:$0xff]
    %v2394 = vld [vmem:[%s35] sm:$0x1]
    %v2395 = vld [vmem:[%s35 + $0x1] sm:$0x1]
    %v2396 = vld [vmem:[%s35 + $0x2] sm:$0x1]
    %v2397 = vld [vmem:[%s35 + $0x3] sm:$0x1]
    %v2398 = vld [vmem:[%s37] sm:$0xff]
    %v2399 = vld [vmem:[%s37 + $0x8] sm:$0xff]
    %v2400 = vld [vmem:[%s37 + $0x10] sm:$0xff]
    %v2401 = vld [vmem:[%s37 + $0x18] sm:$0xff]
    %v2402 = vld [vmem:[%s37 + $0x20] sm:$0xff]
    %v2403 = vld [vmem:[%s37 + $0x28] sm:$0xff]
    %v2404 = vld [vmem:[%s37 + $0x30] sm:$0xff]
    %v2405 = vld [vmem:[%s37 + $0x38] sm:$0xff]
    %v2406 = vld [vmem:[%s37 + $0x40] sm:$0xff]
    %v2407 = vld [vmem:[%s37 + $0x48] sm:$0xff]
    %v2408 = vld [vmem:[%s37 + $0x50] sm:$0xff]
    %v2409 = vld [vmem:[%s37 + $0x58] sm:$0xff]
    %v2410 = vld [vmem:[%s37 + $0x60] sm:$0xff]
    %v2411 = vld [vmem:[%s37 + $0x68] sm:$0xff]
    %v2412 = vld [vmem:[%s37 + $0x70] sm:$0xff]
    %v2413 = vld [vmem:[%s37 + $0x78] sm:$0xff]
    %v2414 = vld [vmem:[%s39] sm:$0x1]
    %v2415 = vld [vmem:[%s39 + $0x1] sm:$0x1]
    %v2416 = vld [vmem:[%s39 + $0x2] sm:$0x1]
    %v2417 = vld [vmem:[%s39 + $0x3] sm:$0x1]
    %v2418 = vld [vmem:[%s41] sm:$0xff]
    %v2419 = vld [vmem:[%s41 + $0x8] sm:$0xff]
    %v2420 = vld [vmem:[%s41 + $0x10] sm:$0xff]
    %v2421 = vld [vmem:[%s41 + $0x18] sm:$0xff]
    %v2422 = vld [vmem:[%s41 + $0x20] sm:$0xff]
    %v2423 = vld [vmem:[%s41 + $0x28] sm:$0xff]
    %v2424 = vld [vmem:[%s41 + $0x30] sm:$0xff]
    %v2425 = vld [vmem:[%s41 + $0x38] sm:$0xff]
    %v2426 = vld [vmem:[%s41 + $0x40] sm:$0xff]
    %v2427 = vld [vmem:[%s41 + $0x48] sm:$0xff]
    %v2428 = vld [vmem:[%s41 + $0x50] sm:$0xff]
    %v2429 = vld [vmem:[%s41 + $0x58] sm:$0xff]
    %v2430 = vld [vmem:[%s41 + $0x60] sm:$0xff]
    %v2431 = vld [vmem:[%s41 + $0x68] sm:$0xff]
    %v2432 = vld [vmem:[%s41 + $0x70] sm:$0xff]
    %v2433 = vld [vmem:[%s41 + $0x78] sm:$0xff]
    %v2434 = vld [vmem:[%s43] sm:$0x1]
    %v2435 = vld [vmem:[%s43 + $0x1] sm:$0x1]
    %v2436 = vld [vmem:[%s43 + $0x2] sm:$0x1]
    %v2437 = vld [vmem:[%s43 + $0x3] sm:$0x1]
    %v2438 = vld [vmem:[%s45] sm:$0xff]
    %v2439 = vld [vmem:[%s45 + $0x8] sm:$0xff]
    %v2440 = vld [vmem:[%s45 + $0x10] sm:$0xff]
    %v2441 = vld [vmem:[%s45 + $0x18] sm:$0xff]
    %v2442 = vld [vmem:[%s47] sm:$0x1]
    %v2444 = vlaneseq
    %v2445 = vshrl.u32 %v2444, 7
    %v2446 = vsub.s32 0, %v2445
    %v2447 = vrot.slane %v2394, %v2446
    %v2450 = vsel %vm137, %v129, 0
    %v2453 = vsel %vm137, %v130, 0
    %2455 = vmatprep.subr.mxu0 0.0
    %2456 = vmatpush1.msra.mxu0 0.0
    %2457 = vmatprep.subr.mxu0 0.0
    %2458 = vmatpush1.msra.mxu0 0.0
    %2459 = vmatprep.subr.mxu0 0.0
    %2460 = vmatpush1.msra.mxu0 0.0
    %2461 = vmatprep.subr.mxu0 0.0
    %2462 = vmatpush1.msra.mxu0 0.0
    %2463 = vmatprep.subr.mxu0 0.0
    %2464 = vmatpush1.msra.mxu0 0.0
    %2465 = vmatprep.subr.mxu0 0.0
    %2466 = vmatpush1.msra.mxu0 0.0
    %2467 = vmatprep.subr.mxu0 0.0
    %2468 = vmatpush1.msra.mxu0 0.0
    %2469 = vmatprep.subr.mxu0 0.0
    %2470 = vmatpush1.msra.mxu0 0.0
    %2471 = vmatprep.subr.mxu0 0.0
    %2472 = vmatpush1.msra.mxu0 0.0
    %2473 = vmatprep.subr.mxu0 0.0
    %2474 = vmatpush1.msra.mxu0 0.0
    %2475 = vmatprep.subr.mxu0 0.0
    %2476 = vmatpush1.msra.mxu0 0.0
    %2477 = vmatprep.subr.mxu0 0.0
    %2478 = vmatpush1.msra.mxu0 0.0
    %2479 = vmatprep.subr.mxu0 0.0
    %2480 = vmatpush1.msra.mxu0 %v2381
    %2481 = vmatprep.subr.mxu0 0.0
    %2482 = vmatpush1.msra.mxu0 %v2380
    %2483 = vmatprep.subr.mxu0 0.0
    %2484 = vmatpush1.msra.mxu0 %v2379
    %2485 = vmatprep.subr.mxu0 0.0
    %2486 = vmatpush1.msra.mxu0 %v2378
    %2487 = vmatprep.subr.mxu0 0.0
    %2488 = vmatpush2.msra.mxu0 0.0
    %2489 = vmatprep.subr.mxu0 0.0
    %2490 = vmatpush2.msra.mxu0 0.0
    %2491 = vmatprep.subr.mxu0 0.0
    %2492 = vmatpush2.msra.mxu0 0.0
    %2493 = vmatprep.subr.mxu0 0.0
    %2494 = vmatpush2.msra.mxu0 0.0
    %2495 = vmatprep.subr.mxu0 0.0
    %2496 = vmatpush2.msra.mxu0 0.0
    %2497 = vmatprep.subr.mxu0 0.0
    %2498 = vmatpush2.msra.mxu0 0.0
    %2499 = vmatprep.subr.mxu0 0.0
    %2500 = vmatpush2.msra.mxu0 0.0
    %2501 = vmatprep.subr.mxu0 0.0
    %2502 = vmatpush2.msra.mxu0 0.0
    %2503 = vmatprep.subr.mxu0 0.0
    %2504 = vmatpush2.msra.mxu0 0.0
    %2505 = vmatprep.subr.mxu0 0.0
    %2506 = vmatpush2.msra.mxu0 0.0
    %2507 = vmatprep.subr.mxu0 0.0
    %2508 = vmatpush2.msra.mxu0 0.0
    %2509 = vmatprep.subr.mxu0 0.0
    %2510 = vmatpush2.msra.mxu0 0.0
    %2511 = vmatprep.subr.mxu0 0.0
    %2512 = vmatpush2.msra.mxu0 0.0
    %2513 = vmatprep.subr.mxu0 0.0
    %2514 = vmatpush2.msra.mxu0 0.0
    %2515 = vmatprep.subr.mxu0 0.0
    %2516 = vmatpush2.msra.mxu0 0.0
    %2517 = vmatprep.subr.mxu0 0.0
    %2518 = vmatpush2.msra.mxu0 0.0
    %2519 = vmatprep.mubr.f32.mxu0 0.0
    %2520 = vmatmul.mubr.f32.gmra.mxu0 %v2450
    %v2521 = vpop.f32.mrf.mxu0
    %v2522 = vadd.f32 %v2447, %v2521
    %v2523 = vpop.f32.mrf.mxu0
    %2524 = vmatprep.mubr.f32.mxu0 0.0
    %2525 = vmatmul.mubr.f32.gmra.mxu0 %v2453
    %v2526 = vpop.f32.mrf.mxu0
    %v2527 = vadd.f32 %v2447, %v2526
    %v2528 = vpop.f32.mrf.mxu0
    %2529 = vdwg.mxu0
    %v2531 = vlaneseq
    %v2532 = vshrl.u32 %v2531, 7
    %v2533 = vsub.s32 0, %v2532
    %v2534 = vrot.slane %v2395, %v2533
    %2536 = vmatprep.subr.mxu0 0.0
    %2537 = vmatpush1.msra.mxu0 0.0
    %2538 = vmatprep.subr.mxu0 0.0
    %2539 = vmatpush1.msra.mxu0 0.0
    %2540 = vmatprep.subr.mxu0 0.0
    %2541 = vmatpush1.msra.mxu0 0.0
    %2542 = vmatprep.subr.mxu0 0.0
    %2543 = vmatpush1.msra.mxu0 0.0
    %2544 = vmatprep.subr.mxu0 0.0
    %2545 = vmatpush1.msra.mxu0 0.0
    %2546 = vmatprep.subr.mxu0 0.0
    %2547 = vmatpush1.msra.mxu0 0.0
    %2548 = vmatprep.subr.mxu0 0.0
    %2549 = vmatpush1.msra.mxu0 0.0
    %2550 = vmatprep.subr.mxu0 0.0
    %2551 = vmatpush1.msra.mxu0 0.0
    %2552 = vmatprep.subr.mxu0 0.0
    %2553 = vmatpush1.msra.mxu0 0.0
    %2554 = vmatprep.subr.mxu0 0.0
    %2555 = vmatpush1.msra.mxu0 0.0
    %2556 = vmatprep.subr.mxu0 0.0
    %2557 = vmatpush1.msra.mxu0 0.0
    %2558 = vmatprep.subr.mxu0 0.0
    %2559 = vmatpush1.msra.mxu0 0.0
    %2560 = vmatprep.subr.mxu0 0.0
    %2561 = vmatpush1.msra.mxu0 %v2385
    %2562 = vmatprep.subr.mxu0 0.0
    %2563 = vmatpush1.msra.mxu0 %v2384
    %2564 = vmatprep.subr.mxu0 0.0
    %2565 = vmatpush1.msra.mxu0 %v2383
    %2566 = vmatprep.subr.mxu0 0.0
    %2567 = vmatpush1.msra.mxu0 %v2382
    %2568 = vmatprep.subr.mxu0 0.0
    %2569 = vmatpush2.msra.mxu0 0.0
    %2570 = vmatprep.subr.mxu0 0.0
    %2571 = vmatpush2.msra.mxu0 0.0
    %2572 = vmatprep.subr.mxu0 0.0
    %2573 = vmatpush2.msra.mxu0 0.0
    %2574 = vmatprep.subr.mxu0 0.0
    %2575 = vmatpush2.msra.mxu0 0.0
    %2576 = vmatprep.subr.mxu0 0.0
    %2577 = vmatpush2.msra.mxu0 0.0
    %2578 = vmatprep.subr.mxu0 0.0
    %2579 = vmatpush2.msra.mxu0 0.0
    %2580 = vmatprep.subr.mxu0 0.0
    %2581 = vmatpush2.msra.mxu0 0.0
    %2582 = vmatprep.subr.mxu0 0.0
    %2583 = vmatpush2.msra.mxu0 0.0
    %2584 = vmatprep.subr.mxu0 0.0
    %2585 = vmatpush2.msra.mxu0 0.0
    %2586 = vmatprep.subr.mxu0 0.0
    %2587 = vmatpush2.msra.mxu0 0.0
    %2588 = vmatprep.subr.mxu0 0.0
    %2589 = vmatpush2.msra.mxu0 0.0
    %2590 = vmatprep.subr.mxu0 0.0
    %2591 = vmatpush2.msra.mxu0 0.0
    %2592 = vmatprep.subr.mxu0 0.0
    %2593 = vmatpush2.msra.mxu0 0.0
    %2594 = vmatprep.subr.mxu0 0.0
    %2595 = vmatpush2.msra.mxu0 0.0
    %2596 = vmatprep.subr.mxu0 0.0
    %2597 = vmatpush2.msra.mxu0 0.0
    %2598 = vmatprep.subr.mxu0 0.0
    %2599 = vmatpush2.msra.mxu0 0.0
    %2600 = vmatprep.mubr.f32.mxu0 0.0
    %2601 = vmatmul.mubr.f32.gmra.mxu0 %v2450
    %v2602 = vpop.f32.mrf.mxu0
    %v2603 = vadd.f32 %v2534, %v2602
    %v2604 = vpop.f32.mrf.mxu0
    %2605 = vmatprep.mubr.f32.mxu0 0.0
    %2606 = vmatmul.mubr.f32.gmra.mxu0 %v2453
    %v2607 = vpop.f32.mrf.mxu0
    %v2608 = vadd.f32 %v2534, %v2607
    %v2609 = vpop.f32.mrf.mxu0
    %2610 = vdwg.mxu0
    %v2612 = vlaneseq
    %v2613 = vshrl.u32 %v2612, 7
    %v2614 = vsub.s32 0, %v2613
    %v2615 = vrot.slane %v2396, %v2614
    %2617 = vmatprep.subr.mxu0 0.0
    %2618 = vmatpush1.msra.mxu0 0.0
    %2619 = vmatprep.subr.mxu0 0.0
    %2620 = vmatpush1.msra.mxu0 0.0
    %2621 = vmatprep.subr.mxu0 0.0
    %2622 = vmatpush1.msra.mxu0 0.0
    %2623 = vmatprep.subr.mxu0 0.0
    %2624 = vmatpush1.msra.mxu0 0.0
    %2625 = vmatprep.subr.mxu0 0.0
    %2626 = vmatpush1.msra.mxu0 0.0
    %2627 = vmatprep.subr.mxu0 0.0
    %2628 = vmatpush1.msra.mxu0 0.0
    %2629 = vmatprep.subr.mxu0 0.0
    %2630 = vmatpush1.msra.mxu0 0.0
    %2631 = vmatprep.subr.mxu0 0.0
    %2632 = vmatpush1.msra.mxu0 0.0
    %2633 = vmatprep.subr.mxu0 0.0
    %2634 = vmatpush1.msra.mxu0 0.0
    %2635 = vmatprep.subr.mxu0 0.0
    %2636 = vmatpush1.msra.mxu0 0.0
    %2637 = vmatprep.subr.mxu0 0.0
    %2638 = vmatpush1.msra.mxu0 0.0
    %2639 = vmatprep.subr.mxu0 0.0
    %2640 = vmatpush1.msra.mxu0 0.0
    %2641 = vmatprep.subr.mxu0 0.0
    %2642 = vmatpush1.msra.mxu0 %v2389
    %2643 = vmatprep.subr.mxu0 0.0
    %2644 = vmatpush1.msra.mxu0 %v2388
    %2645 = vmatprep.subr.mxu0 0.0
    %2646 = vmatpush1.msra.mxu0 %v2387
    %2647 = vmatprep.subr.mxu0 0.0
    %2648 = vmatpush1.msra.mxu0 %v2386
    %2649 = vmatprep.subr.mxu0 0.0
    %2650 = vmatpush2.msra.mxu0 0.0
    %2651 = vmatprep.subr.mxu0 0.0
    %2652 = vmatpush2.msra.mxu0 0.0
    %2653 = vmatprep.subr.mxu0 0.0
    %2654 = vmatpush2.msra.mxu0 0.0
    %2655 = vmatprep.subr.mxu0 0.0
    %2656 = vmatpush2.msra.mxu0 0.0
    %2657 = vmatprep.subr.mxu0 0.0
    %2658 = vmatpush2.msra.mxu0 0.0
    %2659 = vmatprep.subr.mxu0 0.0
    %2660 = vmatpush2.msra.mxu0 0.0
    %2661 = vmatprep.subr.mxu0 0.0
    %2662 = vmatpush2.msra.mxu0 0.0
    %2663 = vmatprep.subr.mxu0 0.0
    %2664 = vmatpush2.msra.mxu0 0.0
    %2665 = vmatprep.subr.mxu0 0.0
    %2666 = vmatpush2.msra.mxu0 0.0
    %2667 = vmatprep.subr.mxu0 0.0
    %2668 = vmatpush2.msra.mxu0 0.0
    %2669 = vmatprep.subr.mxu0 0.0
    %2670 = vmatpush2.msra.mxu0 0.0
    %2671 = vmatprep.subr.mxu0 0.0
    %2672 = vmatpush2.msra.mxu0 0.0
    %2673 = vmatprep.subr.mxu0 0.0
    %2674 = vmatpush2.msra.mxu0 0.0
    %2675 = vmatprep.subr.mxu0 0.0
    %2676 = vmatpush2.msra.mxu0 0.0
    %2677 = vmatprep.subr.mxu0 0.0
    %2678 = vmatpush2.msra.mxu0 0.0
    %2679 = vmatprep.subr.mxu0 0.0
    %2680 = vmatpush2.msra.mxu0 0.0
    %2681 = vmatprep.mubr.f32.mxu0 0.0
    %2682 = vmatmul.mubr.f32.gmra.mxu0 %v2450
    %v2683 = vpop.f32.mrf.mxu0
    %v2684 = vadd.f32 %v2615, %v2683
    %v2685 = vpop.f32.mrf.mxu0
    %2686 = vmatprep.mubr.f32.mxu0 0.0
    %2687 = vmatmul.mubr.f32.gmra.mxu0 %v2453
    %v2688 = vpop.f32.mrf.mxu0
    %v2689 = vadd.f32 %v2615, %v2688
    %v2690 = vpop.f32.mrf.mxu0
    %2691 = vdwg.mxu0
    %v2693 = vlaneseq
    %v2694 = vshrl.u32 %v2693, 7
    %v2695 = vsub.s32 0, %v2694
    %v2696 = vrot.slane %v2397, %v2695
    %2698 = vmatprep.subr.mxu0 0.0
    %2699 = vmatpush1.msra.mxu0 0.0
    %2700 = vmatprep.subr.mxu0 0.0
    %2701 = vmatpush1.msra.mxu0 0.0
    %2702 = vmatprep.subr.mxu0 0.0
    %2703 = vmatpush1.msra.mxu0 0.0
    %2704 = vmatprep.subr.mxu0 0.0
    %2705 = vmatpush1.msra.mxu0 0.0
    %2706 = vmatprep.subr.mxu0 0.0
    %2707 = vmatpush1.msra.mxu0 0.0
    %2708 = vmatprep.subr.mxu0 0.0
    %2709 = vmatpush1.msra.mxu0 0.0
    %2710 = vmatprep.subr.mxu0 0.0
    %2711 = vmatpush1.msra.mxu0 0.0
    %2712 = vmatprep.subr.mxu0 0.0
    %2713 = vmatpush1.msra.mxu0 0.0
    %2714 = vmatprep.subr.mxu0 0.0
    %2715 = vmatpush1.msra.mxu0 0.0
    %2716 = vmatprep.subr.mxu0 0.0
    %2717 = vmatpush1.msra.mxu0 0.0
    %2718 = vmatprep.subr.mxu0 0.0
    %2719 = vmatpush1.msra.mxu0 0.0
    %2720 = vmatprep.subr.mxu0 0.0
    %2721 = vmatpush1.msra.mxu0 0.0
    %2722 = vmatprep.subr.mxu0 0.0
    %2723 = vmatpush1.msra.mxu0 %v2393
    %2724 = vmatprep.subr.mxu0 0.0
    %2725 = vmatpush1.msra.mxu0 %v2392
    %2726 = vmatprep.subr.mxu0 0.0
    %2727 = vmatpush1.msra.mxu0 %v2391
    %2728 = vmatprep.subr.mxu0 0.0
    %2729 = vmatpush1.msra.mxu0 %v2390
    %2730 = vmatprep.subr.mxu0 0.0
    %2731 = vmatpush2.msra.mxu0 0.0
    %2732 = vmatprep.subr.mxu0 0.0
    %2733 = vmatpush2.msra.mxu0 0.0
    %2734 = vmatprep.subr.mxu0 0.0
    %2735 = vmatpush2.msra.mxu0 0.0
    %2736 = vmatprep.subr.mxu0 0.0
    %2737 = vmatpush2.msra.mxu0 0.0
    %2738 = vmatprep.subr.mxu0 0.0
    %2739 = vmatpush2.msra.mxu0 0.0
    %2740 = vmatprep.subr.mxu0 0.0
    %2741 = vmatpush2.msra.mxu0 0.0
    %2742 = vmatprep.subr.mxu0 0.0
    %2743 = vmatpush2.msra.mxu0 0.0
    %2744 = vmatprep.subr.mxu0 0.0
    %2745 = vmatpush2.msra.mxu0 0.0
    %2746 = vmatprep.subr.mxu0 0.0
    %2747 = vmatpush2.msra.mxu0 0.0
    %2748 = vmatprep.subr.mxu0 0.0
    %2749 = vmatpush2.msra.mxu0 0.0
    %2750 = vmatprep.subr.mxu0 0.0
    %2751 = vmatpush2.msra.mxu0 0.0
    %2752 = vmatprep.subr.mxu0 0.0
    %2753 = vmatpush2.msra.mxu0 0.0
    %2754 = vmatprep.subr.mxu0 0.0
    %2755 = vmatpush2.msra.mxu0 0.0
    %2756 = vmatprep.subr.mxu0 0.0
    %2757 = vmatpush2.msra.mxu0 0.0
    %2758 = vmatprep.subr.mxu0 0.0
    %2759 = vmatpush2.msra.mxu0 0.0
    %2760 = vmatprep.subr.mxu0 0.0
    %2761 = vmatpush2.msra.mxu0 0.0
    %2762 = vmatprep.mubr.f32.mxu0 0.0
    %2763 = vmatmul.mubr.f32.gmra.mxu0 %v2450
    %v2764 = vpop.f32.mrf.mxu0
    %v2765 = vadd.f32 %v2696, %v2764
    %v2766 = vpop.f32.mrf.mxu0
    %2767 = vmatprep.mubr.f32.mxu0 0.0
    %2768 = vmatmul.mubr.f32.gmra.mxu0 %v2453
    %v2769 = vpop.f32.mrf.mxu0
    %v2770 = vadd.f32 %v2696, %v2769
    %v2771 = vpop.f32.mrf.mxu0
    %2772 = vdwg.mxu0
    %v2774 = vlaneseq
    %v2775 = vshrl.u32 %v2774, 7
    %v2776 = vsub.s32 0, %v2775
    %v2777 = vrot.slane %v2414, %v2776
    %2779 = vmatprep.subr.mxu0 0.0
    %2780 = vmatpush1.msra.mxu0 0.0
    %2781 = vmatprep.subr.mxu0 0.0
    %2782 = vmatpush1.msra.mxu0 0.0
    %2783 = vmatprep.subr.mxu0 0.0
    %2784 = vmatpush1.msra.mxu0 0.0
    %2785 = vmatprep.subr.mxu0 0.0
    %2786 = vmatpush1.msra.mxu0 0.0
    %2787 = vmatprep.subr.mxu0 0.0
    %2788 = vmatpush1.msra.mxu0 0.0
    %2789 = vmatprep.subr.mxu0 0.0
    %2790 = vmatpush1.msra.mxu0 0.0
    %2791 = vmatprep.subr.mxu0 0.0
    %2792 = vmatpush1.msra.mxu0 0.0
    %2793 = vmatprep.subr.mxu0 0.0
    %2794 = vmatpush1.msra.mxu0 0.0
    %2795 = vmatprep.subr.mxu0 0.0
    %2796 = vmatpush1.msra.mxu0 0.0
    %2797 = vmatprep.subr.mxu0 0.0
    %2798 = vmatpush1.msra.mxu0 0.0
    %2799 = vmatprep.subr.mxu0 0.0
    %2800 = vmatpush1.msra.mxu0 0.0
    %2801 = vmatprep.subr.mxu0 0.0
    %2802 = vmatpush1.msra.mxu0 0.0
    %2803 = vmatprep.subr.mxu0 0.0
    %2804 = vmatpush1.msra.mxu0 %v2401
    %2805 = vmatprep.subr.mxu0 0.0
    %2806 = vmatpush1.msra.mxu0 %v2400
    %2807 = vmatprep.subr.mxu0 0.0
    %2808 = vmatpush1.msra.mxu0 %v2399
    %2809 = vmatprep.subr.mxu0 0.0
    %2810 = vmatpush1.msra.mxu0 %v2398
    %2811 = vmatprep.subr.mxu0 0.0
    %2812 = vmatpush2.msra.mxu0 0.0
    %2813 = vmatprep.subr.mxu0 0.0
    %2814 = vmatpush2.msra.mxu0 0.0
    %2815 = vmatprep.subr.mxu0 0.0
    %2816 = vmatpush2.msra.mxu0 0.0
    %2817 = vmatprep.subr.mxu0 0.0
    %2818 = vmatpush2.msra.mxu0 0.0
    %2819 = vmatprep.subr.mxu0 0.0
    %2820 = vmatpush2.msra.mxu0 0.0
    %2821 = vmatprep.subr.mxu0 0.0
    %2822 = vmatpush2.msra.mxu0 0.0
    %2823 = vmatprep.subr.mxu0 0.0
    %2824 = vmatpush2.msra.mxu0 0.0
    %2825 = vmatprep.subr.mxu0 0.0
    %2826 = vmatpush2.msra.mxu0 0.0
    %2827 = vmatprep.subr.mxu0 0.0
    %2828 = vmatpush2.msra.mxu0 0.0
    %2829 = vmatprep.subr.mxu0 0.0
    %2830 = vmatpush2.msra.mxu0 0.0
    %2831 = vmatprep.subr.mxu0 0.0
    %2832 = vmatpush2.msra.mxu0 0.0
    %2833 = vmatprep.subr.mxu0 0.0
    %2834 = vmatpush2.msra.mxu0 0.0
    %2835 = vmatprep.subr.mxu0 0.0
    %2836 = vmatpush2.msra.mxu0 0.0
    %2837 = vmatprep.subr.mxu0 0.0
    %2838 = vmatpush2.msra.mxu0 0.0
    %2839 = vmatprep.subr.mxu0 0.0
    %2840 = vmatpush2.msra.mxu0 0.0
    %2841 = vmatprep.subr.mxu0 0.0
    %2842 = vmatpush2.msra.mxu0 0.0
    %2843 = vmatprep.mubr.f32.mxu0 0.0
    %2844 = vmatmul.mubr.f32.gmra.mxu0 %v2450
    %v2845 = vpop.f32.mrf.mxu0
    %v2846 = vadd.f32 %v2777, %v2845
    %v2847 = vpop.f32.mrf.mxu0
    %2848 = vmatprep.mubr.f32.mxu0 0.0
    %2849 = vmatmul.mubr.f32.gmra.mxu0 %v2453
    %v2850 = vpop.f32.mrf.mxu0
    %v2851 = vadd.f32 %v2777, %v2850
    %v2852 = vpop.f32.mrf.mxu0
    %2853 = vdwg.mxu0
    %v2855 = vlaneseq
    %v2856 = vshrl.u32 %v2855, 7
    %v2857 = vsub.s32 0, %v2856
    %v2858 = vrot.slane %v2415, %v2857
    %2860 = vmatprep.subr.mxu0 0.0
    %2861 = vmatpush1.msra.mxu0 0.0
    %2862 = vmatprep.subr.mxu0 0.0
    %2863 = vmatpush1.msra.mxu0 0.0
    %2864 = vmatprep.subr.mxu0 0.0
    %2865 = vmatpush1.msra.mxu0 0.0
    %2866 = vmatprep.subr.mxu0 0.0
    %2867 = vmatpush1.msra.mxu0 0.0
    %2868 = vmatprep.subr.mxu0 0.0
    %2869 = vmatpush1.msra.mxu0 0.0
    %2870 = vmatprep.subr.mxu0 0.0
    %2871 = vmatpush1.msra.mxu0 0.0
    %2872 = vmatprep.subr.mxu0 0.0
    %2873 = vmatpush1.msra.mxu0 0.0
    %2874 = vmatprep.subr.mxu0 0.0
    %2875 = vmatpush1.msra.mxu0 0.0
    %2876 = vmatprep.subr.mxu0 0.0
    %2877 = vmatpush1.msra.mxu0 0.0
    %2878 = vmatprep.subr.mxu0 0.0
    %2879 = vmatpush1.msra.mxu0 0.0
    %2880 = vmatprep.subr.mxu0 0.0
    %2881 = vmatpush1.msra.mxu0 0.0
    %2882 = vmatprep.subr.mxu0 0.0
    %2883 = vmatpush1.msra.mxu0 0.0
    %2884 = vmatprep.subr.mxu0 0.0
    %2885 = vmatpush1.msra.mxu0 %v2405
    %2886 = vmatprep.subr.mxu0 0.0
    %2887 = vmatpush1.msra.mxu0 %v2404
    %2888 = vmatprep.subr.mxu0 0.0
    %2889 = vmatpush1.msra.mxu0 %v2403
    %2890 = vmatprep.subr.mxu0 0.0
    %2891 = vmatpush1.msra.mxu0 %v2402
    %2892 = vmatprep.subr.mxu0 0.0
    %2893 = vmatpush2.msra.mxu0 0.0
    %2894 = vmatprep.subr.mxu0 0.0
    %2895 = vmatpush2.msra.mxu0 0.0
    %2896 = vmatprep.subr.mxu0 0.0
    %2897 = vmatpush2.msra.mxu0 0.0
    %2898 = vmatprep.subr.mxu0 0.0
    %2899 = vmatpush2.msra.mxu0 0.0
    %2900 = vmatprep.subr.mxu0 0.0
    %2901 = vmatpush2.msra.mxu0 0.0
    %2902 = vmatprep.subr.mxu0 0.0
    %2903 = vmatpush2.msra.mxu0 0.0
    %2904 = vmatprep.subr.mxu0 0.0
    %2905 = vmatpush2.msra.mxu0 0.0
    %2906 = vmatprep.subr.mxu0 0.0
    %2907 = vmatpush2.msra.mxu0 0.0
    %2908 = vmatprep.subr.mxu0 0.0
    %2909 = vmatpush2.msra.mxu0 0.0
    %2910 = vmatprep.subr.mxu0 0.0
    %2911 = vmatpush2.msra.mxu0 0.0
    %2912 = vmatprep.subr.mxu0 0.0
    %2913 = vmatpush2.msra.mxu0 0.0
    %2914 = vmatprep.subr.mxu0 0.0
    %2915 = vmatpush2.msra.mxu0 0.0
    %2916 = vmatprep.subr.mxu0 0.0
    %2917 = vmatpush2.msra.mxu0 0.0
    %2918 = vmatprep.subr.mxu0 0.0
    %2919 = vmatpush2.msra.mxu0 0.0
    %2920 = vmatprep.subr.mxu0 0.0
    %2921 = vmatpush2.msra.mxu0 0.0
    %2922 = vmatprep.subr.mxu0 0.0
    %2923 = vmatpush2.msra.mxu0 0.0
    %2924 = vmatprep.mubr.f32.mxu0 0.0
    %2925 = vmatmul.mubr.f32.gmra.mxu0 %v2450
    %v2926 = vpop.f32.mrf.mxu0
    %v2927 = vadd.f32 %v2858, %v2926
    %v2928 = vpop.f32.mrf.mxu0
    %2929 = vmatprep.mubr.f32.mxu0 0.0
    %2930 = vmatmul.mubr.f32.gmra.mxu0 %v2453
    %v2931 = vpop.f32.mrf.mxu0
    %v2932 = vadd.f32 %v2858, %v2931
    %v2933 = vpop.f32.mrf.mxu0
    %2934 = vdwg.mxu0
    %v2936 = vlaneseq
    %v2937 = vshrl.u32 %v2936, 7
    %v2938 = vsub.s32 0, %v2937
    %v2939 = vrot.slane %v2416, %v2938
    %2941 = vmatprep.subr.mxu0 0.0
    %2942 = vmatpush1.msra.mxu0 0.0
    %2943 = vmatprep.subr.mxu0 0.0
    %2944 = vmatpush1.msra.mxu0 0.0
    %2945 = vmatprep.subr.mxu0 0.0
    %2946 = vmatpush1.msra.mxu0 0.0
    %2947 = vmatprep.subr.mxu0 0.0
    %2948 = vmatpush1.msra.mxu0 0.0
    %2949 = vmatprep.subr.mxu0 0.0
    %2950 = vmatpush1.msra.mxu0 0.0
    %2951 = vmatprep.subr.mxu0 0.0
    %2952 = vmatpush1.msra.mxu0 0.0
    %2953 = vmatprep.subr.mxu0 0.0
    %2954 = vmatpush1.msra.mxu0 0.0
    %2955 = vmatprep.subr.mxu0 0.0
    %2956 = vmatpush1.msra.mxu0 0.0
    %2957 = vmatprep.subr.mxu0 0.0
    %2958 = vmatpush1.msra.mxu0 0.0
    %2959 = vmatprep.subr.mxu0 0.0
    %2960 = vmatpush1.msra.mxu0 0.0
    %2961 = vmatprep.subr.mxu0 0.0
    %2962 = vmatpush1.msra.mxu0 0.0
    %2963 = vmatprep.subr.mxu0 0.0
    %2964 = vmatpush1.msra.mxu0 0.0
    %2965 = vmatprep.subr.mxu0 0.0
    %2966 = vmatpush1.msra.mxu0 %v2409
    %2967 = vmatprep.subr.mxu0 0.0
    %2968 = vmatpush1.msra.mxu0 %v2408
    %2969 = vmatprep.subr.mxu0 0.0
    %2970 = vmatpush1.msra.mxu0 %v2407
    %2971 = vmatprep.subr.mxu0 0.0
    %2972 = vmatpush1.msra.mxu0 %v2406
    %2973 = vmatprep.subr.mxu0 0.0
    %2974 = vmatpush2.msra.mxu0 0.0
    %2975 = vmatprep.subr.mxu0 0.0
    %2976 = vmatpush2.msra.mxu0 0.0
    %2977 = vmatprep.subr.mxu0 0.0
    %2978 = vmatpush2.msra.mxu0 0.0
    %2979 = vmatprep.subr.mxu0 0.0
    %2980 = vmatpush2.msra.mxu0 0.0
    %2981 = vmatprep.subr.mxu0 0.0
    %2982 = vmatpush2.msra.mxu0 0.0
    %2983 = vmatprep.subr.mxu0 0.0
    %2984 = vmatpush2.msra.mxu0 0.0
    %2985 = vmatprep.subr.mxu0 0.0
    %2986 = vmatpush2.msra.mxu0 0.0
    %2987 = vmatprep.subr.mxu0 0.0
    %2988 = vmatpush2.msra.mxu0 0.0
    %2989 = vmatprep.subr.mxu0 0.0
    %2990 = vmatpush2.msra.mxu0 0.0
    %2991 = vmatprep.subr.mxu0 0.0
    %2992 = vmatpush2.msra.mxu0 0.0
    %2993 = vmatprep.subr.mxu0 0.0
    %2994 = vmatpush2.msra.mxu0 0.0
    %2995 = vmatprep.subr.mxu0 0.0
    %2996 = vmatpush2.msra.mxu0 0.0
    %2997 = vmatprep.subr.mxu0 0.0
    %2998 = vmatpush2.msra.mxu0 0.0
    %2999 = vmatprep.subr.mxu0 0.0
    %3000 = vmatpush2.msra.mxu0 0.0
    %3001 = vmatprep.subr.mxu0 0.0
    %3002 = vmatpush2.msra.mxu0 0.0
    %3003 = vmatprep.subr.mxu0 0.0
    %3004 = vmatpush2.msra.mxu0 0.0
    %3005 = vmatprep.mubr.f32.mxu0 0.0
    %3006 = vmatmul.mubr.f32.gmra.mxu0 %v2450
    %v3007 = vpop.f32.mrf.mxu0
    %v3008 = vadd.f32 %v2939, %v3007
    %v3009 = vpop.f32.mrf.mxu0
    %3010 = vmatprep.mubr.f32.mxu0 0.0
    %3011 = vmatmul.mubr.f32.gmra.mxu0 %v2453
    %v3012 = vpop.f32.mrf.mxu0
    %v3013 = vadd.f32 %v2939, %v3012
    %v3014 = vpop.f32.mrf.mxu0
    %3015 = vdwg.mxu0
    %v3017 = vlaneseq
    %v3018 = vshrl.u32 %v3017, 7
    %v3019 = vsub.s32 0, %v3018
    %v3020 = vrot.slane %v2417, %v3019
    %3022 = vmatprep.subr.mxu0 0.0
    %3023 = vmatpush1.msra.mxu0 0.0
    %3024 = vmatprep.subr.mxu0 0.0
    %3025 = vmatpush1.msra.mxu0 0.0
    %3026 = vmatprep.subr.mxu0 0.0
    %3027 = vmatpush1.msra.mxu0 0.0
    %3028 = vmatprep.subr.mxu0 0.0
    %3029 = vmatpush1.msra.mxu0 0.0
    %3030 = vmatprep.subr.mxu0 0.0
    %3031 = vmatpush1.msra.mxu0 0.0
    %3032 = vmatprep.subr.mxu0 0.0
    %3033 = vmatpush1.msra.mxu0 0.0
    %3034 = vmatprep.subr.mxu0 0.0
    %3035 = vmatpush1.msra.mxu0 0.0
    %3036 = vmatprep.subr.mxu0 0.0
    %3037 = vmatpush1.msra.mxu0 0.0
    %3038 = vmatprep.subr.mxu0 0.0
    %3039 = vmatpush1.msra.mxu0 0.0
    %3040 = vmatprep.subr.mxu0 0.0
    %3041 = vmatpush1.msra.mxu0 0.0
    %3042 = vmatprep.subr.mxu0 0.0
    %3043 = vmatpush1.msra.mxu0 0.0
    %3044 = vmatprep.subr.mxu0 0.0
    %3045 = vmatpush1.msra.mxu0 0.0
    %3046 = vmatprep.subr.mxu0 0.0
    %3047 = vmatpush1.msra.mxu0 %v2413
    %3048 = vmatprep.subr.mxu0 0.0
    %3049 = vmatpush1.msra.mxu0 %v2412
    %3050 = vmatprep.subr.mxu0 0.0
    %3051 = vmatpush1.msra.mxu0 %v2411
    %3052 = vmatprep.subr.mxu0 0.0
    %3053 = vmatpush1.msra.mxu0 %v2410
    %3054 = vmatprep.subr.mxu0 0.0
    %3055 = vmatpush2.msra.mxu0 0.0
    %3056 = vmatprep.subr.mxu0 0.0
    %3057 = vmatpush2.msra.mxu0 0.0
    %3058 = vmatprep.subr.mxu0 0.0
    %3059 = vmatpush2.msra.mxu0 0.0
    %3060 = vmatprep.subr.mxu0 0.0
    %3061 = vmatpush2.msra.mxu0 0.0
    %3062 = vmatprep.subr.mxu0 0.0
    %3063 = vmatpush2.msra.mxu0 0.0
    %3064 = vmatprep.subr.mxu0 0.0
    %3065 = vmatpush2.msra.mxu0 0.0
    %3066 = vmatprep.subr.mxu0 0.0
    %3067 = vmatpush2.msra.mxu0 0.0
    %3068 = vmatprep.subr.mxu0 0.0
    %3069 = vmatpush2.msra.mxu0 0.0
    %3070 = vmatprep.subr.mxu0 0.0
    %3071 = vmatpush2.msra.mxu0 0.0
    %3072 = vmatprep.subr.mxu0 0.0
    %3073 = vmatpush2.msra.mxu0 0.0
    %3074 = vmatprep.subr.mxu0 0.0
    %3075 = vmatpush2.msra.mxu0 0.0
    %3076 = vmatprep.subr.mxu0 0.0
    %3077 = vmatpush2.msra.mxu0 0.0
    %3078 = vmatprep.subr.mxu0 0.0
    %3079 = vmatpush2.msra.mxu0 0.0
    %3080 = vmatprep.subr.mxu0 0.0
    %3081 = vmatpush2.msra.mxu0 0.0
    %3082 = vmatprep.subr.mxu0 0.0
    %3083 = vmatpush2.msra.mxu0 0.0
    %3084 = vmatprep.subr.mxu0 0.0
    %3085 = vmatpush2.msra.mxu0 0.0
    %3086 = vmatprep.mubr.f32.mxu0 0.0
    %3087 = vmatmul.mubr.f32.gmra.mxu0 %v2450
    %v3088 = vpop.f32.mrf.mxu0
    %v3089 = vadd.f32 %v3020, %v3088
    %v3090 = vpop.f32.mrf.mxu0
    %3091 = vmatprep.mubr.f32.mxu0 0.0
    %3092 = vmatmul.mubr.f32.gmra.mxu0 %v2453
    %v3093 = vpop.f32.mrf.mxu0
    %v3094 = vadd.f32 %v3020, %v3093
    %v3095 = vpop.f32.mrf.mxu0
    %3096 = vdwg.mxu0
    %v3098 = vlaneseq
    %v3099 = vshrl.u32 %v3098, 7
    %v3100 = vsub.s32 0, %v3099
    %v3101 = vrot.slane %v2434, %v3100
    %v3104 = vsel %vm137, %v2376, 0
    %v3107 = vsel %vm137, %v2377, 0
    %3109 = vmatprep.subr.mxu0 0.0
    %3110 = vmatpush1.msra.mxu0 0.0
    %3111 = vmatprep.subr.mxu0 0.0
    %3112 = vmatpush1.msra.mxu0 0.0
    %3113 = vmatprep.subr.mxu0 0.0
    %3114 = vmatpush1.msra.mxu0 0.0
    %3115 = vmatprep.subr.mxu0 0.0
    %3116 = vmatpush1.msra.mxu0 0.0
    %3117 = vmatprep.subr.mxu0 0.0
    %3118 = vmatpush1.msra.mxu0 0.0
    %3119 = vmatprep.subr.mxu0 0.0
    %3120 = vmatpush1.msra.mxu0 0.0
    %3121 = vmatprep.subr.mxu0 0.0
    %3122 = vmatpush1.msra.mxu0 0.0
    %3123 = vmatprep.subr.mxu0 0.0
    %3124 = vmatpush1.msra.mxu0 0.0
    %3125 = vmatprep.subr.mxu0 0.0
    %3126 = vmatpush1.msra.mxu0 0.0
    %3127 = vmatprep.subr.mxu0 0.0
    %3128 = vmatpush1.msra.mxu0 0.0
    %3129 = vmatprep.subr.mxu0 0.0
    %3130 = vmatpush1.msra.mxu0 0.0
    %3131 = vmatprep.subr.mxu0 0.0
    %3132 = vmatpush1.msra.mxu0 0.0
    %3133 = vmatprep.subr.mxu0 0.0
    %3134 = vmatpush1.msra.mxu0 %v2421
    %3135 = vmatprep.subr.mxu0 0.0
    %3136 = vmatpush1.msra.mxu0 %v2420
    %3137 = vmatprep.subr.mxu0 0.0
    %3138 = vmatpush1.msra.mxu0 %v2419
    %3139 = vmatprep.subr.mxu0 0.0
    %3140 = vmatpush1.msra.mxu0 %v2418
    %3141 = vmatprep.subr.mxu0 0.0
    %3142 = vmatpush2.msra.mxu0 0.0
    %3143 = vmatprep.subr.mxu0 0.0
    %3144 = vmatpush2.msra.mxu0 0.0
    %3145 = vmatprep.subr.mxu0 0.0
    %3146 = vmatpush2.msra.mxu0 0.0
    %3147 = vmatprep.subr.mxu0 0.0
    %3148 = vmatpush2.msra.mxu0 0.0
    %3149 = vmatprep.subr.mxu0 0.0
    %3150 = vmatpush2.msra.mxu0 0.0
    %3151 = vmatprep.subr.mxu0 0.0
    %3152 = vmatpush2.msra.mxu0 0.0
    %3153 = vmatprep.subr.mxu0 0.0
    %3154 = vmatpush2.msra.mxu0 0.0
    %3155 = vmatprep.subr.mxu0 0.0
    %3156 = vmatpush2.msra.mxu0 0.0
    %3157 = vmatprep.subr.mxu0 0.0
    %3158 = vmatpush2.msra.mxu0 0.0
    %3159 = vmatprep.subr.mxu0 0.0
    %3160 = vmatpush2.msra.mxu0 0.0
    %3161 = vmatprep.subr.mxu0 0.0
    %3162 = vmatpush2.msra.mxu0 0.0
    %3163 = vmatprep.subr.mxu0 0.0
    %3164 = vmatpush2.msra.mxu0 0.0
    %3165 = vmatprep.subr.mxu0 0.0
    %3166 = vmatpush2.msra.mxu0 0.0
    %3167 = vmatprep.subr.mxu0 0.0
    %3168 = vmatpush2.msra.mxu0 0.0
    %3169 = vmatprep.subr.mxu0 0.0
    %3170 = vmatpush2.msra.mxu0 0.0
    %3171 = vmatprep.subr.mxu0 0.0
    %3172 = vmatpush2.msra.mxu0 0.0
    %3173 = vmatprep.mubr.f32.mxu0 0.0
    %3174 = vmatmul.mubr.f32.gmra.mxu0 %v3104
    %v3175 = vpop.f32.mrf.mxu0
    %v3176 = vadd.f32 %v3101, %v3175
    %v3177 = vpop.f32.mrf.mxu0
    %3178 = vmatprep.mubr.f32.mxu0 0.0
    %3179 = vmatmul.mubr.f32.gmra.mxu0 %v3107
    %v3180 = vpop.f32.mrf.mxu0
    %v3181 = vadd.f32 %v3101, %v3180
    %v3182 = vpop.f32.mrf.mxu0
    %3183 = vdwg.mxu0
    %v3185 = vlaneseq
    %v3186 = vshrl.u32 %v3185, 7
    %v3187 = vsub.s32 0, %v3186
    %v3188 = vrot.slane %v2435, %v3187
    %3190 = vmatprep.subr.mxu0 0.0
    %3191 = vmatpush1.msra.mxu0 0.0
    %3192 = vmatprep.subr.mxu0 0.0
    %3193 = vmatpush1.msra.mxu0 0.0
    %3194 = vmatprep.subr.mxu0 0.0
    %3195 = vmatpush1.msra.mxu0 0.0
    %3196 = vmatprep.subr.mxu0 0.0
    %3197 = vmatpush1.msra.mxu0 0.0
    %3198 = vmatprep.subr.mxu0 0.0
    %3199 = vmatpush1.msra.mxu0 0.0
    %3200 = vmatprep.subr.mxu0 0.0
    %3201 = vmatpush1.msra.mxu0 0.0
    %3202 = vmatprep.subr.mxu0 0.0
    %3203 = vmatpush1.msra.mxu0 0.0
    %3204 = vmatprep.subr.mxu0 0.0
    %3205 = vmatpush1.msra.mxu0 0.0
    %3206 = vmatprep.subr.mxu0 0.0
    %3207 = vmatpush1.msra.mxu0 0.0
    %3208 = vmatprep.subr.mxu0 0.0
    %3209 = vmatpush1.msra.mxu0 0.0
    %3210 = vmatprep.subr.mxu0 0.0
    %3211 = vmatpush1.msra.mxu0 0.0
    %3212 = vmatprep.subr.mxu0 0.0
    %3213 = vmatpush1.msra.mxu0 0.0
    %3214 = vmatprep.subr.mxu0 0.0
    %3215 = vmatpush1.msra.mxu0 %v2425
    %3216 = vmatprep.subr.mxu0 0.0
    %3217 = vmatpush1.msra.mxu0 %v2424
    %3218 = vmatprep.subr.mxu0 0.0
    %3219 = vmatpush1.msra.mxu0 %v2423
    %3220 = vmatprep.subr.mxu0 0.0
    %3221 = vmatpush1.msra.mxu0 %v2422
    %3222 = vmatprep.subr.mxu0 0.0
    %3223 = vmatpush2.msra.mxu0 0.0
    %3224 = vmatprep.subr.mxu0 0.0
    %3225 = vmatpush2.msra.mxu0 0.0
    %3226 = vmatprep.subr.mxu0 0.0
    %3227 = vmatpush2.msra.mxu0 0.0
    %3228 = vmatprep.subr.mxu0 0.0
    %3229 = vmatpush2.msra.mxu0 0.0
    %3230 = vmatprep.subr.mxu0 0.0
    %3231 = vmatpush2.msra.mxu0 0.0
    %3232 = vmatprep.subr.mxu0 0.0
    %3233 = vmatpush2.msra.mxu0 0.0
    %3234 = vmatprep.subr.mxu0 0.0
    %3235 = vmatpush2.msra.mxu0 0.0
    %3236 = vmatprep.subr.mxu0 0.0
    %3237 = vmatpush2.msra.mxu0 0.0
    %3238 = vmatprep.subr.mxu0 0.0
    %3239 = vmatpush2.msra.mxu0 0.0
    %3240 = vmatprep.subr.mxu0 0.0
    %3241 = vmatpush2.msra.mxu0 0.0
    %3242 = vmatprep.subr.mxu0 0.0
    %3243 = vmatpush2.msra.mxu0 0.0
    %3244 = vmatprep.subr.mxu0 0.0
    %3245 = vmatpush2.msra.mxu0 0.0
    %3246 = vmatprep.subr.mxu0 0.0
    %3247 = vmatpush2.msra.mxu0 0.0
    %3248 = vmatprep.subr.mxu0 0.0
    %3249 = vmatpush2.msra.mxu0 0.0
    %3250 = vmatprep.subr.mxu0 0.0
    %3251 = vmatpush2.msra.mxu0 0.0
    %3252 = vmatprep.subr.mxu0 0.0
    %3253 = vmatpush2.msra.mxu0 0.0
    %3254 = vmatprep.mubr.f32.mxu0 0.0
    %3255 = vmatmul.mubr.f32.gmra.mxu0 %v3104
    %v3256 = vpop.f32.mrf.mxu0
    %v3257 = vadd.f32 %v3188, %v3256
    %v3258 = vpop.f32.mrf.mxu0
    %3259 = vmatprep.mubr.f32.mxu0 0.0
    %3260 = vmatmul.mubr.f32.gmra.mxu0 %v3107
    %v3261 = vpop.f32.mrf.mxu0
    %v3262 = vadd.f32 %v3188, %v3261
    %v3263 = vpop.f32.mrf.mxu0
    %3264 = vdwg.mxu0
    %v3266 = vlaneseq
    %v3267 = vshrl.u32 %v3266, 7
    %v3268 = vsub.s32 0, %v3267
    %v3269 = vrot.slane %v2436, %v3268
    %3271 = vmatprep.subr.mxu0 0.0
    %3272 = vmatpush1.msra.mxu0 0.0
    %3273 = vmatprep.subr.mxu0 0.0
    %3274 = vmatpush1.msra.mxu0 0.0
    %3275 = vmatprep.subr.mxu0 0.0
    %3276 = vmatpush1.msra.mxu0 0.0
    %3277 = vmatprep.subr.mxu0 0.0
    %3278 = vmatpush1.msra.mxu0 0.0
    %3279 = vmatprep.subr.mxu0 0.0
    %3280 = vmatpush1.msra.mxu0 0.0
    %3281 = vmatprep.subr.mxu0 0.0
    %3282 = vmatpush1.msra.mxu0 0.0
    %3283 = vmatprep.subr.mxu0 0.0
    %3284 = vmatpush1.msra.mxu0 0.0
    %3285 = vmatprep.subr.mxu0 0.0
    %3286 = vmatpush1.msra.mxu0 0.0
    %3287 = vmatprep.subr.mxu0 0.0
    %3288 = vmatpush1.msra.mxu0 0.0
    %3289 = vmatprep.subr.mxu0 0.0
    %3290 = vmatpush1.msra.mxu0 0.0
    %3291 = vmatprep.subr.mxu0 0.0
    %3292 = vmatpush1.msra.mxu0 0.0
    %3293 = vmatprep.subr.mxu0 0.0
    %3294 = vmatpush1.msra.mxu0 0.0
    %3295 = vmatprep.subr.mxu0 0.0
    %3296 = vmatpush1.msra.mxu0 %v2429
    %3297 = vmatprep.subr.mxu0 0.0
    %3298 = vmatpush1.msra.mxu0 %v2428
    %3299 = vmatprep.subr.mxu0 0.0
    %3300 = vmatpush1.msra.mxu0 %v2427
    %3301 = vmatprep.subr.mxu0 0.0
    %3302 = vmatpush1.msra.mxu0 %v2426
    %3303 = vmatprep.subr.mxu0 0.0
    %3304 = vmatpush2.msra.mxu0 0.0
    %3305 = vmatprep.subr.mxu0 0.0
    %3306 = vmatpush2.msra.mxu0 0.0
    %3307 = vmatprep.subr.mxu0 0.0
    %3308 = vmatpush2.msra.mxu0 0.0
    %3309 = vmatprep.subr.mxu0 0.0
    %3310 = vmatpush2.msra.mxu0 0.0
    %3311 = vmatprep.subr.mxu0 0.0
    %3312 = vmatpush2.msra.mxu0 0.0
    %3313 = vmatprep.subr.mxu0 0.0
    %3314 = vmatpush2.msra.mxu0 0.0
    %3315 = vmatprep.subr.mxu0 0.0
    %3316 = vmatpush2.msra.mxu0 0.0
    %3317 = vmatprep.subr.mxu0 0.0
    %3318 = vmatpush2.msra.mxu0 0.0
    %3319 = vmatprep.subr.mxu0 0.0
    %3320 = vmatpush2.msra.mxu0 0.0
    %3321 = vmatprep.subr.mxu0 0.0
    %3322 = vmatpush2.msra.mxu0 0.0
    %3323 = vmatprep.subr.mxu0 0.0
    %3324 = vmatpush2.msra.mxu0 0.0
    %3325 = vmatprep.subr.mxu0 0.0
    %3326 = vmatpush2.msra.mxu0 0.0
    %3327 = vmatprep.subr.mxu0 0.0
    %3328 = vmatpush2.msra.mxu0 0.0
    %3329 = vmatprep.subr.mxu0 0.0
    %3330 = vmatpush2.msra.mxu0 0.0
    %3331 = vmatprep.subr.mxu0 0.0
    %3332 = vmatpush2.msra.mxu0 0.0
    %3333 = vmatprep.subr.mxu0 0.0
    %3334 = vmatpush2.msra.mxu0 0.0
    %3335 = vmatprep.mubr.f32.mxu0 0.0
    %3336 = vmatmul.mubr.f32.gmra.mxu0 %v3104
    %v3337 = vpop.f32.mrf.mxu0
    %v3338 = vadd.f32 %v3269, %v3337
    %v3339 = vpop.f32.mrf.mxu0
    %3340 = vmatprep.mubr.f32.mxu0 0.0
    %3341 = vmatmul.mubr.f32.gmra.mxu0 %v3107
    %v3342 = vpop.f32.mrf.mxu0
    %v3343 = vadd.f32 %v3269, %v3342
    %v3344 = vpop.f32.mrf.mxu0
    %3345 = vdwg.mxu0
    %v3347 = vlaneseq
    %v3348 = vshrl.u32 %v3347, 7
    %v3349 = vsub.s32 0, %v3348
    %v3350 = vrot.slane %v2437, %v3349
    %3352 = vmatprep.subr.mxu0 0.0
    %3353 = vmatpush1.msra.mxu0 0.0
    %3354 = vmatprep.subr.mxu0 0.0
    %3355 = vmatpush1.msra.mxu0 0.0
    %3356 = vmatprep.subr.mxu0 0.0
    %3357 = vmatpush1.msra.mxu0 0.0
    %3358 = vmatprep.subr.mxu0 0.0
    %3359 = vmatpush1.msra.mxu0 0.0
    %3360 = vmatprep.subr.mxu0 0.0
    %3361 = vmatpush1.msra.mxu0 0.0
    %3362 = vmatprep.subr.mxu0 0.0
    %3363 = vmatpush1.msra.mxu0 0.0
    %3364 = vmatprep.subr.mxu0 0.0
    %3365 = vmatpush1.msra.mxu0 0.0
    %3366 = vmatprep.subr.mxu0 0.0
    %3367 = vmatpush1.msra.mxu0 0.0
    %3368 = vmatprep.subr.mxu0 0.0
    %3369 = vmatpush1.msra.mxu0 0.0
    %3370 = vmatprep.subr.mxu0 0.0
    %3371 = vmatpush1.msra.mxu0 0.0
    %3372 = vmatprep.subr.mxu0 0.0
    %3373 = vmatpush1.msra.mxu0 0.0
    %3374 = vmatprep.subr.mxu0 0.0
    %3375 = vmatpush1.msra.mxu0 0.0
    %3376 = vmatprep.subr.mxu0 0.0
    %3377 = vmatpush1.msra.mxu0 %v2433
    %3378 = vmatprep.subr.mxu0 0.0
    %3379 = vmatpush1.msra.mxu0 %v2432
    %3380 = vmatprep.subr.mxu0 0.0
    %3381 = vmatpush1.msra.mxu0 %v2431
    %3382 = vmatprep.subr.mxu0 0.0
    %3383 = vmatpush1.msra.mxu0 %v2430
    %3384 = vmatprep.subr.mxu0 0.0
    %3385 = vmatpush2.msra.mxu0 0.0
    %3386 = vmatprep.subr.mxu0 0.0
    %3387 = vmatpush2.msra.mxu0 0.0
    %3388 = vmatprep.subr.mxu0 0.0
    %3389 = vmatpush2.msra.mxu0 0.0
    %3390 = vmatprep.subr.mxu0 0.0
    %3391 = vmatpush2.msra.mxu0 0.0
    %3392 = vmatprep.subr.mxu0 0.0
    %3393 = vmatpush2.msra.mxu0 0.0
    %3394 = vmatprep.subr.mxu0 0.0
    %3395 = vmatpush2.msra.mxu0 0.0
    %3396 = vmatprep.subr.mxu0 0.0
    %3397 = vmatpush2.msra.mxu0 0.0
    %3398 = vmatprep.subr.mxu0 0.0
    %3399 = vmatpush2.msra.mxu0 0.0
    %3400 = vmatprep.subr.mxu0 0.0
    %3401 = vmatpush2.msra.mxu0 0.0
    %3402 = vmatprep.subr.mxu0 0.0
    %3403 = vmatpush2.msra.mxu0 0.0
    %3404 = vmatprep.subr.mxu0 0.0
    %3405 = vmatpush2.msra.mxu0 0.0
    %3406 = vmatprep.subr.mxu0 0.0
    %3407 = vmatpush2.msra.mxu0 0.0
    %3408 = vmatprep.subr.mxu0 0.0
    %3409 = vmatpush2.msra.mxu0 0.0
    %3410 = vmatprep.subr.mxu0 0.0
    %3411 = vmatpush2.msra.mxu0 0.0
    %3412 = vmatprep.subr.mxu0 0.0
    %3413 = vmatpush2.msra.mxu0 0.0
    %3414 = vmatprep.subr.mxu0 0.0
    %3415 = vmatpush2.msra.mxu0 0.0
    %3416 = vmatprep.mubr.f32.mxu0 0.0
    %3417 = vmatmul.mubr.f32.gmra.mxu0 %v3104
    %v3418 = vpop.f32.mrf.mxu0
    %v3419 = vadd.f32 %v3350, %v3418
    %v3420 = vpop.f32.mrf.mxu0
    %3421 = vmatprep.mubr.f32.mxu0 0.0
    %3422 = vmatmul.mubr.f32.gmra.mxu0 %v3107
    %v3423 = vpop.f32.mrf.mxu0
    %v3424 = vadd.f32 %v3350, %v3423
    %v3425 = vpop.f32.mrf.mxu0
    %3426 = vdwg.mxu0
    %v3428 = vsel %vm1224, %v2522, 0
    %v3431 = vsel %vm1224, %v2527, 0
    %v3434 = vsel %vm1224, %v2846, 0
    %v3437 = vsel %vm1224, %v2851, 0
    %3439 = vmatprep.subr.mxu0 0.0
    %3440 = vmatpush1.xpose.msra.mxu0 0.0
    %3441 = vmatprep.subr.mxu0 0.0
    %3442 = vmatpush1.xpose.msra.mxu0 0.0
    %3443 = vmatprep.subr.mxu0 0.0
    %3444 = vmatpush1.xpose.msra.mxu0 0.0
    %3445 = vmatprep.subr.mxu0 0.0
    %3446 = vmatpush1.xpose.msra.mxu0 0.0
    %3447 = vmatprep.subr.mxu0 0.0
    %3448 = vmatpush1.xpose.msra.mxu0 0.0
    %3449 = vmatprep.subr.mxu0 0.0
    %3450 = vmatpush1.xpose.msra.mxu0 0.0
    %3451 = vmatprep.subr.mxu0 0.0
    %3452 = vmatpush1.xpose.msra.mxu0 0.0
    %3453 = vmatprep.subr.mxu0 0.0
    %3454 = vmatpush1.xpose.msra.mxu0 0.0
    %3455 = vmatprep.subr.mxu0 0.0
    %3456 = vmatpush1.xpose.msra.mxu0 0.0
    %3457 = vmatprep.subr.mxu0 0.0
    %3458 = vmatpush1.xpose.msra.mxu0 0.0
    %3459 = vmatprep.subr.mxu0 0.0
    %3460 = vmatpush1.xpose.msra.mxu0 0.0
    %3461 = vmatprep.subr.mxu0 0.0
    %3462 = vmatpush1.xpose.msra.mxu0 0.0
    %3463 = vmatprep.subr.mxu0 0.0
    %3464 = vmatpush1.xpose.msra.mxu0 0.0
    %3465 = vmatprep.subr.mxu0 0.0
    %3466 = vmatpush1.xpose.msra.mxu0 0.0
    %3467 = vmatprep.subr.mxu0 0.0
    %3468 = vmatpush1.xpose.msra.mxu0 %v3437
    %3469 = vmatprep.subr.mxu0 0.0
    %3470 = vmatpush1.xpose.msra.mxu0 %v3434
    %3471 = vmatprep.subr.mxu0 0.0
    %3472 = vmatpush2.xpose.msra.mxu0 0.0
    %3473 = vmatprep.subr.mxu0 0.0
    %3474 = vmatpush2.xpose.msra.mxu0 0.0
    %3475 = vmatprep.subr.mxu0 0.0
    %3476 = vmatpush2.xpose.msra.mxu0 0.0
    %3477 = vmatprep.subr.mxu0 0.0
    %3478 = vmatpush2.xpose.msra.mxu0 0.0
    %3479 = vmatprep.subr.mxu0 0.0
    %3480 = vmatpush2.xpose.msra.mxu0 0.0
    %3481 = vmatprep.subr.mxu0 0.0
    %3482 = vmatpush2.xpose.msra.mxu0 0.0
    %3483 = vmatprep.subr.mxu0 0.0
    %3484 = vmatpush2.xpose.msra.mxu0 0.0
    %3485 = vmatprep.subr.mxu0 0.0
    %3486 = vmatpush2.xpose.msra.mxu0 0.0
    %3487 = vmatprep.subr.mxu0 0.0
    %3488 = vmatpush2.xpose.msra.mxu0 0.0
    %3489 = vmatprep.subr.mxu0 0.0
    %3490 = vmatpush2.xpose.msra.mxu0 0.0
    %3491 = vmatprep.subr.mxu0 0.0
    %3492 = vmatpush2.xpose.msra.mxu0 0.0
    %3493 = vmatprep.subr.mxu0 0.0
    %3494 = vmatpush2.xpose.msra.mxu0 0.0
    %3495 = vmatprep.subr.mxu0 0.0
    %3496 = vmatpush2.xpose.msra.mxu0 0.0
    %3497 = vmatprep.subr.mxu0 0.0
    %3498 = vmatpush2.xpose.msra.mxu0 0.0
    %3499 = vmatprep.subr.mxu0 0.0
    %3500 = vmatpush2.xpose.msra.mxu0 0.0
    %3501 = vmatprep.subr.mxu0 0.0
    %3502 = vmatpush2.xpose.msra.mxu0 0.0
    %3503 = vmatprep.mubr.f32.mxu0 0.0
    %3504 = vmatmul.mubr.f32.gmra.mxu0 %v3428
    %v3505 = vpop.f32.mrf.mxu0
    %v3506 = vadd.f32 %v133, %v3505
    %v3507 = vpop.f32.mrf.mxu0
    %3508 = vmatprep.mubr.f32.mxu0 0.0
    %3509 = vmatmul.mubr.f32.gmra.mxu0 %v3431
    %v3510 = vpop.f32.mrf.mxu0
    %v3511 = vadd.f32 %v134, %v3510
    %v3512 = vpop.f32.mrf.mxu0
    %3513 = vdwg.mxu0
    %v3515 = vsel %vm1224, %v2603, 0
    %v3518 = vsel %vm1224, %v2608, 0
    %v3521 = vsel %vm1224, %v2927, 0
    %v3524 = vsel %vm1224, %v2932, 0
    %3526 = vmatprep.subr.mxu0 0.0
    %3527 = vmatpush1.xpose.msra.mxu0 0.0
    %3528 = vmatprep.subr.mxu0 0.0
    %3529 = vmatpush1.xpose.msra.mxu0 0.0
    %3530 = vmatprep.subr.mxu0 0.0
    %3531 = vmatpush1.xpose.msra.mxu0 0.0
    %3532 = vmatprep.subr.mxu0 0.0
    %3533 = vmatpush1.xpose.msra.mxu0 0.0
    %3534 = vmatprep.subr.mxu0 0.0
    %3535 = vmatpush1.xpose.msra.mxu0 0.0
    %3536 = vmatprep.subr.mxu0 0.0
    %3537 = vmatpush1.xpose.msra.mxu0 0.0
    %3538 = vmatprep.subr.mxu0 0.0
    %3539 = vmatpush1.xpose.msra.mxu0 0.0
    %3540 = vmatprep.subr.mxu0 0.0
    %3541 = vmatpush1.xpose.msra.mxu0 0.0
    %3542 = vmatprep.subr.mxu0 0.0
    %3543 = vmatpush1.xpose.msra.mxu0 0.0
    %3544 = vmatprep.subr.mxu0 0.0
    %3545 = vmatpush1.xpose.msra.mxu0 0.0
    %3546 = vmatprep.subr.mxu0 0.0
    %3547 = vmatpush1.xpose.msra.mxu0 0.0
    %3548 = vmatprep.subr.mxu0 0.0
    %3549 = vmatpush1.xpose.msra.mxu0 0.0
    %3550 = vmatprep.subr.mxu0 0.0
    %3551 = vmatpush1.xpose.msra.mxu0 0.0
    %3552 = vmatprep.subr.mxu0 0.0
    %3553 = vmatpush1.xpose.msra.mxu0 0.0
    %3554 = vmatprep.subr.mxu0 0.0
    %3555 = vmatpush1.xpose.msra.mxu0 %v3524
    %3556 = vmatprep.subr.mxu0 0.0
    %3557 = vmatpush1.xpose.msra.mxu0 %v3521
    %3558 = vmatprep.subr.mxu0 0.0
    %3559 = vmatpush2.xpose.msra.mxu0 0.0
    %3560 = vmatprep.subr.mxu0 0.0
    %3561 = vmatpush2.xpose.msra.mxu0 0.0
    %3562 = vmatprep.subr.mxu0 0.0
    %3563 = vmatpush2.xpose.msra.mxu0 0.0
    %3564 = vmatprep.subr.mxu0 0.0
    %3565 = vmatpush2.xpose.msra.mxu0 0.0
    %3566 = vmatprep.subr.mxu0 0.0
    %3567 = vmatpush2.xpose.msra.mxu0 0.0
    %3568 = vmatprep.subr.mxu0 0.0
    %3569 = vmatpush2.xpose.msra.mxu0 0.0
    %3570 = vmatprep.subr.mxu0 0.0
    %3571 = vmatpush2.xpose.msra.mxu0 0.0
    %3572 = vmatprep.subr.mxu0 0.0
    %3573 = vmatpush2.xpose.msra.mxu0 0.0
    %3574 = vmatprep.subr.mxu0 0.0
    %3575 = vmatpush2.xpose.msra.mxu0 0.0
    %3576 = vmatprep.subr.mxu0 0.0
    %3577 = vmatpush2.xpose.msra.mxu0 0.0
    %3578 = vmatprep.subr.mxu0 0.0
    %3579 = vmatpush2.xpose.msra.mxu0 0.0
    %3580 = vmatprep.subr.mxu0 0.0
    %3581 = vmatpush2.xpose.msra.mxu0 0.0
    %3582 = vmatprep.subr.mxu0 0.0
    %3583 = vmatpush2.xpose.msra.mxu0 0.0
    %3584 = vmatprep.subr.mxu0 0.0
    %3585 = vmatpush2.xpose.msra.mxu0 0.0
    %3586 = vmatprep.subr.mxu0 0.0
    %3587 = vmatpush2.xpose.msra.mxu0 0.0
    %3588 = vmatprep.subr.mxu0 0.0
    %3589 = vmatpush2.xpose.msra.mxu0 0.0
    %3590 = vmatprep.mubr.f32.mxu0 0.0
    %3591 = vmatmul.mubr.f32.gmra.mxu0 %v3515
    %v3592 = vpop.f32.mrf.mxu0
    %v3593 = vadd.f32 %v133, %v3592
    %v3594 = vpop.f32.mrf.mxu0
    %3595 = vmatprep.mubr.f32.mxu0 0.0
    %3596 = vmatmul.mubr.f32.gmra.mxu0 %v3518
    %v3597 = vpop.f32.mrf.mxu0
    %v3598 = vadd.f32 %v134, %v3597
    %v3599 = vpop.f32.mrf.mxu0
    %3600 = vdwg.mxu0
    %v3602 = vsel %vm1224, %v2684, 0
    %v3605 = vsel %vm1224, %v2689, 0
    %v3608 = vsel %vm1224, %v3008, 0
    %v3611 = vsel %vm1224, %v3013, 0
    %3613 = vmatprep.subr.mxu0 0.0
    %3614 = vmatpush1.xpose.msra.mxu0 0.0
    %3615 = vmatprep.subr.mxu0 0.0
    %3616 = vmatpush1.xpose.msra.mxu0 0.0
    %3617 = vmatprep.subr.mxu0 0.0
    %3618 = vmatpush1.xpose.msra.mxu0 0.0
    %3619 = vmatprep.subr.mxu0 0.0
    %3620 = vmatpush1.xpose.msra.mxu0 0.0
    %3621 = vmatprep.subr.mxu0 0.0
    %3622 = vmatpush1.xpose.msra.mxu0 0.0
    %3623 = vmatprep.subr.mxu0 0.0
    %3624 = vmatpush1.xpose.msra.mxu0 0.0
    %3625 = vmatprep.subr.mxu0 0.0
    %3626 = vmatpush1.xpose.msra.mxu0 0.0
    %3627 = vmatprep.subr.mxu0 0.0
    %3628 = vmatpush1.xpose.msra.mxu0 0.0
    %3629 = vmatprep.subr.mxu0 0.0
    %3630 = vmatpush1.xpose.msra.mxu0 0.0
    %3631 = vmatprep.subr.mxu0 0.0
    %3632 = vmatpush1.xpose.msra.mxu0 0.0
    %3633 = vmatprep.subr.mxu0 0.0
    %3634 = vmatpush1.xpose.msra.mxu0 0.0
    %3635 = vmatprep.subr.mxu0 0.0
    %3636 = vmatpush1.xpose.msra.mxu0 0.0
    %3637 = vmatprep.subr.mxu0 0.0
    %3638 = vmatpush1.xpose.msra.mxu0 0.0
    %3639 = vmatprep.subr.mxu0 0.0
    %3640 = vmatpush1.xpose.msra.mxu0 0.0
    %3641 = vmatprep.subr.mxu0 0.0
    %3642 = vmatpush1.xpose.msra.mxu0 %v3611
    %3643 = vmatprep.subr.mxu0 0.0
    %3644 = vmatpush1.xpose.msra.mxu0 %v3608
    %3645 = vmatprep.subr.mxu0 0.0
    %3646 = vmatpush2.xpose.msra.mxu0 0.0
    %3647 = vmatprep.subr.mxu0 0.0
    %3648 = vmatpush2.xpose.msra.mxu0 0.0
    %3649 = vmatprep.subr.mxu0 0.0
    %3650 = vmatpush2.xpose.msra.mxu0 0.0
    %3651 = vmatprep.subr.mxu0 0.0
    %3652 = vmatpush2.xpose.msra.mxu0 0.0
    %3653 = vmatprep.subr.mxu0 0.0
    %3654 = vmatpush2.xpose.msra.mxu0 0.0
    %3655 = vmatprep.subr.mxu0 0.0
    %3656 = vmatpush2.xpose.msra.mxu0 0.0
    %3657 = vmatprep.subr.mxu0 0.0
    %3658 = vmatpush2.xpose.msra.mxu0 0.0
    %3659 = vmatprep.subr.mxu0 0.0
    %3660 = vmatpush2.xpose.msra.mxu0 0.0
    %3661 = vmatprep.subr.mxu0 0.0
    %3662 = vmatpush2.xpose.msra.mxu0 0.0
    %3663 = vmatprep.subr.mxu0 0.0
    %3664 = vmatpush2.xpose.msra.mxu0 0.0
    %3665 = vmatprep.subr.mxu0 0.0
    %3666 = vmatpush2.xpose.msra.mxu0 0.0
    %3667 = vmatprep.subr.mxu0 0.0
    %3668 = vmatpush2.xpose.msra.mxu0 0.0
    %3669 = vmatprep.subr.mxu0 0.0
    %3670 = vmatpush2.xpose.msra.mxu0 0.0
    %3671 = vmatprep.subr.mxu0 0.0
    %3672 = vmatpush2.xpose.msra.mxu0 0.0
    %3673 = vmatprep.subr.mxu0 0.0
    %3674 = vmatpush2.xpose.msra.mxu0 0.0
    %3675 = vmatprep.subr.mxu0 0.0
    %3676 = vmatpush2.xpose.msra.mxu0 0.0
    %3677 = vmatprep.mubr.f32.mxu0 0.0
    %3678 = vmatmul.mubr.f32.gmra.mxu0 %v3602
    %v3679 = vpop.f32.mrf.mxu0
    %v3680 = vadd.f32 %v133, %v3679
    %v3681 = vpop.f32.mrf.mxu0
    %3682 = vmatprep.mubr.f32.mxu0 0.0
    %3683 = vmatmul.mubr.f32.gmra.mxu0 %v3605
    %v3684 = vpop.f32.mrf.mxu0
    %v3685 = vadd.f32 %v134, %v3684
    %v3686 = vpop.f32.mrf.mxu0
    %3687 = vdwg.mxu0
    %v3689 = vsel %vm1224, %v2765, 0
    %v3692 = vsel %vm1224, %v2770, 0
    %v3695 = vsel %vm1224, %v3089, 0
    %v3698 = vsel %vm1224, %v3094, 0
    %3700 = vmatprep.subr.mxu0 0.0
    %3701 = vmatpush1.xpose.msra.mxu0 0.0
    %3702 = vmatprep.subr.mxu0 0.0
    %3703 = vmatpush1.xpose.msra.mxu0 0.0
    %3704 = vmatprep.subr.mxu0 0.0
    %3705 = vmatpush1.xpose.msra.mxu0 0.0
    %3706 = vmatprep.subr.mxu0 0.0
    %3707 = vmatpush1.xpose.msra.mxu0 0.0
    %3708 = vmatprep.subr.mxu0 0.0
    %3709 = vmatpush1.xpose.msra.mxu0 0.0
    %3710 = vmatprep.subr.mxu0 0.0
    %3711 = vmatpush1.xpose.msra.mxu0 0.0
    %3712 = vmatprep.subr.mxu0 0.0
    %3713 = vmatpush1.xpose.msra.mxu0 0.0
    %3714 = vmatprep.subr.mxu0 0.0
    %3715 = vmatpush1.xpose.msra.mxu0 0.0
    %3716 = vmatprep.subr.mxu0 0.0
    %3717 = vmatpush1.xpose.msra.mxu0 0.0
    %3718 = vmatprep.subr.mxu0 0.0
    %3719 = vmatpush1.xpose.msra.mxu0 0.0
    %3720 = vmatprep.subr.mxu0 0.0
    %3721 = vmatpush1.xpose.msra.mxu0 0.0
    %3722 = vmatprep.subr.mxu0 0.0
    %3723 = vmatpush1.xpose.msra.mxu0 0.0
    %3724 = vmatprep.subr.mxu0 0.0
    %3725 = vmatpush1.xpose.msra.mxu0 0.0
    %3726 = vmatprep.subr.mxu0 0.0
    %3727 = vmatpush1.xpose.msra.mxu0 0.0
    %3728 = vmatprep.subr.mxu0 0.0
    %3729 = vmatpush1.xpose.msra.mxu0 %v3698
    %3730 = vmatprep.subr.mxu0 0.0
    %3731 = vmatpush1.xpose.msra.mxu0 %v3695
    %3732 = vmatprep.subr.mxu0 0.0
    %3733 = vmatpush2.xpose.msra.mxu0 0.0
    %3734 = vmatprep.subr.mxu0 0.0
    %3735 = vmatpush2.xpose.msra.mxu0 0.0
    %3736 = vmatprep.subr.mxu0 0.0
    %3737 = vmatpush2.xpose.msra.mxu0 0.0
    %3738 = vmatprep.subr.mxu0 0.0
    %3739 = vmatpush2.xpose.msra.mxu0 0.0
    %3740 = vmatprep.subr.mxu0 0.0
    %3741 = vmatpush2.xpose.msra.mxu0 0.0
    %3742 = vmatprep.subr.mxu0 0.0
    %3743 = vmatpush2.xpose.msra.mxu0 0.0
    %3744 = vmatprep.subr.mxu0 0.0
    %3745 = vmatpush2.xpose.msra.mxu0 0.0
    %3746 = vmatprep.subr.mxu0 0.0
    %3747 = vmatpush2.xpose.msra.mxu0 0.0
    %3748 = vmatprep.subr.mxu0 0.0
    %3749 = vmatpush2.xpose.msra.mxu0 0.0
    %3750 = vmatprep.subr.mxu0 0.0
    %3751 = vmatpush2.xpose.msra.mxu0 0.0
    %3752 = vmatprep.subr.mxu0 0.0
    %3753 = vmatpush2.xpose.msra.mxu0 0.0
    %3754 = vmatprep.subr.mxu0 0.0
    %3755 = vmatpush2.xpose.msra.mxu0 0.0
    %3756 = vmatprep.subr.mxu0 0.0
    %3757 = vmatpush2.xpose.msra.mxu0 0.0
    %3758 = vmatprep.subr.mxu0 0.0
    %3759 = vmatpush2.xpose.msra.mxu0 0.0
    %3760 = vmatprep.subr.mxu0 0.0
    %3761 = vmatpush2.xpose.msra.mxu0 0.0
    %3762 = vmatprep.subr.mxu0 0.0
    %3763 = vmatpush2.xpose.msra.mxu0 0.0
    %3764 = vmatprep.mubr.f32.mxu0 0.0
    %3765 = vmatmul.mubr.f32.gmra.mxu0 %v3689
    %v3766 = vpop.f32.mrf.mxu0
    %v3767 = vadd.f32 %v133, %v3766
    %v3768 = vpop.f32.mrf.mxu0
    %3769 = vmatprep.mubr.f32.mxu0 0.0
    %3770 = vmatmul.mubr.f32.gmra.mxu0 %v3692
    %v3771 = vpop.f32.mrf.mxu0
    %v3772 = vadd.f32 %v134, %v3771
    %v3773 = vpop.f32.mrf.mxu0
    %3774 = vdwg.mxu0
    %v3775 = vsel %vm1573, %v3506, -inf
    %3776 = vmax.xlane.f32.xlu0 %v3775
    %v3777 = vpop.xlane.xlu0 %3776
    %v3778 = vsel %vm1573, %v3511, -inf
    %3779 = vmax.xlane.f32.xlu0 %v3778
    %v3780 = vpop.xlane.xlu0 %3779
    %v3781 = vsel %vm1573, %v3593, -inf
    %3782 = vmax.xlane.f32.xlu0 %v3781
    %v3783 = vpop.xlane.xlu0 %3782
    %v3784 = vsel %vm1573, %v3598, -inf
    %3785 = vmax.xlane.f32.xlu0 %v3784
    %v3786 = vpop.xlane.xlu0 %3785
    %v3787 = vsel %vm1573, %v3680, -inf
    %3788 = vmax.xlane.f32.xlu0 %v3787
    %v3789 = vpop.xlane.xlu0 %3788
    %v3790 = vsel %vm1573, %v3685, -inf
    %3791 = vmax.xlane.f32.xlu0 %v3790
    %v3792 = vpop.xlane.xlu0 %3791
    %v3793 = vsel %vm1573, %v3767, -inf
    %3794 = vmax.xlane.f32.xlu0 %v3793
    %v3795 = vpop.xlane.xlu0 %3794
    %v3796 = vsel %vm1573, %v3772, -inf
    %3797 = vmax.xlane.f32.xlu0 %v3796
    %v3798 = vpop.xlane.xlu0 %3797
    %v3799 = vsub.f32 %v3506, %v3777
    %v3800 = vsub.f32 %v3511, %v3780
    %v3801 = vsub.f32 %v3593, %v3783
    %v3802 = vsub.f32 %v3598, %v3786
    %v3803 = vsub.f32 %v3680, %v3789
    %v3804 = vsub.f32 %v3685, %v3792
    %v3805 = vsub.f32 %v3767, %v3795
    %v3806 = vsub.f32 %v3772, %v3798
    %v3807 = vmul.f32 %v3799, 1.442695
    %v3808 = vpow.pop %v3807
    %v3809 = vmul.f32 %v3800, 1.442695
    %v3810 = vpow.pop %v3809
    %v3811 = vmul.f32 %v3801, 1.442695
    %v3812 = vpow.pop %v3811
    %v3813 = vmul.f32 %v3802, 1.442695
    %v3814 = vpow.pop %v3813
    %v3815 = vmul.f32 %v3803, 1.442695
    %v3816 = vpow.pop %v3815
    %v3817 = vmul.f32 %v3804, 1.442695
    %v3818 = vpow.pop %v3817
    %v3819 = vmul.f32 %v3805, 1.442695
    %v3820 = vpow.pop %v3819
    %v3821 = vmul.f32 %v3806, 1.442695
    %v3822 = vpow.pop %v3821
    %v3823 = vsel %vm1573, %v3808, 0.0
    %3824 = vadd.xlane.f32.xlu0 %v3823
    %v3825 = vpop.xlane.xlu0 %3824
    %v3826 = vsel %vm1573, %v3810, 0.0
    %3827 = vadd.xlane.f32.xlu0 %v3826
    %v3828 = vpop.xlane.xlu0 %3827
    %v3829 = vsel %vm1573, %v3812, 0.0
    %3830 = vadd.xlane.f32.xlu0 %v3829
    %v3831 = vpop.xlane.xlu0 %3830
    %v3832 = vsel %vm1573, %v3814, 0.0
    %3833 = vadd.xlane.f32.xlu0 %v3832
    %v3834 = vpop.xlane.xlu0 %3833
    %v3835 = vsel %vm1573, %v3816, 0.0
    %3836 = vadd.xlane.f32.xlu0 %v3835
    %v3837 = vpop.xlane.xlu0 %3836
    %v3838 = vsel %vm1573, %v3818, 0.0
    %3839 = vadd.xlane.f32.xlu0 %v3838
    %v3840 = vpop.xlane.xlu0 %3839
    %v3841 = vsel %vm1573, %v3820, 0.0
    %3842 = vadd.xlane.f32.xlu0 %v3841
    %v3843 = vpop.xlane.xlu0 %3842
    %v3844 = vsel %vm1573, %v3822, 0.0
    %3845 = vadd.xlane.f32.xlu0 %v3844
    %v3846 = vpop.xlane.xlu0 %3845
    %v3847 = vrcp.pop %v3825
    %v3848 = vrcp.pop %v3828
    %v3849 = vrcp.pop %v3831
    %v3850 = vrcp.pop %v3834
    %v3851 = vrcp.pop %v3837
    %v3852 = vrcp.pop %v3840
    %v3853 = vrcp.pop %v3843
    %v3854 = vrcp.pop %v3846
    %v3855 = vmul.f32 %v3808, %v3847
    %v3856 = vmul.f32 %v3810, %v3848
    %v3857 = vmul.f32 %v3812, %v3849
    %v3858 = vmul.f32 %v3814, %v3850
    %v3859 = vmul.f32 %v3816, %v3851
    %v3860 = vmul.f32 %v3818, %v3852
    %v3861 = vmul.f32 %v3820, %v3853
    %v3862 = vmul.f32 %v3822, %v3854
    %v3864 = vsel %vm1573, %v3855, 0
    %v3867 = vsel %vm1573, %v3856, 0
    %3869 = vmatprep.subr.mxu0 0.0
    %3870 = vmatpush1.msra.mxu0 0.0
    %3871 = vmatprep.subr.mxu0 0.0
    %3872 = vmatpush1.msra.mxu0 0.0
    %3873 = vmatprep.subr.mxu0 0.0
    %3874 = vmatpush1.msra.mxu0 0.0
    %3875 = vmatprep.subr.mxu0 0.0
    %3876 = vmatpush1.msra.mxu0 0.0
    %3877 = vmatprep.subr.mxu0 0.0
    %3878 = vmatpush1.msra.mxu0 0.0
    %3879 = vmatprep.subr.mxu0 0.0
    %3880 = vmatpush1.msra.mxu0 0.0
    %3881 = vmatprep.subr.mxu0 0.0
    %3882 = vmatpush1.msra.mxu0 0.0
    %3883 = vmatprep.subr.mxu0 0.0
    %3884 = vmatpush1.msra.mxu0 0.0
    %3885 = vmatprep.subr.mxu0 0.0
    %3886 = vmatpush1.msra.mxu0 0.0
    %3887 = vmatprep.subr.mxu0 0.0
    %3888 = vmatpush1.msra.mxu0 0.0
    %3889 = vmatprep.subr.mxu0 0.0
    %3890 = vmatpush1.msra.mxu0 0.0
    %3891 = vmatprep.subr.mxu0 0.0
    %3892 = vmatpush1.msra.mxu0 0.0
    %3893 = vmatprep.subr.mxu0 0.0
    %3894 = vmatpush1.msra.mxu0 0.0
    %3895 = vmatprep.subr.mxu0 0.0
    %3896 = vmatpush1.msra.mxu0 0.0
    %3897 = vmatprep.subr.mxu0 0.0
    %3898 = vmatpush1.msra.mxu0 %v3181
    %3899 = vmatprep.subr.mxu0 0.0
    %3900 = vmatpush1.msra.mxu0 %v3176
    %3901 = vmatprep.subr.mxu0 0.0
    %3902 = vmatpush2.msra.mxu0 0.0
    %3903 = vmatprep.subr.mxu0 0.0
    %3904 = vmatpush2.msra.mxu0 0.0
    %3905 = vmatprep.subr.mxu0 0.0
    %3906 = vmatpush2.msra.mxu0 0.0
    %3907 = vmatprep.subr.mxu0 0.0
    %3908 = vmatpush2.msra.mxu0 0.0
    %3909 = vmatprep.subr.mxu0 0.0
    %3910 = vmatpush2.msra.mxu0 0.0
    %3911 = vmatprep.subr.mxu0 0.0
    %3912 = vmatpush2.msra.mxu0 0.0
    %3913 = vmatprep.subr.mxu0 0.0
    %3914 = vmatpush2.msra.mxu0 0.0
    %3915 = vmatprep.subr.mxu0 0.0
    %3916 = vmatpush2.msra.mxu0 0.0
    %3917 = vmatprep.subr.mxu0 0.0
    %3918 = vmatpush2.msra.mxu0 0.0
    %3919 = vmatprep.subr.mxu0 0.0
    %3920 = vmatpush2.msra.mxu0 0.0
    %3921 = vmatprep.subr.mxu0 0.0
    %3922 = vmatpush2.msra.mxu0 0.0
    %3923 = vmatprep.subr.mxu0 0.0
    %3924 = vmatpush2.msra.mxu0 0.0
    %3925 = vmatprep.subr.mxu0 0.0
    %3926 = vmatpush2.msra.mxu0 0.0
    %3927 = vmatprep.subr.mxu0 0.0
    %3928 = vmatpush2.msra.mxu0 0.0
    %3929 = vmatprep.subr.mxu0 0.0
    %3930 = vmatpush2.msra.mxu0 0.0
    %3931 = vmatprep.subr.mxu0 0.0
    %3932 = vmatpush2.msra.mxu0 0.0
    %3933 = vmatprep.mubr.f32.mxu0 0.0
    %3934 = vmatmul.mubr.f32.gmra.mxu0 %v3864
    %v3935 = vpop.f32.mrf.mxu0
    %v3936 = vadd.f32 0.0, %v3935
    %v3937 = vpop.f32.mrf.mxu0
    %3938 = vmatprep.mubr.f32.mxu0 0.0
    %3939 = vmatmul.mubr.f32.gmra.mxu0 %v3867
    %v3940 = vpop.f32.mrf.mxu0
    %v3941 = vadd.f32 0.0, %v3940
    %v3942 = vpop.f32.mrf.mxu0
    %3943 = vdwg.mxu0
    %v3945 = vsel %vm1573, %v3857, 0
    %v3948 = vsel %vm1573, %v3858, 0
    %3950 = vmatprep.subr.mxu0 0.0
    %3951 = vmatpush1.msra.mxu0 0.0
    %3952 = vmatprep.subr.mxu0 0.0
    %3953 = vmatpush1.msra.mxu0 0.0
    %3954 = vmatprep.subr.mxu0 0.0
    %3955 = vmatpush1.msra.mxu0 0.0
    %3956 = vmatprep.subr.mxu0 0.0
    %3957 = vmatpush1.msra.mxu0 0.0
    %3958 = vmatprep.subr.mxu0 0.0
    %3959 = vmatpush1.msra.mxu0 0.0
    %3960 = vmatprep.subr.mxu0 0.0
    %3961 = vmatpush1.msra.mxu0 0.0
    %3962 = vmatprep.subr.mxu0 0.0
    %3963 = vmatpush1.msra.mxu0 0.0
    %3964 = vmatprep.subr.mxu0 0.0
    %3965 = vmatpush1.msra.mxu0 0.0
    %3966 = vmatprep.subr.mxu0 0.0
    %3967 = vmatpush1.msra.mxu0 0.0
    %3968 = vmatprep.subr.mxu0 0.0
    %3969 = vmatpush1.msra.mxu0 0.0
    %3970 = vmatprep.subr.mxu0 0.0
    %3971 = vmatpush1.msra.mxu0 0.0
    %3972 = vmatprep.subr.mxu0 0.0
    %3973 = vmatpush1.msra.mxu0 0.0
    %3974 = vmatprep.subr.mxu0 0.0
    %3975 = vmatpush1.msra.mxu0 0.0
    %3976 = vmatprep.subr.mxu0 0.0
    %3977 = vmatpush1.msra.mxu0 0.0
    %3978 = vmatprep.subr.mxu0 0.0
    %3979 = vmatpush1.msra.mxu0 %v3262
    %3980 = vmatprep.subr.mxu0 0.0
    %3981 = vmatpush1.msra.mxu0 %v3257
    %3982 = vmatprep.subr.mxu0 0.0
    %3983 = vmatpush2.msra.mxu0 0.0
    %3984 = vmatprep.subr.mxu0 0.0
    %3985 = vmatpush2.msra.mxu0 0.0
    %3986 = vmatprep.subr.mxu0 0.0
    %3987 = vmatpush2.msra.mxu0 0.0
    %3988 = vmatprep.subr.mxu0 0.0
    %3989 = vmatpush2.msra.mxu0 0.0
    %3990 = vmatprep.subr.mxu0 0.0
    %3991 = vmatpush2.msra.mxu0 0.0
    %3992 = vmatprep.subr.mxu0 0.0
    %3993 = vmatpush2.msra.mxu0 0.0
    %3994 = vmatprep.subr.mxu0 0.0
    %3995 = vmatpush2.msra.mxu0 0.0
    %3996 = vmatprep.subr.mxu0 0.0
    %3997 = vmatpush2.msra.mxu0 0.0
    %3998 = vmatprep.subr.mxu0 0.0
    %3999 = vmatpush2.msra.mxu0 0.0
    %4000 = vmatprep.subr.mxu0 0.0
    %4001 = vmatpush2.msra.mxu0 0.0
    %4002 = vmatprep.subr.mxu0 0.0
    %4003 = vmatpush2.msra.mxu0 0.0
    %4004 = vmatprep.subr.mxu0 0.0
    %4005 = vmatpush2.msra.mxu0 0.0
    %4006 = vmatprep.subr.mxu0 0.0
    %4007 = vmatpush2.msra.mxu0 0.0
    %4008 = vmatprep.subr.mxu0 0.0
    %4009 = vmatpush2.msra.mxu0 0.0
    %4010 = vmatprep.subr.mxu0 0.0
    %4011 = vmatpush2.msra.mxu0 0.0
    %4012 = vmatprep.subr.mxu0 0.0
    %4013 = vmatpush2.msra.mxu0 0.0
    %4014 = vmatprep.mubr.f32.mxu0 0.0
    %4015 = vmatmul.mubr.f32.gmra.mxu0 %v3945
    %v4016 = vpop.f32.mrf.mxu0
    %v4017 = vadd.f32 0.0, %v4016
    %v4018 = vpop.f32.mrf.mxu0
    %4019 = vmatprep.mubr.f32.mxu0 0.0
    %4020 = vmatmul.mubr.f32.gmra.mxu0 %v3948
    %v4021 = vpop.f32.mrf.mxu0
    %v4022 = vadd.f32 0.0, %v4021
    %v4023 = vpop.f32.mrf.mxu0
    %4024 = vdwg.mxu0
    %v4026 = vsel %vm1573, %v3859, 0
    %v4029 = vsel %vm1573, %v3860, 0
    %4031 = vmatprep.subr.mxu0 0.0
    %4032 = vmatpush1.msra.mxu0 0.0
    %4033 = vmatprep.subr.mxu0 0.0
    %4034 = vmatpush1.msra.mxu0 0.0
    %4035 = vmatprep.subr.mxu0 0.0
    %4036 = vmatpush1.msra.mxu0 0.0
    %4037 = vmatprep.subr.mxu0 0.0
    %4038 = vmatpush1.msra.mxu0 0.0
    %4039 = vmatprep.subr.mxu0 0.0
    %4040 = vmatpush1.msra.mxu0 0.0
    %4041 = vmatprep.subr.mxu0 0.0
    %4042 = vmatpush1.msra.mxu0 0.0
    %4043 = vmatprep.subr.mxu0 0.0
    %4044 = vmatpush1.msra.mxu0 0.0
    %4045 = vmatprep.subr.mxu0 0.0
    %4046 = vmatpush1.msra.mxu0 0.0
    %4047 = vmatprep.subr.mxu0 0.0
    %4048 = vmatpush1.msra.mxu0 0.0
    %4049 = vmatprep.subr.mxu0 0.0
    %4050 = vmatpush1.msra.mxu0 0.0
    %4051 = vmatprep.subr.mxu0 0.0
    %4052 = vmatpush1.msra.mxu0 0.0
    %4053 = vmatprep.subr.mxu0 0.0
    %4054 = vmatpush1.msra.mxu0 0.0
    %4055 = vmatprep.subr.mxu0 0.0
    %4056 = vmatpush1.msra.mxu0 0.0
    %4057 = vmatprep.subr.mxu0 0.0
    %4058 = vmatpush1.msra.mxu0 0.0
    %4059 = vmatprep.subr.mxu0 0.0
    %4060 = vmatpush1.msra.mxu0 %v3343
    %4061 = vmatprep.subr.mxu0 0.0
    %4062 = vmatpush1.msra.mxu0 %v3338
    %4063 = vmatprep.subr.mxu0 0.0
    %4064 = vmatpush2.msra.mxu0 0.0
    %4065 = vmatprep.subr.mxu0 0.0
    %4066 = vmatpush2.msra.mxu0 0.0
    %4067 = vmatprep.subr.mxu0 0.0
    %4068 = vmatpush2.msra.mxu0 0.0
    %4069 = vmatprep.subr.mxu0 0.0
    %4070 = vmatpush2.msra.mxu0 0.0
    %4071 = vmatprep.subr.mxu0 0.0
    %4072 = vmatpush2.msra.mxu0 0.0
    %4073 = vmatprep.subr.mxu0 0.0
    %4074 = vmatpush2.msra.mxu0 0.0
    %4075 = vmatprep.subr.mxu0 0.0
    %4076 = vmatpush2.msra.mxu0 0.0
    %4077 = vmatprep.subr.mxu0 0.0
    %4078 = vmatpush2.msra.mxu0 0.0
    %4079 = vmatprep.subr.mxu0 0.0
    %4080 = vmatpush2.msra.mxu0 0.0
    %4081 = vmatprep.subr.mxu0 0.0
    %4082 = vmatpush2.msra.mxu0 0.0
    %4083 = vmatprep.subr.mxu0 0.0
    %4084 = vmatpush2.msra.mxu0 0.0
    %4085 = vmatprep.subr.mxu0 0.0
    %4086 = vmatpush2.msra.mxu0 0.0
    %4087 = vmatprep.subr.mxu0 0.0
    %4088 = vmatpush2.msra.mxu0 0.0
    %4089 = vmatprep.subr.mxu0 0.0
    %4090 = vmatpush2.msra.mxu0 0.0
    %4091 = vmatprep.subr.mxu0 0.0
    %4092 = vmatpush2.msra.mxu0 0.0
    %4093 = vmatprep.subr.mxu0 0.0
    %4094 = vmatpush2.msra.mxu0 0.0
    %4095 = vmatprep.mubr.f32.mxu0 0.0
    %4096 = vmatmul.mubr.f32.gmra.mxu0 %v4026
    %v4097 = vpop.f32.mrf.mxu0
    %v4098 = vadd.f32 0.0, %v4097
    %v4099 = vpop.f32.mrf.mxu0
    %4100 = vmatprep.mubr.f32.mxu0 0.0
    %4101 = vmatmul.mubr.f32.gmra.mxu0 %v4029
    %v4102 = vpop.f32.mrf.mxu0
    %v4103 = vadd.f32 0.0, %v4102
    %v4104 = vpop.f32.mrf.mxu0
    %4105 = vdwg.mxu0
    %v4107 = vsel %vm1573, %v3861, 0
    %v4110 = vsel %vm1573, %v3862, 0
    %4112 = vmatprep.subr.mxu0 0.0
    %4113 = vmatpush1.msra.mxu0 0.0
    %4114 = vmatprep.subr.mxu0 0.0
    %4115 = vmatpush1.msra.mxu0 0.0
    %4116 = vmatprep.subr.mxu0 0.0
    %4117 = vmatpush1.msra.mxu0 0.0
    %4118 = vmatprep.subr.mxu0 0.0
    %4119 = vmatpush1.msra.mxu0 0.0
    %4120 = vmatprep.subr.mxu0 0.0
    %4121 = vmatpush1.msra.mxu0 0.0
    %4122 = vmatprep.subr.mxu0 0.0
    %4123 = vmatpush1.msra.mxu0 0.0
    %4124 = vmatprep.subr.mxu0 0.0
    %4125 = vmatpush1.msra.mxu0 0.0
    %4126 = vmatprep.subr.mxu0 0.0
    %4127 = vmatpush1.msra.mxu0 0.0
    %4128 = vmatprep.subr.mxu0 0.0
    %4129 = vmatpush1.msra.mxu0 0.0
    %4130 = vmatprep.subr.mxu0 0.0
    %4131 = vmatpush1.msra.mxu0 0.0
    %4132 = vmatprep.subr.mxu0 0.0
    %4133 = vmatpush1.msra.mxu0 0.0
    %4134 = vmatprep.subr.mxu0 0.0
    %4135 = vmatpush1.msra.mxu0 0.0
    %4136 = vmatprep.subr.mxu0 0.0
    %4137 = vmatpush1.msra.mxu0 0.0
    %4138 = vmatprep.subr.mxu0 0.0
    %4139 = vmatpush1.msra.mxu0 0.0
    %4140 = vmatprep.subr.mxu0 0.0
    %4141 = vmatpush1.msra.mxu0 %v3424
    %4142 = vmatprep.subr.mxu0 0.0
    %4143 = vmatpush1.msra.mxu0 %v3419
    %4144 = vmatprep.subr.mxu0 0.0
    %4145 = vmatpush2.msra.mxu0 0.0
    %4146 = vmatprep.subr.mxu0 0.0
    %4147 = vmatpush2.msra.mxu0 0.0
    %4148 = vmatprep.subr.mxu0 0.0
    %4149 = vmatpush2.msra.mxu0 0.0
    %4150 = vmatprep.subr.mxu0 0.0
    %4151 = vmatpush2.msra.mxu0 0.0
    %4152 = vmatprep.subr.mxu0 0.0
    %4153 = vmatpush2.msra.mxu0 0.0
    %4154 = vmatprep.subr.mxu0 0.0
    %4155 = vmatpush2.msra.mxu0 0.0
    %4156 = vmatprep.subr.mxu0 0.0
    %4157 = vmatpush2.msra.mxu0 0.0
    %4158 = vmatprep.subr.mxu0 0.0
    %4159 = vmatpush2.msra.mxu0 0.0
    %4160 = vmatprep.subr.mxu0 0.0
    %4161 = vmatpush2.msra.mxu0 0.0
    %4162 = vmatprep.subr.mxu0 0.0
    %4163 = vmatpush2.msra.mxu0 0.0
    %4164 = vmatprep.subr.mxu0 0.0
    %4165 = vmatpush2.msra.mxu0 0.0
    %4166 = vmatprep.subr.mxu0 0.0
    %4167 = vmatpush2.msra.mxu0 0.0
    %4168 = vmatprep.subr.mxu0 0.0
    %4169 = vmatpush2.msra.mxu0 0.0
    %4170 = vmatprep.subr.mxu0 0.0
    %4171 = vmatpush2.msra.mxu0 0.0
    %4172 = vmatprep.subr.mxu0 0.0
    %4173 = vmatpush2.msra.mxu0 0.0
    %4174 = vmatprep.subr.mxu0 0.0
    %4175 = vmatpush2.msra.mxu0 0.0
    %4176 = vmatprep.mubr.f32.mxu0 0.0
    %4177 = vmatmul.mubr.f32.gmra.mxu0 %v4107
    %v4178 = vpop.f32.mrf.mxu0
    %v4179 = vadd.f32 0.0, %v4178
    %v4180 = vpop.f32.mrf.mxu0
    %4181 = vmatprep.mubr.f32.mxu0 0.0
    %4182 = vmatmul.mubr.f32.gmra.mxu0 %v4110
    %v4183 = vpop.f32.mrf.mxu0
    %v4184 = vadd.f32 0.0, %v4183
    %v4185 = vpop.f32.mrf.mxu0
    %4186 = vdwg.mxu0
    %v4188 = vsel %vm1224, %v3936, 0
    %v4191 = vsel %vm1224, %v3941, 0
    %4193 = vmatprep.subr.mxu0 0.0
    %4194 = vmatpush1.msra.mxu0 0.0
    %4195 = vmatprep.subr.mxu0 0.0
    %4196 = vmatpush1.msra.mxu0 0.0
    %4197 = vmatprep.subr.mxu0 0.0
    %4198 = vmatpush1.msra.mxu0 0.0
    %4199 = vmatprep.subr.mxu0 0.0
    %4200 = vmatpush1.msra.mxu0 0.0
    %4201 = vmatprep.subr.mxu0 0.0
    %4202 = vmatpush1.msra.mxu0 0.0
    %4203 = vmatprep.subr.mxu0 0.0
    %4204 = vmatpush1.msra.mxu0 0.0
    %4205 = vmatprep.subr.mxu0 0.0
    %4206 = vmatpush1.msra.mxu0 0.0
    %4207 = vmatprep.subr.mxu0 0.0
    %4208 = vmatpush1.msra.mxu0 0.0
    %4209 = vmatprep.subr.mxu0 0.0
    %4210 = vmatpush1.msra.mxu0 0.0
    %4211 = vmatprep.subr.mxu0 0.0
    %4212 = vmatpush1.msra.mxu0 0.0
    %4213 = vmatprep.subr.mxu0 0.0
    %4214 = vmatpush1.msra.mxu0 0.0
    %4215 = vmatprep.subr.mxu0 0.0
    %4216 = vmatpush1.msra.mxu0 0.0
    %4217 = vmatprep.subr.mxu0 0.0
    %4218 = vmatpush1.msra.mxu0 0.0
    %4219 = vmatprep.subr.mxu0 0.0
    %4220 = vmatpush1.msra.mxu0 0.0
    %4221 = vmatprep.subr.mxu0 0.0
    %4222 = vmatpush1.msra.mxu0 0.0
    %4223 = vmatprep.subr.mxu0 0.0
    %4224 = vmatpush1.msra.mxu0 %v2438
    %4225 = vmatprep.subr.mxu0 0.0
    %4226 = vmatpush2.msra.mxu0 0.0
    %4227 = vmatprep.subr.mxu0 0.0
    %4228 = vmatpush2.msra.mxu0 0.0
    %4229 = vmatprep.subr.mxu0 0.0
    %4230 = vmatpush2.msra.mxu0 0.0
    %4231 = vmatprep.subr.mxu0 0.0
    %4232 = vmatpush2.msra.mxu0 0.0
    %4233 = vmatprep.subr.mxu0 0.0
    %4234 = vmatpush2.msra.mxu0 0.0
    %4235 = vmatprep.subr.mxu0 0.0
    %4236 = vmatpush2.msra.mxu0 0.0
    %4237 = vmatprep.subr.mxu0 0.0
    %4238 = vmatpush2.msra.mxu0 0.0
    %4239 = vmatprep.subr.mxu0 0.0
    %4240 = vmatpush2.msra.mxu0 0.0
    %4241 = vmatprep.subr.mxu0 0.0
    %4242 = vmatpush2.msra.mxu0 0.0
    %4243 = vmatprep.subr.mxu0 0.0
    %4244 = vmatpush2.msra.mxu0 0.0
    %4245 = vmatprep.subr.mxu0 0.0
    %4246 = vmatpush2.msra.mxu0 0.0
    %4247 = vmatprep.subr.mxu0 0.0
    %4248 = vmatpush2.msra.mxu0 0.0
    %4249 = vmatprep.subr.mxu0 0.0
    %4250 = vmatpush2.msra.mxu0 0.0
    %4251 = vmatprep.subr.mxu0 0.0
    %4252 = vmatpush2.msra.mxu0 0.0
    %4253 = vmatprep.subr.mxu0 0.0
    %4254 = vmatpush2.msra.mxu0 0.0
    %4255 = vmatprep.subr.mxu0 0.0
    %4256 = vmatpush2.msra.mxu0 0.0
    %4257 = vmatprep.mubr.f32.mxu0 0.0
    %4258 = vmatmul.mubr.f32.gmra.mxu0 %v4188
    %v4259 = vpop.f32.mrf.mxu0
    %v4260 = vadd.f32 0.0, %v4259
    %v4261 = vpop.f32.mrf.mxu0
    %4262 = vmatprep.mubr.f32.mxu0 0.0
    %4263 = vmatmul.mubr.f32.gmra.mxu0 %v4191
    %v4264 = vpop.f32.mrf.mxu0
    %v4265 = vadd.f32 0.0, %v4264
    %v4266 = vpop.f32.mrf.mxu0
    %4267 = vdwg.mxu0
    %v4269 = vsel %vm1224, %v4017, 0
    %v4272 = vsel %vm1224, %v4022, 0
    %4274 = vmatprep.subr.mxu0 0.0
    %4275 = vmatpush1.msra.mxu0 0.0
    %4276 = vmatprep.subr.mxu0 0.0
    %4277 = vmatpush1.msra.mxu0 0.0
    %4278 = vmatprep.subr.mxu0 0.0
    %4279 = vmatpush1.msra.mxu0 0.0
    %4280 = vmatprep.subr.mxu0 0.0
    %4281 = vmatpush1.msra.mxu0 0.0
    %4282 = vmatprep.subr.mxu0 0.0
    %4283 = vmatpush1.msra.mxu0 0.0
    %4284 = vmatprep.subr.mxu0 0.0
    %4285 = vmatpush1.msra.mxu0 0.0
    %4286 = vmatprep.subr.mxu0 0.0
    %4287 = vmatpush1.msra.mxu0 0.0
    %4288 = vmatprep.subr.mxu0 0.0
    %4289 = vmatpush1.msra.mxu0 0.0
    %4290 = vmatprep.subr.mxu0 0.0
    %4291 = vmatpush1.msra.mxu0 0.0
    %4292 = vmatprep.subr.mxu0 0.0
    %4293 = vmatpush1.msra.mxu0 0.0
    %4294 = vmatprep.subr.mxu0 0.0
    %4295 = vmatpush1.msra.mxu0 0.0
    %4296 = vmatprep.subr.mxu0 0.0
    %4297 = vmatpush1.msra.mxu0 0.0
    %4298 = vmatprep.subr.mxu0 0.0
    %4299 = vmatpush1.msra.mxu0 0.0
    %4300 = vmatprep.subr.mxu0 0.0
    %4301 = vmatpush1.msra.mxu0 0.0
    %4302 = vmatprep.subr.mxu0 0.0
    %4303 = vmatpush1.msra.mxu0 0.0
    %4304 = vmatprep.subr.mxu0 0.0
    %4305 = vmatpush1.msra.mxu0 %v2439
    %4306 = vmatprep.subr.mxu0 0.0
    %4307 = vmatpush2.msra.mxu0 0.0
    %4308 = vmatprep.subr.mxu0 0.0
    %4309 = vmatpush2.msra.mxu0 0.0
    %4310 = vmatprep.subr.mxu0 0.0
    %4311 = vmatpush2.msra.mxu0 0.0
    %4312 = vmatprep.subr.mxu0 0.0
    %4313 = vmatpush2.msra.mxu0 0.0
    %4314 = vmatprep.subr.mxu0 0.0
    %4315 = vmatpush2.msra.mxu0 0.0
    %4316 = vmatprep.subr.mxu0 0.0
    %4317 = vmatpush2.msra.mxu0 0.0
    %4318 = vmatprep.subr.mxu0 0.0
    %4319 = vmatpush2.msra.mxu0 0.0
    %4320 = vmatprep.subr.mxu0 0.0
    %4321 = vmatpush2.msra.mxu0 0.0
    %4322 = vmatprep.subr.mxu0 0.0
    %4323 = vmatpush2.msra.mxu0 0.0
    %4324 = vmatprep.subr.mxu0 0.0
    %4325 = vmatpush2.msra.mxu0 0.0
    %4326 = vmatprep.subr.mxu0 0.0
    %4327 = vmatpush2.msra.mxu0 0.0
    %4328 = vmatprep.subr.mxu0 0.0
    %4329 = vmatpush2.msra.mxu0 0.0
    %4330 = vmatprep.subr.mxu0 0.0
    %4331 = vmatpush2.msra.mxu0 0.0
    %4332 = vmatprep.subr.mxu0 0.0
    %4333 = vmatpush2.msra.mxu0 0.0
    %4334 = vmatprep.subr.mxu0 0.0
    %4335 = vmatpush2.msra.mxu0 0.0
    %4336 = vmatprep.subr.mxu0 0.0
    %4337 = vmatpush2.msra.mxu0 0.0
    %4338 = vmatprep.mubr.f32.mxu0 0.0
    %4339 = vmatmul.mubr.f32.gmra.mxu0 %v4269
    %v4340 = vpop.f32.mrf.mxu0
    %v4341 = vadd.f32 0.0, %v4340
    %v4342 = vpop.f32.mrf.mxu0
    %4343 = vmatprep.mubr.f32.mxu0 0.0
    %4344 = vmatmul.mubr.f32.gmra.mxu0 %v4272
    %v4345 = vpop.f32.mrf.mxu0
    %v4346 = vadd.f32 0.0, %v4345
    %v4347 = vpop.f32.mrf.mxu0
    %4348 = vdwg.mxu0
    %v4350 = vsel %vm1224, %v4098, 0
    %v4353 = vsel %vm1224, %v4103, 0
    %4355 = vmatprep.subr.mxu0 0.0
    %4356 = vmatpush1.msra.mxu0 0.0
    %4357 = vmatprep.subr.mxu0 0.0
    %4358 = vmatpush1.msra.mxu0 0.0
    %4359 = vmatprep.subr.mxu0 0.0
    %4360 = vmatpush1.msra.mxu0 0.0
    %4361 = vmatprep.subr.mxu0 0.0
    %4362 = vmatpush1.msra.mxu0 0.0
    %4363 = vmatprep.subr.mxu0 0.0
    %4364 = vmatpush1.msra.mxu0 0.0
    %4365 = vmatprep.subr.mxu0 0.0
    %4366 = vmatpush1.msra.mxu0 0.0
    %4367 = vmatprep.subr.mxu0 0.0
    %4368 = vmatpush1.msra.mxu0 0.0
    %4369 = vmatprep.subr.mxu0 0.0
    %4370 = vmatpush1.msra.mxu0 0.0
    %4371 = vmatprep.subr.mxu0 0.0
    %4372 = vmatpush1.msra.mxu0 0.0
    %4373 = vmatprep.subr.mxu0 0.0
    %4374 = vmatpush1.msra.mxu0 0.0
    %4375 = vmatprep.subr.mxu0 0.0
    %4376 = vmatpush1.msra.mxu0 0.0
    %4377 = vmatprep.subr.mxu0 0.0
    %4378 = vmatpush1.msra.mxu0 0.0
    %4379 = vmatprep.subr.mxu0 0.0
    %4380 = vmatpush1.msra.mxu0 0.0
    %4381 = vmatprep.subr.mxu0 0.0
    %4382 = vmatpush1.msra.mxu0 0.0
    %4383 = vmatprep.subr.mxu0 0.0
    %4384 = vmatpush1.msra.mxu0 0.0
    %4385 = vmatprep.subr.mxu0 0.0
    %4386 = vmatpush1.msra.mxu0 %v2440
    %4387 = vmatprep.subr.mxu0 0.0
    %4388 = vmatpush2.msra.mxu0 0.0
    %4389 = vmatprep.subr.mxu0 0.0
    %4390 = vmatpush2.msra.mxu0 0.0
    %4391 = vmatprep.subr.mxu0 0.0
    %4392 = vmatpush2.msra.mxu0 0.0
    %4393 = vmatprep.subr.mxu0 0.0
    %4394 = vmatpush2.msra.mxu0 0.0
    %4395 = vmatprep.subr.mxu0 0.0
    %4396 = vmatpush2.msra.mxu0 0.0
    %4397 = vmatprep.subr.mxu0 0.0
    %4398 = vmatpush2.msra.mxu0 0.0
    %4399 = vmatprep.subr.mxu0 0.0
    %4400 = vmatpush2.msra.mxu0 0.0
    %4401 = vmatprep.subr.mxu0 0.0
    %4402 = vmatpush2.msra.mxu0 0.0
    %4403 = vmatprep.subr.mxu0 0.0
    %4404 = vmatpush2.msra.mxu0 0.0
    %4405 = vmatprep.subr.mxu0 0.0
    %4406 = vmatpush2.msra.mxu0 0.0
    %4407 = vmatprep.subr.mxu0 0.0
    %4408 = vmatpush2.msra.mxu0 0.0
    %4409 = vmatprep.subr.mxu0 0.0
    %4410 = vmatpush2.msra.mxu0 0.0
    %4411 = vmatprep.subr.mxu0 0.0
    %4412 = vmatpush2.msra.mxu0 0.0
    %4413 = vmatprep.subr.mxu0 0.0
    %4414 = vmatpush2.msra.mxu0 0.0
    %4415 = vmatprep.subr.mxu0 0.0
    %4416 = vmatpush2.msra.mxu0 0.0
    %4417 = vmatprep.subr.mxu0 0.0
    %4418 = vmatpush2.msra.mxu0 0.0
    %4419 = vmatprep.mubr.f32.mxu0 0.0
    %4420 = vmatmul.mubr.f32.gmra.mxu0 %v4350
    %v4421 = vpop.f32.mrf.mxu0
    %v4422 = vadd.f32 0.0, %v4421
    %v4423 = vpop.f32.mrf.mxu0
    %4424 = vmatprep.mubr.f32.mxu0 0.0
    %4425 = vmatmul.mubr.f32.gmra.mxu0 %v4353
    %v4426 = vpop.f32.mrf.mxu0
    %v4427 = vadd.f32 0.0, %v4426
    %v4428 = vpop.f32.mrf.mxu0
    %4429 = vdwg.mxu0
    %v4431 = vsel %vm1224, %v4179, 0
    %v4434 = vsel %vm1224, %v4184, 0
    %4436 = vmatprep.subr.mxu0 0.0
    %4437 = vmatpush1.msra.mxu0 0.0
    %4438 = vmatprep.subr.mxu0 0.0
    %4439 = vmatpush1.msra.mxu0 0.0
    %4440 = vmatprep.subr.mxu0 0.0
    %4441 = vmatpush1.msra.mxu0 0.0
    %4442 = vmatprep.subr.mxu0 0.0
    %4443 = vmatpush1.msra.mxu0 0.0
    %4444 = vmatprep.subr.mxu0 0.0
    %4445 = vmatpush1.msra.mxu0 0.0
    %4446 = vmatprep.subr.mxu0 0.0
    %4447 = vmatpush1.msra.mxu0 0.0
    %4448 = vmatprep.subr.mxu0 0.0
    %4449 = vmatpush1.msra.mxu0 0.0
    %4450 = vmatprep.subr.mxu0 0.0
    %4451 = vmatpush1.msra.mxu0 0.0
    %4452 = vmatprep.subr.mxu0 0.0
    %4453 = vmatpush1.msra.mxu0 0.0
    %4454 = vmatprep.subr.mxu0 0.0
    %4455 = vmatpush1.msra.mxu0 0.0
    %4456 = vmatprep.subr.mxu0 0.0
    %4457 = vmatpush1.msra.mxu0 0.0
    %4458 = vmatprep.subr.mxu0 0.0
    %4459 = vmatpush1.msra.mxu0 0.0
    %4460 = vmatprep.subr.mxu0 0.0
    %4461 = vmatpush1.msra.mxu0 0.0
    %4462 = vmatprep.subr.mxu0 0.0
    %4463 = vmatpush1.msra.mxu0 0.0
    %4464 = vmatprep.subr.mxu0 0.0
    %4465 = vmatpush1.msra.mxu0 0.0
    %4466 = vmatprep.subr.mxu0 0.0
    %4467 = vmatpush1.msra.mxu0 %v2441
    %4468 = vmatprep.subr.mxu0 0.0
    %4469 = vmatpush2.msra.mxu0 0.0
    %4470 = vmatprep.subr.mxu0 0.0
    %4471 = vmatpush2.msra.mxu0 0.0
    %4472 = vmatprep.subr.mxu0 0.0
    %4473 = vmatpush2.msra.mxu0 0.0
    %4474 = vmatprep.subr.mxu0 0.0
    %4475 = vmatpush2.msra.mxu0 0.0
    %4476 = vmatprep.subr.mxu0 0.0
    %4477 = vmatpush2.msra.mxu0 0.0
    %4478 = vmatprep.subr.mxu0 0.0
    %4479 = vmatpush2.msra.mxu0 0.0
    %4480 = vmatprep.subr.mxu0 0.0
    %4481 = vmatpush2.msra.mxu0 0.0
    %4482 = vmatprep.subr.mxu0 0.0
    %4483 = vmatpush2.msra.mxu0 0.0
    %4484 = vmatprep.subr.mxu0 0.0
    %4485 = vmatpush2.msra.mxu0 0.0
    %4486 = vmatprep.subr.mxu0 0.0
    %4487 = vmatpush2.msra.mxu0 0.0
    %4488 = vmatprep.subr.mxu0 0.0
    %4489 = vmatpush2.msra.mxu0 0.0
    %4490 = vmatprep.subr.mxu0 0.0
    %4491 = vmatpush2.msra.mxu0 0.0
    %4492 = vmatprep.subr.mxu0 0.0
    %4493 = vmatpush2.msra.mxu0 0.0
    %4494 = vmatprep.subr.mxu0 0.0
    %4495 = vmatpush2.msra.mxu0 0.0
    %4496 = vmatprep.subr.mxu0 0.0
    %4497 = vmatpush2.msra.mxu0 0.0
    %4498 = vmatprep.subr.mxu0 0.0
    %4499 = vmatpush2.msra.mxu0 0.0
    %4500 = vmatprep.mubr.f32.mxu0 0.0
    %4501 = vmatmul.mubr.f32.gmra.mxu0 %v4431
    %v4502 = vpop.f32.mrf.mxu0
    %v4503 = vadd.f32 0.0, %v4502
    %v4504 = vpop.f32.mrf.mxu0
    %4505 = vmatprep.mubr.f32.mxu0 0.0
    %4506 = vmatmul.mubr.f32.gmra.mxu0 %v4434
    %v4507 = vpop.f32.mrf.mxu0
    %v4508 = vadd.f32 0.0, %v4507
    %v4509 = vpop.f32.mrf.mxu0
    %4510 = vdwg.mxu0
    %v4511 = vsel %vm137, %v4260, 0.0
    %v4512 = vsel %vm137, %v4341, 0.0
    %v4513 = vadd.f32 %v4511, %v4512
    %v4514 = vsel %vm137, %v4422, 0.0
    %v4515 = vadd.f32 %v4513, %v4514
    %v4516 = vsel %vm137, %v4503, 0.0
    %v4517 = vadd.f32 %v4515, %v4516
    %v4518 = vsel %vm137, %v4265, 0.0
    %v4519 = vsel %vm137, %v4346, 0.0
    %v4520 = vadd.f32 %v4518, %v4519
    %v4521 = vsel %vm137, %v4427, 0.0
    %v4522 = vadd.f32 %v4520, %v4521
    %v4523 = vsel %vm137, %v4508, 0.0
    %v4524 = vadd.f32 %v4522, %v4523
    %v4526 = vlaneseq
    %v4527 = vshrl.u32 %v4526, 7
    %v4528 = vsub.s32 0, %v4527
    %v4529 = vrot.slane %v2442, %v4528
    %v4531 = vadd.f32 %v4517, %v4529
    %v4532 = vadd.f32 %v4524, %v4529
    %v4533 = vadd.f32 %v2376, %v4531
    %v4534 = vadd.f32 %v2377, %v4532
    %v4535 = vld [vmem:[%s49] sm:$0x1]
    %v4536 = vld [vmem:[%s51] sm:$0x1]
    %v4537 = vsel %vm137, %v4533, 0.0
    %4538 = vadd.xlane.f32.xlu0 %v4537
    %v4539 = vpop.xlane.xlu0 %4538
    %v4540 = vsel %vm137, %v4534, 0.0
    %4541 = vadd.xlane.f32.xlu0 %v4540
    %v4542 = vpop.xlane.xlu0 %4541
    %v4543 = vmul.f32 %v4539, %v144
    %v4544 = vmul.f32 %v4542, %v144
    %v4545 = vsub.f32 %v4533, %v4543
    %v4546 = vsub.f32 %v4534, %v4544
    %v4547 = vmul.f32 %v4545, %v4545
    %v4548 = vmul.f32 %v4546, %v4546
    %v4549 = vsel %vm137, %v4547, 0.0
    %4550 = vadd.xlane.f32.xlu0 %v4549
    %v4551 = vpop.xlane.xlu0 %4550
    %v4552 = vsel %vm137, %v4548, 0.0
    %4553 = vadd.xlane.f32.xlu0 %v4552
    %v4554 = vpop.xlane.xlu0 %4553
    %v4555 = vmul.f32 %v4551, %v144
    %v4556 = vmul.f32 %v4554, %v144
    %v4557 = vadd.f32 %v4555, 1e-05
    %v4558 = vadd.f32 %v4556, 1e-05
    %v4559 = vrsqrt.pop %v4557
    %v4560 = vrsqrt.pop %v4558
    %v4561 = vmul.f32 %v4545, %v4559
    %v4562 = vmul.f32 %v4546, %v4560
    %v4564 = vlaneseq
    %v4565 = vshrl.u32 %v4564, 7
    %v4566 = vsub.s32 0, %v4565
    %v4567 = vrot.slane %v4535, %v4566
    %v4569 = vmul.f32 %v4561, %v4567
    %v4570 = vmul.f32 %v4562, %v4567
    %v4572 = vlaneseq
    %v4573 = vshrl.u32 %v4572, 7
    %v4574 = vsub.s32 0, %v4573
    %v4575 = vrot.slane %v4536, %v4574
    %v4577 = vadd.f32 %v4569, %v4575
    %v4578 = vadd.f32 %v4570, %v4575
    %v4579 = vld [vmem:[%s53] sm:$0xff]
    %v4580 = vld [vmem:[%s53 + $0x8] sm:$0xff]
    %v4581 = vld [vmem:[%s53 + $0x10] sm:$0xff]
    %v4582 = vld [vmem:[%s53 + $0x18] sm:$0xff]
    %v4583 = vld [vmem:[%s55] sm:$0x1]
    %v4585 = vlaneseq
    %v4586 = vshrl.u32 %v4585, 7
    %v4587 = vsub.s32 0, %v4586
    %v4588 = vrot.slane %v4583, %v4587
    %v4591 = vsel %vm137, %v4577, 0
    %v4594 = vsel %vm137, %v4578, 0
    %4596 = vmatprep.subr.mxu0 0.0
    %4597 = vmatpush1.msra.mxu0 0.0
    %4598 = vmatprep.subr.mxu0 0.0
    %4599 = vmatpush1.msra.mxu0 0.0
    %4600 = vmatprep.subr.mxu0 0.0
    %4601 = vmatpush1.msra.mxu0 0.0
    %4602 = vmatprep.subr.mxu0 0.0
    %4603 = vmatpush1.msra.mxu0 0.0
    %4604 = vmatprep.subr.mxu0 0.0
    %4605 = vmatpush1.msra.mxu0 0.0
    %4606 = vmatprep.subr.mxu0 0.0
    %4607 = vmatpush1.msra.mxu0 0.0
    %4608 = vmatprep.subr.mxu0 0.0
    %4609 = vmatpush1.msra.mxu0 0.0
    %4610 = vmatprep.subr.mxu0 0.0
    %4611 = vmatpush1.msra.mxu0 0.0
    %4612 = vmatprep.subr.mxu0 0.0
    %4613 = vmatpush1.msra.mxu0 0.0
    %4614 = vmatprep.subr.mxu0 0.0
    %4615 = vmatpush1.msra.mxu0 0.0
    %4616 = vmatprep.subr.mxu0 0.0
    %4617 = vmatpush1.msra.mxu0 0.0
    %4618 = vmatprep.subr.mxu0 0.0
    %4619 = vmatpush1.msra.mxu0 0.0
    %4620 = vmatprep.subr.mxu0 0.0
    %4621 = vmatpush1.msra.mxu0 %v4582
    %4622 = vmatprep.subr.mxu0 0.0
    %4623 = vmatpush1.msra.mxu0 %v4581
    %4624 = vmatprep.subr.mxu0 0.0
    %4625 = vmatpush1.msra.mxu0 %v4580
    %4626 = vmatprep.subr.mxu0 0.0
    %4627 = vmatpush1.msra.mxu0 %v4579
    %4628 = vmatprep.subr.mxu0 0.0
    %4629 = vmatpush2.msra.mxu0 0.0
    %4630 = vmatprep.subr.mxu0 0.0
    %4631 = vmatpush2.msra.mxu0 0.0
    %4632 = vmatprep.subr.mxu0 0.0
    %4633 = vmatpush2.msra.mxu0 0.0
    %4634 = vmatprep.subr.mxu0 0.0
    %4635 = vmatpush2.msra.mxu0 0.0
    %4636 = vmatprep.subr.mxu0 0.0
    %4637 = vmatpush2.msra.mxu0 0.0
    %4638 = vmatprep.subr.mxu0 0.0
    %4639 = vmatpush2.msra.mxu0 0.0
    %4640 = vmatprep.subr.mxu0 0.0
    %4641 = vmatpush2.msra.mxu0 0.0
    %4642 = vmatprep.subr.mxu0 0.0
    %4643 = vmatpush2.msra.mxu0 0.0
    %4644 = vmatprep.subr.mxu0 0.0
    %4645 = vmatpush2.msra.mxu0 0.0
    %4646 = vmatprep.subr.mxu0 0.0
    %4647 = vmatpush2.msra.mxu0 0.0
    %4648 = vmatprep.subr.mxu0 0.0
    %4649 = vmatpush2.msra.mxu0 0.0
    %4650 = vmatprep.subr.mxu0 0.0
    %4651 = vmatpush2.msra.mxu0 0.0
    %4652 = vmatprep.subr.mxu0 0.0
    %4653 = vmatpush2.msra.mxu0 0.0
    %4654 = vmatprep.subr.mxu0 0.0
    %4655 = vmatpush2.msra.mxu0 0.0
    %4656 = vmatprep.subr.mxu0 0.0
    %4657 = vmatpush2.msra.mxu0 0.0
    %4658 = vmatprep.subr.mxu0 0.0
    %4659 = vmatpush2.msra.mxu0 0.0
    %4660 = vmatprep.mubr.f32.mxu0 0.0
    %4661 = vmatmul.mubr.f32.gmra.mxu0 %v4591
    %v4662 = vpop.f32.mrf.mxu0
    %v4663 = vadd.f32 %v4588, %v4662
    %v4664 = vpop.f32.mrf.mxu0
    %4665 = vmatprep.mubr.f32.mxu0 0.0
    %4666 = vmatmul.mubr.f32.gmra.mxu0 %v4594
    %v4667 = vpop.f32.mrf.mxu0
    %v4668 = vadd.f32 %v4588, %v4667
    %v4669 = vpop.f32.mrf.mxu0
    %4670 = vdwg.mxu0
    %v4671 = vmax.f32 %v4663, 0.0
    %v4672 = vmax.f32 %v4668, 0.0
    %v4673 = vld [vmem:[%s57] sm:$0xff]
    %v4674 = vld [vmem:[%s57 + $0x8] sm:$0xff]
    %v4675 = vld [vmem:[%s57 + $0x10] sm:$0xff]
    %v4676 = vld [vmem:[%s57 + $0x18] sm:$0xff]
    %v4677 = vld [vmem:[%s57 + $0x20] sm:$0xff]
    %v4678 = vld [vmem:[%s57 + $0x28] sm:$0xff]
    %v4679 = vld [vmem:[%s57 + $0x30] sm:$0xff]
    %v4680 = vld [vmem:[%s57 + $0x38] sm:$0xff]
    %v4681 = vld [vmem:[%s57 + $0x40] sm:$0xff]
    %v4682 = vld [vmem:[%s57 + $0x48] sm:$0xff]
    %v4683 = vld [vmem:[%s57 + $0x50] sm:$0xff]
    %v4684 = vld [vmem:[%s57 + $0x58] sm:$0xff]
    %v4685 = vld [vmem:[%s57 + $0x60] sm:$0xff]
    %v4686 = vld [vmem:[%s57 + $0x68] sm:$0xff]
    %v4687 = vld [vmem:[%s57 + $0x70] sm:$0xff]
    %v4688 = vld [vmem:[%s57 + $0x78] sm:$0xff]
    %4689 = vmatprep.subr.mxu0 0.0
    %4690 = vmatpush1.msra.mxu0 %v4688
    %4691 = vmatprep.subr.mxu0 0.0
    %4692 = vmatpush1.msra.mxu0 %v4687
    %4693 = vmatprep.subr.mxu0 0.0
    %4694 = vmatpush1.msra.mxu0 %v4686
    %4695 = vmatprep.subr.mxu0 0.0
    %4696 = vmatpush1.msra.mxu0 %v4685
    %4697 = vmatprep.subr.mxu0 0.0
    %4698 = vmatpush1.msra.mxu0 %v4684
    %4699 = vmatprep.subr.mxu0 0.0
    %4700 = vmatpush1.msra.mxu0 %v4683
    %4701 = vmatprep.subr.mxu0 0.0
    %4702 = vmatpush1.msra.mxu0 %v4682
    %4703 = vmatprep.subr.mxu0 0.0
    %4704 = vmatpush1.msra.mxu0 %v4681
    %4705 = vmatprep.subr.mxu0 0.0
    %4706 = vmatpush1.msra.mxu0 %v4680
    %4707 = vmatprep.subr.mxu0 0.0
    %4708 = vmatpush1.msra.mxu0 %v4679
    %4709 = vmatprep.subr.mxu0 0.0
    %4710 = vmatpush1.msra.mxu0 %v4678
    %4711 = vmatprep.subr.mxu0 0.0
    %4712 = vmatpush1.msra.mxu0 %v4677
    %4713 = vmatprep.subr.mxu0 0.0
    %4714 = vmatpush1.msra.mxu0 %v4676
    %4715 = vmatprep.subr.mxu0 0.0
    %4716 = vmatpush1.msra.mxu0 %v4675
    %4717 = vmatprep.subr.mxu0 0.0
    %4718 = vmatpush1.msra.mxu0 %v4674
    %4719 = vmatprep.subr.mxu0 0.0
    %4720 = vmatpush1.msra.mxu0 %v4673
    %4721 = vmatprep.subr.mxu0 0.0
    %4722 = vmatpush2.msra.mxu0 0.0
    %4723 = vmatprep.subr.mxu0 0.0
    %4724 = vmatpush2.msra.mxu0 0.0
    %4725 = vmatprep.subr.mxu0 0.0
    %4726 = vmatpush2.msra.mxu0 0.0
    %4727 = vmatprep.subr.mxu0 0.0
    %4728 = vmatpush2.msra.mxu0 0.0
    %4729 = vmatprep.subr.mxu0 0.0
    %4730 = vmatpush2.msra.mxu0 0.0
    %4731 = vmatprep.subr.mxu0 0.0
    %4732 = vmatpush2.msra.mxu0 0.0
    %4733 = vmatprep.subr.mxu0 0.0
    %4734 = vmatpush2.msra.mxu0 0.0
    %4735 = vmatprep.subr.mxu0 0.0
    %4736 = vmatpush2.msra.mxu0 0.0
    %4737 = vmatprep.subr.mxu0 0.0
    %4738 = vmatpush2.msra.mxu0 0.0
    %4739 = vmatprep.subr.mxu0 0.0
    %4740 = vmatpush2.msra.mxu0 0.0
    %4741 = vmatprep.subr.mxu0 0.0
    %4742 = vmatpush2.msra.mxu0 0.0
    %4743 = vmatprep.subr.mxu0 0.0
    %4744 = vmatpush2.msra.mxu0 0.0
    %4745 = vmatprep.subr.mxu0 0.0
    %4746 = vmatpush2.msra.mxu0 0.0
    %4747 = vmatprep.subr.mxu0 0.0
    %4748 = vmatpush2.msra.mxu0 0.0
    %4749 = vmatprep.subr.mxu0 0.0
    %4750 = vmatpush2.msra.mxu0 0.0
    %4751 = vmatprep.subr.mxu0 0.0
    %4752 = vmatpush2.msra.mxu0 0.0
    %4753 = vmatprep.mubr.f32.mxu0 0.0
    %4754 = vmatmul.mubr.f32.gmra.mxu0 %v4671
    %v4755 = vpop.f32.mrf.mxu0
    %v4756 = vadd.f32 0.0, %v4755
    %v4757 = vpop.f32.mrf.mxu0
    %4758 = vmatprep.mubr.f32.mxu0 0.0
    %4759 = vmatmul.mubr.f32.gmra.mxu0 %v4672
    %v4760 = vpop.f32.mrf.mxu0
    %v4761 = vadd.f32 0.0, %v4760
    %v4762 = vpop.f32.mrf.mxu0
    %4763 = vdwg.mxu0
    %v4764 = vadd.f32 %v4577, %v4756
    %v4765 = vadd.f32 %v4578, %v4761
    %v4766 = vld [vmem:[%s59] sm:$0x1]
    %v4768 = vlaneseq
    %v4769 = vshrl.u32 %v4768, 7
    %v4770 = vsub.s32 0, %v4769
    %v4771 = vrot.slane %v4766, %v4770
    %v4773 = vadd.f32 %v4764, %v4771
    %v4774 = vadd.f32 %v4765, %v4771
    %4775 = vst.msk [vmem:[#allocation2] sm:$0xff] %vm137, %v4773
    %4776 = vst.msk [vmem:[#allocation2 + $0x8] sm:$0xff] %vm137, %v4774
    // Predicated region
    $region122: #{tpu_custom_call.1} parent=1 // pred_check
      _
    $region123: #{tpu_custom_call.1} parent=1 // pred_check_branch
      %4778 = sbr.rel (0) target = $region125
    $region124: #{tpu_custom_call.1} parent=1 // pred_region
      %s4780 = ssub.s32 256, 256
      %4781 = vsyncadd [#allocation3], %s4780
      %s4782 = sshll.u32 [#allocation2], 4
      %s4783 = int_to_ptr.vmem [resolvable:$true] %s4782
      %4788 = dma.vmem_to_hbm [thread:$0]  %s4783, 256, %s61, [#allocation3], 128, 128, 8
    $region125: #{tpu_custom_call.1} parent=1 // pred_fallthru
      _
    // Predicated region
    $region126: #{tpu_custom_call.1} parent=1 // pred_check
      _
    $region127: #{tpu_custom_call.1} parent=1 // pred_check_branch
      %4790 = sbr.rel (0) target = $region129
    $region128: #{tpu_custom_call.1} parent=1 // pred_region
      %4791 = dma.done [#allocation3], 256
    $region129: #{tpu_custom_call.1} parent=1 // pred_fallthru
      _
    %4792 = vsyncpa [#allocation3], 1

</llo_original>
